<compile_context>
chip_gen: v7x
topology: tpu7x:2x2x1
jax: 0.10.0
libtpu: 0.0.40
codegen_flags: <defaults>
</compile_context>

<pallas_src>
import functools

import jax
import jax.numpy as jnp
from jax import lax
from jax.experimental import pallas as pl
from jax.experimental.pallas import tpu as pltpu


# Column offset of the image interior inside the padded VMEM scratch.  16 keeps
# the interior store sublane-tile aligned for both f32 (8) and bf16 (16); the
# halo columns read by the conv are at _W_OFF - 1 and _W_OFF + W (always zero).
_W_OFF = 16
_STRIP_TARGET = 8      # target rows per im2col strip (review: 8-32)
_UNROLL_STRIPS = 3     # <= this many strips: static unroll; else lax.fori_loop

_VMEM_LIMIT = None
_SINGLE_DOT = None


def _vmem_limit_bytes():
    """Generation-aware scoped-VMEM budget (3/4 of physical, capped)."""
    global _VMEM_LIMIT
    if _VMEM_LIMIT is None:
        try:
            cap = int(pltpu.get_tpu_info().vmem_capacity_bytes)
        except Exception:
            cap = 64 * 1024 * 1024
        cap = max(cap, 32 * 1024 * 1024)
        _VMEM_LIMIT = min((cap * 3) // 4, 100 * 1024 * 1024)
    return _VMEM_LIMIT


def _pick_strip(h):
    for s in range(min(h, _STRIP_TARGET), 0, -1):
        if h % s == 0:
            return s
    return 1


def _strip_loop(n_strips, body):
    """Static unroll for short loops (LLO visibility), fori_loop otherwise
    (bounds live ranges / VMEM at large H)."""
    if n_strips <= _UNROLL_STRIPS:
        for s in range(n_strips):
            body(s)
    else:
        def fori_body(s, carry):
            body(s)
            return carry
        lax.fori_loop(0, n_strips, fori_body, 0)


# ----------------------------------------------------------------------------
# In-kernel building blocks
# ----------------------------------------------------------------------------
def _zero_halo(pad_ref, H, W):
    """Zero only the halo of the (H+2, W+2*_W_OFF, C) scratch: rows 0 / H+1 and
    the two _W_OFF-wide column bands.  The interior is fully overwritten by
    every conv, so no full-buffer clear is needed."""
    _, Wp, C = pad_ref.shape
    dt = pad_ref.dtype
    pad_ref[pl.ds(0, 1), :, :] = jnp.zeros((1, Wp, C), dt)
    pad_ref[pl.ds(H + 1, 1), :, :] = jnp.zeros((1, Wp, C), dt)
    pad_ref[:, pl.ds(0, _W_OFF), :] = jnp.zeros((H + 2, _W_OFF, C), dt)
    pad_ref[:, pl.ds(_W_OFF + W, _W_OFF), :] = jnp.zeros((H + 2, _W_OFF, C), dt)


def _conv3x3_strips(pad_ref, w_ref, b_ref, store_fn, *, H, W, strip_h, relu,
                    single_dot):
    """3x3 'same' conv of the interior of pad_ref, strip-mined over H.

    pad_ref : (H+2, W+2*_W_OFF, Cin) bf16 scratch, halo zero, interior filled
    w_ref   : (9*Cin, Cout) bf16, tap-major: row = (dy*3 + dx)*Cin + ci
    b_ref   : (1, Cout) f32
    store_fn(r0, val_f32): consumes each (strip_h, W, Cout) output strip.
    """
    Cin = pad_ref.shape[-1]
    Cout = w_ref.shape[-1]
    n_strips = H // strip_h

    w_val = w_ref[...]                              # bf16, loaded once
    bias = b_ref[...].astype(jnp.float32)           # (1, Cout)

    def strip(s):
        r0 = s * strip_h
        patches = []
        for dy in range(3):
            for dx in range(3):
                p = pad_ref[pl.ds(r0 + dy, strip_h),
                            pl.ds(_W_OFF - 1 + dx, W), :]
                patches.append(p.reshape(strip_h * W, Cin))
        if single_dot:
            # One deep MXU matmul, K = 9*Cin (bf16 operands, f32 accumulate).
            slab = jnp.concatenate(patches, axis=-1)        # (strip*W, 9*Cin)
            acc = jnp.dot(slab, w_val, preferred_element_type=jnp.float32)
        else:
            # Fallback: per-tap accumulation (always lowers).
            acc = jnp.zeros((strip_h * W, Cout), jnp.float32)
            for t, patch in enumerate(patches):
                acc = acc + jnp.dot(patch, w_val[t * Cin:(t + 1) * Cin, :],
                                    preferred_element_type=jnp.float32)
        acc = acc + bias
        if relu:
            acc = jnp.maximum(acc, 0.0)
        store_fn(r0, acc.reshape(strip_h, W, Cout))

    _strip_loop(n_strips, strip)


def _rcab_apply(src_ref, dst_ref, pad_a, pad_b, h2_ref, pool_ref,
                c1w, c1b, c2w, c2b, aw1, ab1, aw2, ab2,
                *, H, W, strip_h, single_dot):
    """One RCAB: conv3x3+ReLU -> conv3x3 -> global-avg-pool -> SE -> channel
    scale + residual.  Reads the feature map from src_ref, writes to dst_ref
    (they may be the same f32 VMEM scratch)."""
    C = dst_ref.shape[-1]
    inv_hw = 1.0 / float(H * W)

    # conv1 (+ReLU): src -> pad_b interior (bf16)
    pad_a[pl.ds(1, H), pl.ds(_W_OFF, W), :] = src_ref[...].astype(pad_a.dtype)

    def store_h1(r0, val):
        pad_b[pl.ds(r0 + 1, strip_h), pl.ds(_W_OFF, W), :] = \
            val.astype(pad_b.dtype)

    _conv3x3_strips(pad_a, c1w, c1b, store_h1, H=H, W=W, strip_h=strip_h,
                    relu=True, single_dot=single_dot)

    # conv2: pad_b -> h2 (f32), accumulating the pool channel sums per strip.
    pool_ref[...] = jnp.zeros_like(pool_ref)

    def store_h2(r0, val):
        h2_ref[pl.ds(r0, strip_h), :, :] = val
        pool_ref[...] = pool_ref[...] + jnp.sum(
            val.reshape(strip_h * W, C), axis=0, keepdims=True)

    _conv3x3_strips(pad_b, c2w, c2b, store_h2, H=H, W=W, strip_h=strip_h,
                    relu=False, single_dot=single_dot)

    # CALayer (squeeze-excite): two tiny matmuls, bf16 MXU operands, f32 math.
    pooled = pool_ref[...] * inv_hw                              # (1, C) f32
    w1 = aw1[...]
    w2 = aw2[...]
    y = jnp.dot(pooled.astype(w1.dtype), w1,
                preferred_element_type=jnp.float32) + ab1[...]
    y = jnp.maximum(y, 0.0)
    y = jnp.dot(y.astype(w2.dtype), w2,
                preferred_element_type=jnp.float32) + ab2[...]
    y = jax.nn.sigmoid(y)                                        # (1, C) f32

    # Channel scale + RCAB residual, all f32.
    dst_ref[...] = (h2_ref[...] * y.reshape(1, 1, C)
                    + src_ref[...].astype(jnp.float32)).astype(dst_ref.dtype)


# ----------------------------------------------------------------------------
# Pallas kernels
# ----------------------------------------------------------------------------
def _conv_kernel(*refs, relu, has_res, strip_h, single_dot):
    # inputs: x (H,W,Cin), w (9*Cin,Cout), b (1,Cout) [, res (H,W,Cout)]
    # output: o (H,W,Cout); scratch: pad (H+2, W+2*_W_OFF, Cin) bf16
    if has_res:
        x_ref, w_ref, b_ref, res_ref, o_ref, pad_ref = refs
    else:
        x_ref, w_ref, b_ref, o_ref, pad_ref = refs
        res_ref = None
    H, W, _ = o_ref.shape

    _zero_halo(pad_ref, H, W)
    pad_ref[pl.ds(1, H), pl.ds(_W_OFF, W), :] = x_ref[...].astype(pad_ref.dtype)

    def store(r0, val):
        if res_ref is not None:
            val = val + res_ref[pl.ds(r0, strip_h), :, :].astype(jnp.float32)
        o_ref[pl.ds(r0, strip_h), :, :] = val.astype(o_ref.dtype)

    _conv3x3_strips(pad_ref, w_ref, b_ref, store, H=H, W=W, strip_h=strip_h,
                    relu=relu, single_dot=single_dot)


def _rcab_kernel(x_ref, c1w, c1b, c2w, c2b, aw1, ab1, aw2, ab2, o_ref,
                 pad_a, pad_b, h2_ref, pool_ref, *, strip_h, single_dot):
    H, W, _ = o_ref.shape
    _zero_halo(pad_a, H, W)
    _zero_halo(pad_b, H, W)
    _rcab_apply(x_ref, o_ref, pad_a, pad_b, h2_ref, pool_ref,
                c1w, c1b, c2w, c2b, aw1, ab1, aw2, ab2,
                H=H, W=W, strip_h=strip_h, single_dot=single_dot)


def _group_kernel(*refs, n_blocks, strip_h, single_dot):
    # inputs: x, then 8 weight arrays per RCAB, then group conv (w, b)
    # output: o; scratches: pad_a, pad_b (bf16), h2, cur (f32), pool (1,C) f32
    n_w = 8 * n_blocks + 2
    x_ref = refs[0]
    w = refs[1:1 + n_w]
    o_ref = refs[1 + n_w]
    pad_a, pad_b, h2_ref, cur_ref, pool_ref = refs[2 + n_w:]
    H, W, _ = o_ref.shape

    _zero_halo(pad_a, H, W)
    _zero_halo(pad_b, H, W)

    src = x_ref
    for blk in range(n_blocks):
        c1w, c1b, c2w, c2b, aw1, ab1, aw2, ab2 = w[8 * blk:8 * blk + 8]
        _rcab_apply(src, cur_ref, pad_a, pad_b, h2_ref, pool_ref,
                    c1w, c1b, c2w, c2b, aw1, ab1, aw2, ab2,
                    H=H, W=W, strip_h=strip_h, single_dot=single_dot)
        src = cur_ref

    # Group tail conv + group residual (reads the original x block).
    gw, gb = w[8 * n_blocks], w[8 * n_blocks + 1]
    pad_a[pl.ds(1, H), pl.ds(_W_OFF, W), :] = src[...].astype(pad_a.dtype)

    def store_out(r0, val):
        res = x_ref[pl.ds(r0, strip_h), :, :].astype(jnp.float32)
        o_ref[pl.ds(r0, strip_h), :, :] = (val + res).astype(o_ref.dtype)

    _conv3x3_strips(pad_a, gw, gb, store_out, H=H, W=W, strip_h=strip_h,
                    relu=False, single_dot=single_dot)


# ----------------------------------------------------------------------------
# pallas_call wrappers
# ----------------------------------------------------------------------------
def _compiler_params():
    return pltpu.CompilerParams(dimension_semantics=("parallel",),
                                vmem_limit_bytes=_vmem_limit_bytes())


def _conv3x3_call(x, w, b, *, relu, residual, single_dot):
    N, H, W, Cin = x.shape
    Cout = w.shape[-1]
    strip_h = _pick_strip(H)
    in_specs = [
        pl.BlockSpec((None, H, W, Cin), lambda n: (n, 0, 0, 0)),
        pl.BlockSpec((9 * Cin, Cout), lambda n: (0, 0)),
        pl.BlockSpec((1, Cout), lambda n: (0, 0)),
    ]
    args = [x, w, b]
    has_res = residual is not None
    if has_res:
        in_specs.append(pl.BlockSpec((None, H, W, Cout), lambda n: (n, 0, 0, 0)))
        args.append(residual)
    kern = functools.partial(_conv_kernel, relu=relu, has_res=has_res,
                             strip_h=strip_h, single_dot=single_dot)
    return pl.pallas_call(
        kern,
        out_shape=jax.ShapeDtypeStruct((N, H, W, Cout), x.dtype),
        grid=(N,),
        in_specs=in_specs,
        out_specs=pl.BlockSpec((None, H, W, Cout), lambda n: (n, 0, 0, 0)),
        scratch_shapes=[pltpu.VMEM((H + 2, W + 2 * _W_OFF, Cin), jnp.bfloat16)],
        compiler_params=_compiler_params(),
    )(*args)


def _use_single_dot():
    """Probe once whether this Mosaic build lowers the lane-concatenated bf16
    im2col slab; otherwise fall back to per-tap accumulation."""
    global _SINGLE_DOT
    if _SINGLE_DOT is None:
        try:
            xp = jnp.zeros((1, 8, 8, 8), jnp.float32)
            wp = jnp.zeros((72, 8), jnp.bfloat16)
            bp = jnp.zeros((1, 8), jnp.float32)
            jax.block_until_ready(
                _conv3x3_call(xp, wp, bp, relu=False, residual=None,
                              single_dot=True))
            _SINGLE_DOT = True
        except Exception:
            _SINGLE_DOT = False
    return _SINGLE_DOT


def conv3x3(x, w, b, *, relu=False, residual=None):
    """3x3 same conv, NHWC, optional fused ReLU / residual add."""
    return _conv3x3_call(x, w, b, relu=relu, residual=residual,
                         single_dot=_use_single_dot())


def _rcab_weight_specs(C, Cr):
    return [
        pl.BlockSpec((9 * C, C), lambda n: (0, 0)),
        pl.BlockSpec((1, C), lambda n: (0, 0)),
        pl.BlockSpec((9 * C, C), lambda n: (0, 0)),
        pl.BlockSpec((1, C), lambda n: (0, 0)),
        pl.BlockSpec((C, Cr), lambda n: (0, 0)),
        pl.BlockSpec((1, Cr), lambda n: (0, 0)),
        pl.BlockSpec((Cr, C), lambda n: (0, 0)),
        pl.BlockSpec((1, C), lambda n: (0, 0)),
    ]


def rcab_forward(x, p):
    """One fused pallas_call per RCAB (fallback path for huge feature maps)."""
    N, H, W, C = x.shape
    Cr = p["ca_w1"].shape[-1]
    strip_h = _pick_strip(H)
    kern = functools.partial(_rcab_kernel, strip_h=strip_h,
                             single_dot=_use_single_dot())
    return pl.pallas_call(
        kern,
        out_shape=jax.ShapeDtypeStruct((N, H, W, C), x.dtype),
        grid=(N,),
        in_specs=[pl.BlockSpec((None, H, W, C), lambda n: (n, 0, 0, 0))]
                 + _rcab_weight_specs(C, Cr),
        out_specs=pl.BlockSpec((None, H, W, C), lambda n: (n, 0, 0, 0)),
        scratch_shapes=[
            pltpu.VMEM((H + 2, W + 2 * _W_OFF, C), jnp.bfloat16),   # pad_a
            pltpu.VMEM((H + 2, W + 2 * _W_OFF, C), jnp.bfloat16),   # pad_b
            pltpu.VMEM((H, W, C), jnp.float32),                     # h2
            pltpu.VMEM((1, C), jnp.float32),                        # pool sums
        ],
        compiler_params=_compiler_params(),
    )(x, p["c1_w"], p["c1_b"], p["c2_w"], p["c2_b"],
      p["ca_w1"], p["ca_b1"], p["ca_w2"], p["ca_b2"])


def _group_call(x, p):
    """Whole ResidualGroup (all RCABs + tail conv + group residual) fused into
    a single pallas_call with every weight resident in VMEM."""
    N, H, W, C = x.shape
    Cr = p["blocks"][0]["ca_w1"].shape[-1]
    n_blocks = len(p["blocks"])
    strip_h = _pick_strip(H)

    args = [x]
    in_specs = [pl.BlockSpec((None, H, W, C), lambda n: (n, 0, 0, 0))]
    for blk in p["blocks"]:
        args += [blk["c1_w"], blk["c1_b"], blk["c2_w"], blk["c2_b"],
                 blk["ca_w1"], blk["ca_b1"], blk["ca_w2"], blk["ca_b2"]]
        in_specs += _rcab_weight_specs(C, Cr)
    args += [p["conv_w"], p["conv_b"]]
    in_specs += [pl.BlockSpec((9 * C, C), lambda n: (0, 0)),
                 pl.BlockSpec((1, C), lambda n: (0, 0))]

    kern = functools.partial(_group_kernel, n_blocks=n_blocks, strip_h=strip_h,
                             single_dot=_use_single_dot())
    return pl.pallas_call(
        kern,
        out_shape=jax.ShapeDtypeStruct((N, H, W, C), x.dtype),
        grid=(N,),
        in_specs=in_specs,
        out_specs=pl.BlockSpec((None, H, W, C), lambda n: (n, 0, 0, 0)),
        scratch_shapes=[
            pltpu.VMEM((H + 2, W + 2 * _W_OFF, C), jnp.bfloat16),   # pad_a
            pltpu.VMEM((H + 2, W + 2 * _W_OFF, C), jnp.bfloat16),   # pad_b
            pltpu.VMEM((H, W, C), jnp.float32),                     # h2
            pltpu.VMEM((H, W, C), jnp.float32),                     # cur map
            pltpu.VMEM((1, C), jnp.float32),                        # pool sums
        ],
        compiler_params=_compiler_params(),
    )(*args)


def _group_vmem_bytes(H, W, C, Cr, n_blocks):
    bf16, f32 = 2, 4
    io_blocks = 2 * 2 * H * W * C * f32                      # x & o, dbl-buffered
    pads = 2 * (H + 2) * (W + 2 * _W_OFF) * C * bf16
    maps = 2 * H * W * C * f32                               # cur + h2 scratch
    w_blk = (2 * 9 * C * C + 2 * C * Cr) * bf16 + (3 * C + Cr) * f32
    weights = n_blocks * w_blk + 9 * C * C * bf16 + C * f32
    return io_blocks + pads + maps + 2 * weights + C * f32


def residual_group_forward(x, p, *, force_unfused=False):
    N, H, W, C = x.shape
    Cr = p["blocks"][0]["ca_w1"].shape[-1]
    n_blocks = len(p["blocks"])
    fits = _group_vmem_bytes(H, W, C, Cr, n_blocks) < 0.7 * _vmem_limit_bytes()
    if fits and not force_unfused:
        return _group_call(x, p)
    # Fallback: per-RCAB fused kernels + standalone tail conv (feature map
    # round-trips HBM between blocks, but everything inside a block stays fused).
    h = x
    for blk in p["blocks"]:
        h = rcab_forward(h, blk)
    return conv3x3(h, p["conv_w"], p["conv_b"], relu=False, residual=x)


# ----------------------------------------------------------------------------
# Model glue (plain JAX)
# ----------------------------------------------------------------------------
RGB_MEAN = jnp.array([0.4488, 0.4371, 0.404], jnp.float32)
RGB_STD = jnp.array([1.0, 1.0, 1.0], jnp.float32)


def mean_shift(x_nhwc, rgb_range, sign):
    # MeanShift is a fixed 1x1 conv: weight = eye(3)/std, bias = sign*range*mean/std
    # => a per-channel affine (diagonal), kept as glue.
    return x_nhwc / RGB_STD + sign * rgb_range * RGB_MEAN / RGB_STD


def pixel_shuffle_nhwc(x, r):
    # PyTorch PixelShuffle semantics: channel index = c*r*r + dh*r + dw
    N, H, W, Crr = x.shape
    C = Crr // (r * r)
    x = x.reshape(N, H, W, C, r, r)
    x = jnp.transpose(x, (0, 1, 4, 2, 5, 3))   # N, H, dh, W, dw, C
    return x.reshape(N, H * r, W * r, C)


def rcan_forward(x_nchw, params, *, rgb_range=1.0, scale=2):
    # PyTorch input is NCHW; kernels use NHWC.
    x = jnp.transpose(x_nchw, (0, 2, 3, 1))
    x = mean_shift(x, rgb_range, sign=-1.0)                 # sub_mean
    x = conv3x3(x, params["head_w"], params["head_b"])      # head
    res = x
    for g in params["groups"]:                              # body (fused groups)
        res = residual_group_forward(res, g)
    res = conv3x3(res, params["body_w"], params["body_b"], residual=x)
    # tail: Upsampler(conv n_feats -> scale^2*n_feats, PixelShuffle) then conv
    t = conv3x3(res, params["up_w"], params["up_b"])
    t = pixel_shuffle_nhwc(t, scale)
    t = conv3x3(t, params["tail_w"], params["tail_b"])
    t = mean_shift(t, rgb_range, sign=+1.0)                 # add_mean
    return jnp.transpose(t, (0, 3, 1, 2))                   # back to NCHW


# ----------------------------------------------------------------------------
# Deterministic parameter construction (bf16 MXU weights, f32 biases)
# ----------------------------------------------------------------------------
def _init_conv(key, cin, cout):
    # Weights stored im2col-ready: (9*cin, cout), row = (dy*3+dx)*cin + ci
    kw, kb = jax.random.split(key)
    w = (jax.random.normal(kw, (9 * cin, cout), jnp.float32) * 0.05)
    b = jax.random.normal(kb, (1, cout), jnp.float32) * 0.01
    return w.astype(jnp.bfloat16), b


def _init_lin(key, cin, cout):
    kw, kb = jax.random.split(key)
    w = (jax.random.normal(kw, (cin, cout), jnp.float32) * 0.05)
    b = jax.random.normal(kb, (1, cout), jnp.float32) * 0.01
    return w.astype(jnp.bfloat16), b


def init_rcan_params(key, n_colors, n_feats, reduction, n_resgroups,
                     n_resblocks, scale):
    keys = iter(jax.random.split(key, 8 + n_resgroups * (n_resblocks * 4 + 1)))
    params = {}
    params["head_w"], params["head_b"] = _init_conv(next(keys), n_colors, n_feats)
    groups = []
    for _ in range(n_resgroups):
        blocks = []
        for _ in range(n_resblocks):
            c1_w, c1_b = _init_conv(next(keys), n_feats, n_feats)
            c2_w, c2_b = _init_conv(next(keys), n_feats, n_feats)
            ca_w1, ca_b1 = _init_lin(next(keys), n_feats, n_feats // reduction)
            ca_w2, ca_b2 = _init_lin(next(keys), n_feats // reduction, n_feats)
            blocks.append(dict(c1_w=c1_w, c1_b=c1_b, c2_w=c2_w, c2_b=c2_b,
                               ca_w1=ca_w1, ca_b1=ca_b1,
                               ca_w2=ca_w2, ca_b2=ca_b2))
        gw, gb = _init_conv(next(keys), n_feats, n_feats)
        groups.append(dict(blocks=blocks, conv_w=gw, conv_b=gb))
    params["groups"] = groups
    params["body_w"], params["body_b"] = _init_conv(next(keys), n_feats, n_feats)
    params["up_w"], params["up_b"] = _init_conv(next(keys), n_feats,
                                                n_feats * scale * scale)
    params["tail_w"], params["tail_b"] = _init_conv(next(keys), n_feats, n_colors)
    return params


# ----------------------------------------------------------------------------
if __name__ == "__main__":
    # Small RCAN config: dim=2, n_colors=3, n_feats=16, reduction=4,
    # n_resgroups=2, n_resblocks=2, scale=2, rgb_range=1.0
    n_colors, n_feats, reduction = 3, 16, 4
    n_resgroups, n_resblocks, scale = 2, 2, 2
    rgb_range = 1.0
    N, H, W = 2, 16, 16

    key = jax.random.PRNGKey(0)
    k_params, k_x = jax.random.split(key)
    params = init_rcan_params(k_params, n_colors, n_feats, reduction,
                              n_resgroups, n_resblocks, scale)
    x = jax.random.normal(k_x, (N, n_colors, H, W), jnp.float32)  # NCHW input

    y = rcan_forward(x, params, rgb_range=rgb_range, scale=scale)
    y = jax.block_until_ready(y)
    assert y.shape == (N, n_colors, H * scale, W * scale), y.shape
    assert jnp.all(jnp.isfinite(y))

    # Cross-check the fused ResidualGroup kernel against the per-RCAB fallback
    # path (same math, different kernel structure).
    feats = conv3x3(mean_shift(jnp.transpose(x, (0, 2, 3, 1)), rgb_range, -1.0),
                    params["head_w"], params["head_b"])
    g0 = params["groups"][0]
    fused = jax.block_until_ready(residual_group_forward(feats, g0))
    unfused = jax.block_until_ready(
        residual_group_forward(feats, g0, force_unfused=True))
    assert jnp.allclose(fused, unfused, atol=1e-3, rtol=1e-3), \
        float(jnp.max(jnp.abs(fused - unfused)))

    print("KERNEL_OK")
</pallas_src>

<mosaic_0001>
module attributes {stable_mosaic.version = 11 : i64} {
  func.func @_conv_kernel(%arg0: i32, %arg1: memref<1x8x8x8xf32, #tpu.memory_space<vmem>>, %arg2: memref<72x8xbf16, #tpu.memory_space<vmem>>, %arg3: memref<1x8xf32, #tpu.memory_space<vmem>>, %arg4: memref<1x8x8x8xf32, #tpu.memory_space<vmem>>, %arg5: memref<10x40x8xbf16, #tpu.memory_space<vmem>>) attributes {dimension_semantics = [#tpu.dimension_semantics<parallel>], iteration_bounds = array<i64: 1>, scalar_prefetch = 0 : i64, scratch_operands = 1 : i64, tpu.core_type = #tpu.core_type<tc>, window_params = [{transform_indices = @transform_0, window_bounds = array<i64: 1, 8, 8, 8>}, {pipeline_mode = #tpu.pipeline_mode<synchronous>, transform_indices = @transform_1, window_bounds = array<i64: 72, 8>}, {pipeline_mode = #tpu.pipeline_mode<synchronous>, transform_indices = @transform_2, window_bounds = array<i64: 1, 8>}, {transform_indices = @transform_3, window_bounds = array<i64: 1, 8, 8, 8>}]} {
    %cst = arith.constant 0.000000e+00 : bf16
    %0 = vector.broadcast %cst : bf16 to vector<1x40x8xbf16>
    %c0 = arith.constant 0 : index
    %c0_0 = arith.constant 0 : index
    %c0_1 = arith.constant 0 : index
    %1 = vector.load %arg5[%c0, %c0_0, %c0_1] : memref<10x40x8xbf16, #tpu.memory_space<vmem>>, vector<1x40x8xbf16>
    tpu.vector_store %arg5[%c0, %c0_0, %c0_1], %0 {strides = array<i32>} : memref<10x40x8xbf16, #tpu.memory_space<vmem>>, vector<1x40x8xbf16>,
    %cst_2 = arith.constant 0.000000e+00 : bf16
    %2 = vector.broadcast %cst_2 : bf16 to vector<1x40x8xbf16>
    %c9 = arith.constant 9 : index
    %c0_3 = arith.constant 0 : index
    %c0_4 = arith.constant 0 : index
    %3 = vector.load %arg5[%c9, %c0_3, %c0_4] : memref<10x40x8xbf16, #tpu.memory_space<vmem>>, vector<1x40x8xbf16>
    tpu.vector_store %arg5[%c9, %c0_3, %c0_4], %2 {strides = array<i32>} : memref<10x40x8xbf16, #tpu.memory_space<vmem>>, vector<1x40x8xbf16>,
    %cst_5 = arith.constant 0.000000e+00 : bf16
    %4 = vector.broadcast %cst_5 : bf16 to vector<10x16x8xbf16>
    %c0_6 = arith.constant 0 : index
    %c0_7 = arith.constant 0 : index
    %c0_8 = arith.constant 0 : index
    %5 = vector.load %arg5[%c0_6, %c0_7, %c0_8] : memref<10x40x8xbf16, #tpu.memory_space<vmem>>, vector<10x16x8xbf16>
    tpu.vector_store %arg5[%c0_6, %c0_7, %c0_8], %4 {strides = array<i32>} : memref<10x40x8xbf16, #tpu.memory_space<vmem>>, vector<10x16x8xbf16>,
    %cst_9 = arith.constant 0.000000e+00 : bf16
    %6 = vector.broadcast %cst_9 : bf16 to vector<10x16x8xbf16>
    %c0_10 = arith.constant 0 : index
    %c24 = arith.constant 24 : index
    %c0_11 = arith.constant 0 : index
    %7 = vector.load %arg5[%c0_10, %c24, %c0_11] : memref<10x40x8xbf16, #tpu.memory_space<vmem>>, vector<10x16x8xbf16>
    tpu.vector_store %arg5[%c0_10, %c24, %c0_11], %6 {strides = array<i32>} : memref<10x40x8xbf16, #tpu.memory_space<vmem>>, vector<10x16x8xbf16>,
    %c0_12 = arith.constant 0 : index
    %c0_13 = arith.constant 0 : index
    %c0_14 = arith.constant 0 : index
    %c0_15 = arith.constant 0 : index
    %8 = vector.load %arg1[%c0_12, %c0_13, %c0_14, %c0_15] : memref<1x8x8x8xf32, #tpu.memory_space<vmem>>, vector<1x8x8x8xf32>
    %9 = vector.shape_cast %8 : vector<1x8x8x8xf32> to vector<8x8x8xf32>
    %10 = arith.truncf %9 : vector<8x8x8xf32> to vector<8x8x8xbf16>
    %c1 = arith.constant 1 : index
    %c16 = arith.constant 16 : index
    %c0_16 = arith.constant 0 : index
    %11 = vector.load %arg5[%c1, %c16, %c0_16] : memref<10x40x8xbf16, #tpu.memory_space<vmem>>, vector<8x8x8xbf16>
    tpu.vector_store %arg5[%c1, %c16, %c0_16], %10 {strides = array<i32>} : memref<10x40x8xbf16, #tpu.memory_space<vmem>>, vector<8x8x8xbf16>,
    %c0_17 = arith.constant 0 : index
    %c0_18 = arith.constant 0 : index
    %12 = vector.load %arg2[%c0_17, %c0_18] : memref<72x8xbf16, #tpu.memory_space<vmem>>, vector<72x8xbf16>
    %c0_19 = arith.constant 0 : index
    %c0_20 = arith.constant 0 : index
    %13 = vector.load %arg3[%c0_19, %c0_20] : memref<1x8xf32, #tpu.memory_space<vmem>>, vector<1x8xf32>
    %c0_21 = arith.constant 0 : index
    %c15 = arith.constant 15 : index
    %c0_22 = arith.constant 0 : index
    %14 = vector.load %arg5[%c0_21, %c15, %c0_22] : memref<10x40x8xbf16, #tpu.memory_space<vmem>>, vector<8x8x8xbf16>
    %15 = vector.shape_cast %14 : vector<8x8x8xbf16> to vector<64x8xbf16>
    %c0_23 = arith.constant 0 : index
    %c16_24 = arith.constant 16 : index
    %c0_25 = arith.constant 0 : index
    %16 = vector.load %arg5[%c0_23, %c16_24, %c0_25] : memref<10x40x8xbf16, #tpu.memory_space<vmem>>, vector<8x8x8xbf16>
    %17 = vector.shape_cast %16 : vector<8x8x8xbf16> to vector<64x8xbf16>
    %c0_26 = arith.constant 0 : index
    %c17 = arith.constant 17 : index
    %c0_27 = arith.constant 0 : index
    %18 = vector.load %arg5[%c0_26, %c17, %c0_27] : memref<10x40x8xbf16, #tpu.memory_space<vmem>>, vector<8x8x8xbf16>
    %19 = vector.shape_cast %18 : vector<8x8x8xbf16> to vector<64x8xbf16>
    %c1_28 = arith.constant 1 : index
    %c15_29 = arith.constant 15 : index
    %c0_30 = arith.constant 0 : index
    %20 = vector.load %arg5[%c1_28, %c15_29, %c0_30] : memref<10x40x8xbf16, #tpu.memory_space<vmem>>, vector<8x8x8xbf16>
    %21 = vector.shape_cast %20 : vector<8x8x8xbf16> to vector<64x8xbf16>
    %c1_31 = arith.constant 1 : index
    %c16_32 = arith.constant 16 : index
    %c0_33 = arith.constant 0 : index
    %22 = vector.load %arg5[%c1_31, %c16_32, %c0_33] : memref<10x40x8xbf16, #tpu.memory_space<vmem>>, vector<8x8x8xbf16>
    %23 = vector.shape_cast %22 : vector<8x8x8xbf16> to vector<64x8xbf16>
    %c1_34 = arith.constant 1 : index
    %c17_35 = arith.constant 17 : index
    %c0_36 = arith.constant 0 : index
    %24 = vector.load %arg5[%c1_34, %c17_35, %c0_36] : memref<10x40x8xbf16, #tpu.memory_space<vmem>>, vector<8x8x8xbf16>
    %25 = vector.shape_cast %24 : vector<8x8x8xbf16> to vector<64x8xbf16>
    %c2 = arith.constant 2 : index
    %c15_37 = arith.constant 15 : index
    %c0_38 = arith.constant 0 : index
    %26 = vector.load %arg5[%c2, %c15_37, %c0_38] : memref<10x40x8xbf16, #tpu.memory_space<vmem>>, vector<8x8x8xbf16>
    %27 = vector.shape_cast %26 : vector<8x8x8xbf16> to vector<64x8xbf16>
    %c2_39 = arith.constant 2 : index
    %c16_40 = arith.constant 16 : index
    %c0_41 = arith.constant 0 : index
    %28 = vector.load %arg5[%c2_39, %c16_40, %c0_41] : memref<10x40x8xbf16, #tpu.memory_space<vmem>>, vector<8x8x8xbf16>
    %29 = vector.shape_cast %28 : vector<8x8x8xbf16> to vector<64x8xbf16>
    %c2_42 = arith.constant 2 : index
    %c17_43 = arith.constant 17 : index
    %c0_44 = arith.constant 0 : index
    %30 = vector.load %arg5[%c2_42, %c17_43, %c0_44] : memref<10x40x8xbf16, #tpu.memory_space<vmem>>, vector<8x8x8xbf16>
    %31 = vector.shape_cast %30 : vector<8x8x8xbf16> to vector<64x8xbf16>
    %32 = tpu.concatenate %15, %17, %19, %21, %23, %25, %27, %29, %31 in 1 : vector<64x8xbf16>, vector<64x8xbf16>, vector<64x8xbf16>, vector<64x8xbf16>, vector<64x8xbf16>, vector<64x8xbf16>, vector<64x8xbf16>, vector<64x8xbf16>, vector<64x8xbf16> -> vector<64x72xbf16>
    %cst_45 = arith.constant dense<0.000000e+00> : vector<64x8xf32>
    %33 = tpu.matmul %32, %12, %cst_45 {dimension_numbers = #tpu.dot_dimension_numbers<[1], [0], [0], [1], [0, 0, 1, 1], [], []>} : vector<64x72xbf16>, vector<72x8xbf16>, vector<64x8xf32> -> vector<64x8xf32>
    %34 = vector.broadcast %13 : vector<1x8xf32> to vector<64x8xf32>
    %35 = arith.addf %33, %34 : vector<64x8xf32>
    %36 = vector.shape_cast %35 : vector<64x8xf32> to vector<8x8x8xf32>
    %c0_46 = arith.constant 0 : index
    %c0_47 = arith.constant 0 : index
    %c0_48 = arith.constant 0 : index
    %c0_49 = arith.constant 0 : index
    %37 = vector.load %arg4[%c0_46, %c0_47, %c0_48, %c0_49] : memref<1x8x8x8xf32, #tpu.memory_space<vmem>>, vector<1x8x8x8xf32>
    %38 = vector.shape_cast %37 : vector<1x8x8x8xf32> to vector<8x8x8xf32>
    %39 = vector.shape_cast %36 : vector<8x8x8xf32> to vector<1x8x8x8xf32>
    tpu.vector_store %arg4[%c0_46, %c0_47, %c0_48, %c0_49], %39 {strides = array<i32>} : memref<1x8x8x8xf32, #tpu.memory_space<vmem>>, vector<1x8x8x8xf32>,
    return
  }
  func.func @transform_0(%arg0: i32) -> (i32, i32, i32, i32) {
    %c0_i32 = arith.constant 0 : i32
    %c0_i32_0 = arith.constant 0 : i32
    %c0_i32_1 = arith.constant 0 : i32
    %c0_i32_2 = arith.constant 0 : i32
    return %arg0, %c0_i32, %c0_i32_0, %c0_i32_1 : i32, i32, i32, i32
  }
  func.func @transform_1(%arg0: i32) -> (i32, i32) {
    %c0_i32 = arith.constant 0 : i32
    %c0_i32_0 = arith.constant 0 : i32
    %c0_i32_1 = arith.constant 0 : i32
    return %c0_i32, %c0_i32_0 : i32, i32
  }
  func.func @transform_2(%arg0: i32) -> (i32, i32) {
    %c0_i32 = arith.constant 0 : i32
    %c0_i32_0 = arith.constant 0 : i32
    %c0_i32_1 = arith.constant 0 : i32
    return %c0_i32, %c0_i32_0 : i32, i32
  }
  func.func @transform_3(%arg0: i32) -> (i32, i32, i32, i32) {
    %c0_i32 = arith.constant 0 : i32
    %c0_i32_0 = arith.constant 0 : i32
    %c0_i32_1 = arith.constant 0 : i32
    %c0_i32_2 = arith.constant 0 : i32
    return %arg0, %c0_i32, %c0_i32_0, %c0_i32_1 : i32, i32, i32, i32
  }
}

module attributes {stable_mosaic.version = 11 : i64} {
  func.func @_conv_kernel(%arg0: i32, %arg1: memref<1x16x16x3xf32, #tpu.memory_space<vmem>>, %arg2: memref<27x16xbf16, #tpu.memory_space<vmem>>, %arg3: memref<1x16xf32, #tpu.memory_space<vmem>>, %arg4: memref<1x16x16x16xf32, #tpu.memory_space<vmem>>, %arg5: memref<18x48x3xbf16, #tpu.memory_space<vmem>>) attributes {dimension_semantics = [#tpu.dimension_semantics<parallel>], iteration_bounds = array<i64: 2>, scalar_prefetch = 0 : i64, scratch_operands = 1 : i64, tpu.core_type = #tpu.core_type<tc>, window_params = [{transform_indices = @transform_0, window_bounds = array<i64: 1, 16, 16, 3>}, {pipeline_mode = #tpu.pipeline_mode<synchronous>, transform_indices = @transform_1, window_bounds = array<i64: 27, 16>}, {pipeline_mode = #tpu.pipeline_mode<synchronous>, transform_indices = @transform_2, window_bounds = array<i64: 1, 16>}, {transform_indices = @transform_3, window_bounds = array<i64: 1, 16, 16, 16>}]} {
    %cst = arith.constant 0.000000e+00 : bf16
    %0 = vector.broadcast %cst : bf16 to vector<1x48x3xbf16>
    %c0 = arith.constant 0 : index
    %c0_0 = arith.constant 0 : index
    %c0_1 = arith.constant 0 : index
    %1 = vector.load %arg5[%c0, %c0_0, %c0_1] : memref<18x48x3xbf16, #tpu.memory_space<vmem>>, vector<1x48x3xbf16>
    tpu.vector_store %arg5[%c0, %c0_0, %c0_1], %0 {strides = array<i32>} : memref<18x48x3xbf16, #tpu.memory_space<vmem>>, vector<1x48x3xbf16>,
    %cst_2 = arith.constant 0.000000e+00 : bf16
    %2 = vector.broadcast %cst_2 : bf16 to vector<1x48x3xbf16>
    %c17 = arith.constant 17 : index
    %c0_3 = arith.constant 0 : index
    %c0_4 = arith.constant 0 : index
    %3 = vector.load %arg5[%c17, %c0_3, %c0_4] : memref<18x48x3xbf16, #tpu.memory_space<vmem>>, vector<1x48x3xbf16>
    tpu.vector_store %arg5[%c17, %c0_3, %c0_4], %2 {strides = array<i32>} : memref<18x48x3xbf16, #tpu.memory_space<vmem>>, vector<1x48x3xbf16>,
    %cst_5 = arith.constant 0.000000e+00 : bf16
    %4 = vector.broadcast %cst_5 : bf16 to vector<18x16x3xbf16>
    %c0_6 = arith.constant 0 : index
    %c0_7 = arith.constant 0 : index
    %c0_8 = arith.constant 0 : index
    %5 = vector.load %arg5[%c0_6, %c0_7, %c0_8] : memref<18x48x3xbf16, #tpu.memory_space<vmem>>, vector<18x16x3xbf16>
    tpu.vector_store %arg5[%c0_6, %c0_7, %c0_8], %4 {strides = array<i32>} : memref<18x48x3xbf16, #tpu.memory_space<vmem>>, vector<18x16x3xbf16>,
    %cst_9 = arith.constant 0.000000e+00 : bf16
    %6 = vector.broadcast %cst_9 : bf16 to vector<18x16x3xbf16>
    %c0_10 = arith.constant 0 : index
    %c32 = arith.constant 32 : index
    %c0_11 = arith.constant 0 : index
    %7 = vector.load %arg5[%c0_10, %c32, %c0_11] : memref<18x48x3xbf16, #tpu.memory_space<vmem>>, vector<18x16x3xbf16>
    tpu.vector_store %arg5[%c0_10, %c32, %c0_11], %6 {strides = array<i32>} : memref<18x48x3xbf16, #tpu.memory_space<vmem>>, vector<18x16x3xbf16>,
    %c0_12 = arith.constant 0 : index
    %c0_13 = arith.constant 0 : index
    %c0_14 = arith.constant 0 : index
    %c0_15 = arith.constant 0 : index
    %8 = vector.load %arg1[%c0_12, %c0_13, %c0_14, %c0_15] : memref<1x16x16x3xf32, #tpu.memory_space<vmem>>, vector<1x16x16x3xf32>
    %9 = vector.shape_cast %8 : vector<1x16x16x3xf32> to vector<16x16x3xf32>
    %10 = arith.truncf %9 : vector<16x16x3xf32> to vector<16x16x3xbf16>
    %c1 = arith.constant 1 : index
    %c16 = arith.constant 16 : index
    %c0_16 = arith.constant 0 : index
    %11 = vector.load %arg5[%c1, %c16, %c0_16] : memref<18x48x3xbf16, #tpu.memory_space<vmem>>, vector<16x16x3xbf16>
    tpu.vector_store %arg5[%c1, %c16, %c0_16], %10 {strides = array<i32>} : memref<18x48x3xbf16, #tpu.memory_space<vmem>>, vector<16x16x3xbf16>,
    %c0_17 = arith.constant 0 : index
    %c0_18 = arith.constant 0 : index
    %12 = vector.load %arg2[%c0_17, %c0_18] : memref<27x16xbf16, #tpu.memory_space<vmem>>, vector<27x16xbf16>
    %c0_19 = arith.constant 0 : index
    %c0_20 = arith.constant 0 : index
    %13 = vector.load %arg3[%c0_19, %c0_20] : memref<1x16xf32, #tpu.memory_space<vmem>>, vector<1x16xf32>
    %c0_21 = arith.constant 0 : index
    %c15 = arith.constant 15 : index
    %c0_22 = arith.constant 0 : index
    %14 = vector.load %arg5[%c0_21, %c15, %c0_22] : memref<18x48x3xbf16, #tpu.memory_space<vmem>>, vector<8x16x3xbf16>
    %15 = vector.shape_cast %14 : vector<8x16x3xbf16> to vector<128x3xbf16>
    %c0_23 = arith.constant 0 : index
    %c16_24 = arith.constant 16 : index
    %c0_25 = arith.constant 0 : index
    %16 = vector.load %arg5[%c0_23, %c16_24, %c0_25] : memref<18x48x3xbf16, #tpu.memory_space<vmem>>, vector<8x16x3xbf16>
    %17 = vector.shape_cast %16 : vector<8x16x3xbf16> to vector<128x3xbf16>
    %c0_26 = arith.constant 0 : index
    %c17_27 = arith.constant 17 : index
    %c0_28 = arith.constant 0 : index
    %18 = vector.load %arg5[%c0_26, %c17_27, %c0_28] : memref<18x48x3xbf16, #tpu.memory_space<vmem>>, vector<8x16x3xbf16>
    %19 = vector.shape_cast %18 : vector<8x16x3xbf16> to vector<128x3xbf16>
    %c1_29 = arith.constant 1 : index
    %c15_30 = arith.constant 15 : index
    %c0_31 = arith.constant 0 : index
    %20 = vector.load %arg5[%c1_29, %c15_30, %c0_31] : memref<18x48x3xbf16, #tpu.memory_space<vmem>>, vector<8x16x3xbf16>
    %21 = vector.shape_cast %20 : vector<8x16x3xbf16> to vector<128x3xbf16>
    %c1_32 = arith.constant 1 : index
    %c16_33 = arith.constant 16 : index
    %c0_34 = arith.constant 0 : index
    %22 = vector.load %arg5[%c1_32, %c16_33, %c0_34] : memref<18x48x3xbf16, #tpu.memory_space<vmem>>, vector<8x16x3xbf16>
    %23 = vector.shape_cast %22 : vector<8x16x3xbf16> to vector<128x3xbf16>
    %c1_35 = arith.constant 1 : index
    %c17_36 = arith.constant 17 : index
    %c0_37 = arith.constant 0 : index
    %24 = vector.load %arg5[%c1_35, %c17_36, %c0_37] : memref<18x48x3xbf16, #tpu.memory_space<vmem>>, vector<8x16x3xbf16>
    %25 = vector.shape_cast %24 : vector<8x16x3xbf16> to vector<128x3xbf16>
    %c2 = arith.constant 2 : index
    %c15_38 = arith.constant 15 : index
    %c0_39 = arith.constant 0 : index
    %26 = vector.load %arg5[%c2, %c15_38, %c0_39] : memref<18x48x3xbf16, #tpu.memory_space<vmem>>, vector<8x16x3xbf16>
    %27 = vector.shape_cast %26 : vector<8x16x3xbf16> to vector<128x3xbf16>
    %c2_40 = arith.constant 2 : index
    %c16_41 = arith.constant 16 : index
    %c0_42 = arith.constant 0 : index
    %28 = vector.load %arg5[%c2_40, %c16_41, %c0_42] : memref<18x48x3xbf16, #tpu.memory_space<vmem>>, vector<8x16x3xbf16>
    %29 = vector.shape_cast %28 : vector<8x16x3xbf16> to vector<128x3xbf16>
    %c2_43 = arith.constant 2 : index
    %c17_44 = arith.constant 17 : index
    %c0_45 = arith.constant 0 : index
    %30 = vector.load %arg5[%c2_43, %c17_44, %c0_45] : memref<18x48x3xbf16, #tpu.memory_space<vmem>>, vector<8x16x3xbf16>
    %31 = vector.shape_cast %30 : vector<8x16x3xbf16> to vector<128x3xbf16>
    %cst_46 = arith.constant 0.000000e+00 : f32
    %32 = vector.broadcast %cst_46 : f32 to vector<128x16xf32>
    %33 = vector.extract_strided_slice %12 {offsets = [0, 0], sizes = [3, 16], strides = [1, 1]} : vector<27x16xbf16> to vector<3x16xbf16>
    %cst_47 = arith.constant dense<0.000000e+00> : vector<128x16xf32>
    %34 = tpu.matmul %15, %33, %cst_47 {dimension_numbers = #tpu.dot_dimension_numbers<[1], [0], [0], [1], [0, 0, 1, 1], [], []>} : vector<128x3xbf16>, vector<3x16xbf16>, vector<128x16xf32> -> vector<128x16xf32>
    %35 = arith.addf %32, %34 : vector<128x16xf32>
    %36 = vector.extract_strided_slice %12 {offsets = [3, 0], sizes = [3, 16], strides = [1, 1]} : vector<27x16xbf16> to vector<3x16xbf16>
    %cst_48 = arith.constant dense<0.000000e+00> : vector<128x16xf32>
    %37 = tpu.matmul %17, %36, %cst_48 {dimension_numbers = #tpu.dot_dimension_numbers<[1], [0], [0], [1], [0, 0, 1, 1], [], []>} : vector<128x3xbf16>, vector<3x16xbf16>, vector<128x16xf32> -> vector<128x16xf32>
    %38 = arith.addf %35, %37 : vector<128x16xf32>
    %39 = vector.extract_strided_slice %12 {offsets = [6, 0], sizes = [3, 16], strides = [1, 1]} : vector<27x16xbf16> to vector<3x16xbf16>
    %cst_49 = arith.constant dense<0.000000e+00> : vector<128x16xf32>
    %40 = tpu.matmul %19, %39, %cst_49 {dimension_numbers = #tpu.dot_dimension_numbers<[1], [0], [0], [1], [0, 0, 1, 1], [], []>} : vector<128x3xbf16>, vector<3x16xbf16>, vector<128x16xf32> -> vector<128x16xf32>
    %41 = arith.addf %38, %40 : vector<128x16xf32>
    %42 = vector.extract_strided_slice %12 {offsets = [9, 0], sizes = [3, 16], strides = [1, 1]} : vector<27x16xbf16> to vector<3x16xbf16>
    %cst_50 = arith.constant dense<0.000000e+00> : vector<128x16xf32>
    %43 = tpu.matmul %21, %42, %cst_50 {dimension_numbers = #tpu.dot_dimension_numbers<[1], [0], [0], [1], [0, 0, 1, 1], [], []>} : vector<128x3xbf16>, vector<3x16xbf16>, vector<128x16xf32> -> vector<128x16xf32>
    %44 = arith.addf %41, %43 : vector<128x16xf32>
    %45 = vector.extract_strided_slice %12 {offsets = [12, 0], sizes = [3, 16], strides = [1, 1]} : vector<27x16xbf16> to vector<3x16xbf16>
    %cst_51 = arith.constant dense<0.000000e+00> : vector<128x16xf32>
    %46 = tpu.matmul %23, %45, %cst_51 {dimension_numbers = #tpu.dot_dimension_numbers<[1], [0], [0], [1], [0, 0, 1, 1], [], []>} : vector<128x3xbf16>, vector<3x16xbf16>, vector<128x16xf32> -> vector<128x16xf32>
    %47 = arith.addf %44, %46 : vector<128x16xf32>
    %48 = vector.extract_strided_slice %12 {offsets = [15, 0], sizes = [3, 16], strides = [1, 1]} : vector<27x16xbf16> to vector<3x16xbf16>
    %cst_52 = arith.constant dense<0.000000e+00> : vector<128x16xf32>
    %49 = tpu.matmul %25, %48, %cst_52 {dimension_numbers = #tpu.dot_dimension_numbers<[1], [0], [0], [1], [0, 0, 1, 1], [], []>} : vector<128x3xbf16>, vector<3x16xbf16>, vector<128x16xf32> -> vector<128x16xf32>
    %50 = arith.addf %47, %49 : vector<128x16xf32>
    %51 = vector.extract_strided_slice %12 {offsets = [18, 0], sizes = [3, 16], strides = [1, 1]} : vector<27x16xbf16> to vector<3x16xbf16>
    %cst_53 = arith.constant dense<0.000000e+00> : vector<128x16xf32>
    %52 = tpu.matmul %27, %51, %cst_53 {dimension_numbers = #tpu.dot_dimension_numbers<[1], [0], [0], [1], [0, 0, 1, 1], [], []>} : vector<128x3xbf16>, vector<3x16xbf16>, vector<128x16xf32> -> vector<128x16xf32>
    %53 = arith.addf %50, %52 : vector<128x16xf32>
    %54 = vector.extract_strided_slice %12 {offsets = [21, 0], sizes = [3, 16], strides = [1, 1]} : vector<27x16xbf16> to vector<3x16xbf16>
    %cst_54 = arith.constant dense<0.000000e+00> : vector<128x16xf32>
    %55 = tpu.matmul %29, %54, %cst_54 {dimension_numbers = #tpu.dot_dimension_numbers<[1], [0], [0], [1], [0, 0, 1, 1], [], []>} : vector<128x3xbf16>, vector<3x16xbf16>, vector<128x16xf32> -> vector<128x16xf32>
    %56 = arith.addf %53, %55 : vector<128x16xf32>
    %57 = vector.extract_strided_slice %12 {offsets = [24, 0], sizes = [3, 16], strides = [1, 1]} : vector<27x16xbf16> to vector<3x16xbf16>
    %cst_55 = arith.constant dense<0.000000e+00> : vector<128x16xf32>
    %58 = tpu.matmul %31, %57, %cst_55 {dimension_numbers = #tpu.dot_dimension_numbers<[1], [0], [0], [1], [0, 0, 1, 1], [], []>} : vector<128x3xbf16>, vector<3x16xbf16>, vector<128x16xf32> -> vector<128x16xf32>
    %59 = arith.addf %56, %58 : vector<128x16xf32>
    %60 = vector.broadcast %13 : vector<1x16xf32> to vector<128x16xf32>
    %61 = arith.addf %59, %60 : vector<128x16xf32>
    %62 = vector.shape_cast %61 : vector<128x16xf32> to vector<8x16x16xf32>
    %c0_56 = arith.constant 0 : index
    %c0_57 = arith.constant 0 : index
    %c0_58 = arith.constant 0 : index
    %c0_59 = arith.constant 0 : index
    %63 = vector.load %arg4[%c0_56, %c0_57, %c0_58, %c0_59] : memref<1x16x16x16xf32, #tpu.memory_space<vmem>>, vector<1x8x16x16xf32>
    %64 = vector.shape_cast %63 : vector<1x8x16x16xf32> to vector<8x16x16xf32>
    %65 = vector.shape_cast %62 : vector<8x16x16xf32> to vector<1x8x16x16xf32>
    tpu.vector_store %arg4[%c0_56, %c0_57, %c0_58, %c0_59], %65 {strides = array<i32>} : memref<1x16x16x16xf32, #tpu.memory_space<vmem>>, vector<1x8x16x16xf32>,
    %c8 = arith.constant 8 : index
    %c15_60 = arith.constant 15 : index
    %c0_61 = arith.constant 0 : index
    %66 = vector.load %arg5[%c8, %c15_60, %c0_61] : memref<18x48x3xbf16, #tpu.memory_space<vmem>>, vector<8x16x3xbf16>
    %67 = vector.shape_cast %66 : vector<8x16x3xbf16> to vector<128x3xbf16>
    %c8_62 = arith.constant 8 : index
    %c16_63 = arith.constant 16 : index
    %c0_64 = arith.constant 0 : index
    %68 = vector.load %arg5[%c8_62, %c16_63, %c0_64] : memref<18x48x3xbf16, #tpu.memory_space<vmem>>, vector<8x16x3xbf16>
    %69 = vector.shape_cast %68 : vector<8x16x3xbf16> to vector<128x3xbf16>
    %c8_65 = arith.constant 8 : index
    %c17_66 = arith.constant 17 : index
    %c0_67 = arith.constant 0 : index
    %70 = vector.load %arg5[%c8_65, %c17_66, %c0_67] : memref<18x48x3xbf16, #tpu.memory_space<vmem>>, vector<8x16x3xbf16>
    %71 = vector.shape_cast %70 : vector<8x16x3xbf16> to vector<128x3xbf16>
    %c9 = arith.constant 9 : index
    %c15_68 = arith.constant 15 : index
    %c0_69 = arith.constant 0 : index
    %72 = vector.load %arg5[%c9, %c15_68, %c0_69] : memref<18x48x3xbf16, #tpu.memory_space<vmem>>, vector<8x16x3xbf16>
    %73 = vector.shape_cast %72 : vector<8x16x3xbf16> to vector<128x3xbf16>
    %c9_70 = arith.constant 9 : index
    %c16_71 = arith.constant 16 : index
    %c0_72 = arith.constant 0 : index
    %74 = vector.load %arg5[%c9_70, %c16_71, %c0_72] : memref<18x48x3xbf16, #tpu.memory_space<vmem>>, vector<8x16x3xbf16>
    %75 = vector.shape_cast %74 : vector<8x16x3xbf16> to vector<128x3xbf16>
    %c9_73 = arith.constant 9 : index
    %c17_74 = arith.constant 17 : index
    %c0_75 = arith.constant 0 : index
    %76 = vector.load %arg5[%c9_73, %c17_74, %c0_75] : memref<18x48x3xbf16, #tpu.memory_space<vmem>>, vector<8x16x3xbf16>
    %77 = vector.shape_cast %76 : vector<8x16x3xbf16> to vector<128x3xbf16>
    %c10 = arith.constant 10 : index
    %c15_76 = arith.constant 15 : index
    %c0_77 = arith.constant 0 : index
    %78 = vector.load %arg5[%c10, %c15_76, %c0_77] : memref<18x48x3xbf16, #tpu.memory_space<vmem>>, vector<8x16x3xbf16>
    %79 = vector.shape_cast %78 : vector<8x16x3xbf16> to vector<128x3xbf16>
    %c10_78 = arith.constant 10 : index
    %c16_79 = arith.constant 16 : index
    %c0_80 = arith.constant 0 : index
    %80 = vector.load %arg5[%c10_78, %c16_79, %c0_80] : memref<18x48x3xbf16, #tpu.memory_space<vmem>>, vector<8x16x3xbf16>
    %81 = vector.shape_cast %80 : vector<8x16x3xbf16> to vector<128x3xbf16>
    %c10_81 = arith.constant 10 : index
    %c17_82 = arith.constant 17 : index
    %c0_83 = arith.constant 0 : index
    %82 = vector.load %arg5[%c10_81, %c17_82, %c0_83] : memref<18x48x3xbf16, #tpu.memory_space<vmem>>, vector<8x16x3xbf16>
    %83 = vector.shape_cast %82 : vector<8x16x3xbf16> to vector<128x3xbf16>
    %cst_84 = arith.constant 0.000000e+00 : f32
    %84 = vector.broadcast %cst_84 : f32 to vector<128x16xf32>
    %85 = vector.extract_strided_slice %12 {offsets = [0, 0], sizes = [3, 16], strides = [1, 1]} : vector<27x16xbf16> to vector<3x16xbf16>
    %cst_85 = arith.constant dense<0.000000e+00> : vector<128x16xf32>
    %86 = tpu.matmul %67, %85, %cst_85 {dimension_numbers = #tpu.dot_dimension_numbers<[1], [0], [0], [1], [0, 0, 1, 1], [], []>} : vector<128x3xbf16>, vector<3x16xbf16>, vector<128x16xf32> -> vector<128x16xf32>
    %87 = arith.addf %84, %86 : vector<128x16xf32>
    %88 = vector.extract_strided_slice %12 {offsets = [3, 0], sizes = [3, 16], strides = [1, 1]} : vector<27x16xbf16> to vector<3x16xbf16>
    %cst_86 = arith.constant dense<0.000000e+00> : vector<128x16xf32>
    %89 = tpu.matmul %69, %88, %cst_86 {dimension_numbers = #tpu.dot_dimension_numbers<[1], [0], [0], [1], [0, 0, 1, 1], [], []>} : vector<128x3xbf16>, vector<3x16xbf16>, vector<128x16xf32> -> vector<128x16xf32>
    %90 = arith.addf %87, %89 : vector<128x16xf32>
    %91 = vector.extract_strided_slice %12 {offsets = [6, 0], sizes = [3, 16], strides = [1, 1]} : vector<27x16xbf16> to vector<3x16xbf16>
    %cst_87 = arith.constant dense<0.000000e+00> : vector<128x16xf32>
    %92 = tpu.matmul %71, %91, %cst_87 {dimension_numbers = #tpu.dot_dimension_numbers<[1], [0], [0], [1], [0, 0, 1, 1], [], []>} : vector<128x3xbf16>, vector<3x16xbf16>, vector<128x16xf32> -> vector<128x16xf32>
    %93 = arith.addf %90, %92 : vector<128x16xf32>
    %94 = vector.extract_strided_slice %12 {offsets = [9, 0], sizes = [3, 16], strides = [1, 1]} : vector<27x16xbf16> to vector<3x16xbf16>
    %cst_88 = arith.constant dense<0.000000e+00> : vector<128x16xf32>
    %95 = tpu.matmul %73, %94, %cst_88 {dimension_numbers = #tpu.dot_dimension_numbers<[1], [0], [0], [1], [0, 0, 1, 1], [], []>} : vector<128x3xbf16>, vector<3x16xbf16>, vector<128x16xf32> -> vector<128x16xf32>
    %96 = arith.addf %93, %95 : vector<128x16xf32>
    %97 = vector.extract_strided_slice %12 {offsets = [12, 0], sizes = [3, 16], strides = [1, 1]} : vector<27x16xbf16> to vector<3x16xbf16>
    %cst_89 = arith.constant dense<0.000000e+00> : vector<128x16xf32>
    %98 = tpu.matmul %75, %97, %cst_89 {dimension_numbers = #tpu.dot_dimension_numbers<[1], [0], [0], [1], [0, 0, 1, 1], [], []>} : vector<128x3xbf16>, vector<3x16xbf16>, vector<128x16xf32> -> vector<128x16xf32>
    %99 = arith.addf %96, %98 : vector<128x16xf32>
    %100 = vector.extract_strided_slice %12 {offsets = [15, 0], sizes = [3, 16], strides = [1, 1]} : vector<27x16xbf16> to vector<3x16xbf16>
    %cst_90 = arith.constant dense<0.000000e+00> : vector<128x16xf32>
    %101 = tpu.matmul %77, %100, %cst_90 {dimension_numbers = #tpu.dot_dimension_numbers<[1], [0], [0], [1], [0, 0, 1, 1], [], []>} : vector<128x3xbf16>, vector<3x16xbf16>, vector<128x16xf32> -> vector<128x16xf32>
    %102 = arith.addf %99, %101 : vector<128x16xf32>
    %103 = vector.extract_strided_slice %12 {offsets = [18, 0], sizes = [3, 16], strides = [1, 1]} : vector<27x16xbf16> to vector<3x16xbf16>
    %cst_91 = arith.constant dense<0.000000e+00> : vector<128x16xf32>
    %104 = tpu.matmul %79, %103, %cst_91 {dimension_numbers = #tpu.dot_dimension_numbers<[1], [0], [0], [1], [0, 0, 1, 1], [], []>} : vector<128x3xbf16>, vector<3x16xbf16>, vector<128x16xf32> -> vector<128x16xf32>
    %105 = arith.addf %102, %104 : vector<128x16xf32>
    %106 = vector.extract_strided_slice %12 {offsets = [21, 0], sizes = [3, 16], strides = [1, 1]} : vector<27x16xbf16> to vector<3x16xbf16>
    %cst_92 = arith.constant dense<0.000000e+00> : vector<128x16xf32>
    %107 = tpu.matmul %81, %106, %cst_92 {dimension_numbers = #tpu.dot_dimension_numbers<[1], [0], [0], [1], [0, 0, 1, 1], [], []>} : vector<128x3xbf16>, vector<3x16xbf16>, vector<128x16xf32> -> vector<128x16xf32>
    %108 = arith.addf %105, %107 : vector<128x16xf32>
    %109 = vector.extract_strided_slice %12 {offsets = [24, 0], sizes = [3, 16], strides = [1, 1]} : vector<27x16xbf16> to vector<3x16xbf16>
    %cst_93 = arith.constant dense<0.000000e+00> : vector<128x16xf32>
    %110 = tpu.matmul %83, %109, %cst_93 {dimension_numbers = #tpu.dot_dimension_numbers<[1], [0], [0], [1], [0, 0, 1, 1], [], []>} : vector<128x3xbf16>, vector<3x16xbf16>, vector<128x16xf32> -> vector<128x16xf32>
    %111 = arith.addf %108, %110 : vector<128x16xf32>
    %112 = vector.broadcast %13 : vector<1x16xf32> to vector<128x16xf32>
    %113 = arith.addf %111, %112 : vector<128x16xf32>
    %114 = vector.shape_cast %113 : vector<128x16xf32> to vector<8x16x16xf32>
    %c0_94 = arith.constant 0 : index
    %c8_95 = arith.constant 8 : index
    %c0_96 = arith.constant 0 : index
    %c0_97 = arith.constant 0 : index
    %115 = vector.load %arg4[%c0_94, %c8_95, %c0_96, %c0_97] : memref<1x16x16x16xf32, #tpu.memory_space<vmem>>, vector<1x8x16x16xf32>
    %116 = vector.shape_cast %115 : vector<1x8x16x16xf32> to vector<8x16x16xf32>
    %117 = vector.shape_cast %114 : vector<8x16x16xf32> to vector<1x8x16x16xf32>
    tpu.vector_store %arg4[%c0_94, %c8_95, %c0_96, %c0_97], %117 {strides = array<i32>} : memref<1x16x16x16xf32, #tpu.memory_space<vmem>>, vector<1x8x16x16xf32>,
    return
  }
  func.func @transform_0(%arg0: i32) -> (i32, i32, i32, i32) {
    %c0_i32 = arith.constant 0 : i32
    %c0_i32_0 = arith.constant 0 : i32
    %c0_i32_1 = arith.constant 0 : i32
    %c0_i32_2 = arith.constant 0 : i32
    return %arg0, %c0_i32, %c0_i32_0, %c0_i32_1 : i32, i32, i32, i32
  }
  func.func @transform_1(%arg0: i32) -> (i32, i32) {
    %c0_i32 = arith.constant 0 : i32
    %c0_i32_0 = arith.constant 0 : i32
    %c0_i32_1 = arith.constant 0 : i32
    return %c0_i32, %c0_i32_0 : i32, i32
  }
  func.func @transform_2(%arg0: i32) -> (i32, i32) {
    %c0_i32 = arith.constant 0 : i32
    %c0_i32_0 = arith.constant 0 : i32
    %c0_i32_1 = arith.constant 0 : i32
    return %c0_i32, %c0_i32_0 : i32, i32
  }
  func.func @transform_3(%arg0: i32) -> (i32, i32, i32, i32) {
    %c0_i32 = arith.constant 0 : i32
    %c0_i32_0 = arith.constant 0 : i32
    %c0_i32_1 = arith.constant 0 : i32
    %c0_i32_2 = arith.constant 0 : i32
    return %arg0, %c0_i32, %c0_i32_0, %c0_i32_1 : i32, i32, i32, i32
  }
}

</mosaic_0001>

<llo_original>
// kernel: tpu_custom_call.1
$region0: #{tpu_custom_call.1}
  #allocation0 [shape = 'u32[]', space=smem, size = 0x4, offset = 0x4, fixed_abs, tag = 'smem constant byte address 0x4 - core index']
  #allocation1 [shape = 'u32[144,128]{1,0:T(1,128)}', space=vmem, size = 0x12000, scoped, tag = 'internal scratch']
  #allocation2 [shape = 'bf16[10,40,8]{2,1,0:T(8,128)(2,1)}', space=vmem, size = 0x19000, scoped, tag = 'scratch operand']
  %s0 = inlined_call_operand.hbm [shape: f32[1,8,8,8], index: 0, kind: input, shape index: {}]
  %s1 = inlined_call_operand.vmem [shape: bf16[72,8], index: 1, kind: input, shape index: {}]
  %s2 = inlined_call_operand.vmem [shape: f32[1,8], index: 2, kind: input, shape index: {}]
  %s3 = inlined_call_operand.hbm [shape: f32[1,8,8,8], index: 3, kind: output, shape index: {}]
  %s4 = sld [smem:[#allocation0]]
  $region26: #{tpu_custom_call.1} parent=0
    _
  %s6 = ssub.s32 1, %s4
  %s7 = scalar_select 0, %s6, %s4
  $region1: #{tpu_custom_call.1} parent=0
    #allocation3 [shape = 'u8[32768]{0}', space=vmem, size = 0x8000, scoped, tag = 'input window, operand 0, single buffered']
    #allocation4 [shape = 's32[1]{0}', space=sflag, size = 0x4, scoped, tag = 'scoped memory for tpu_custom_call.1']
    #allocation5 [shape = 's32[1]{0}', space=sflag, size = 0x4, scoped, tag = 'scoped memory for tpu_custom_call.1']
    #allocation6 [shape = 'u8[32768]{0}', space=vmem, size = 0x8000, scoped, tag = 'output window, operand 0, single buffered']
    %8 = vsyncpa [#allocation4], 0
    %9 = vsyncpa [#allocation5], 0
    // Predicated region
    $region2: #{tpu_custom_call.1} parent=1 // pred_check
      _
    $region3: #{tpu_custom_call.1} parent=1 // pred_check_branch
      %11 = sbr.rel (0) target = $region5
    $region4: #{tpu_custom_call.1} parent=1 // pred_region
      %s13 = ssub.s32 1024, 1024
      %14 = vsyncadd [#allocation4], %s13
      %s15 = sshll.u32 [#allocation3], 4
      %s16 = int_to_ptr.vmem [resolvable:$true] %s15
      %21 = dma.hbm_to_vmem [thread:$0]  %s0, 1024, %s16, [#allocation4], 128, 128, 8
    $region5: #{tpu_custom_call.1} parent=1 // pred_fallthru
      _
    // Predicated region
    $region6: #{tpu_custom_call.1} parent=1 // pred_check
      _
    $region7: #{tpu_custom_call.1} parent=1 // pred_check_branch
      %23 = sbr.rel (0) target = $region9
    $region8: #{tpu_custom_call.1} parent=1 // pred_region
      _
    $region9: #{tpu_custom_call.1} parent=1 // pred_fallthru
      _
    // Predicated region
    $region10: #{tpu_custom_call.1} parent=1 // pred_check
      _
    $region11: #{tpu_custom_call.1} parent=1 // pred_check_branch
      %25 = sbr.rel (0) target = $region13
    $region12: #{tpu_custom_call.1} parent=1 // pred_region
      _
    $region13: #{tpu_custom_call.1} parent=1 // pred_fallthru
      _
    // Predicated region
    $region14: #{tpu_custom_call.1} parent=1 // pred_check
      _
    $region15: #{tpu_custom_call.1} parent=1 // pred_check_branch
      %27 = sbr.rel (0) target = $region17
    $region16: #{tpu_custom_call.1} parent=1 // pred_region
      %28 = dma.done [#allocation4], 1024
    $region17: #{tpu_custom_call.1} parent=1 // pred_fallthru
      _
    %vm30 = vcmask 60416
    %31 = vst.msk [vmem:[#allocation2] sm:$0xf] %vm30, 0
    %32 = vst.msk [vmem:[#allocation2 + $0x4] sm:$0xf] %vm30, 0
    %33 = vst.msk [vmem:[#allocation2 + $0x8] sm:$0xf] %vm30, 0
    %34 = vst.msk [vmem:[#allocation2 + $0xc] sm:$0xf] %vm30, 0
    %35 = vst.msk [vmem:[#allocation2 + $0x10] sm:$0xf] %vm30, 0
    %s36 = scalar_lea.vmem [#allocation2], 180
    %37 = vst.msk [vmem:[%s36] sm:$0xf] %vm30, 0
    %38 = vst.msk [vmem:[%s36 + $0x4] sm:$0xf] %vm30, 0
    %39 = vst.msk [vmem:[%s36 + $0x8] sm:$0xf] %vm30, 0
    %40 = vst.msk [vmem:[%s36 + $0xc] sm:$0xf] %vm30, 0
    %41 = vst.msk [vmem:[%s36 + $0x10] sm:$0xf] %vm30, 0
    %42 = vst.msk [vmem:[#allocation2] sm:$0xf] %vm30, 0
    %43 = vst.msk [vmem:[#allocation2 + $0x4] sm:$0xf] %vm30, 0
    %44 = vst.msk [vmem:[#allocation2 + $0x14] sm:$0xf] %vm30, 0
    %45 = vst.msk [vmem:[#allocation2 + $0x18] sm:$0xf] %vm30, 0
    %46 = vst.msk [vmem:[#allocation2 + $0x28] sm:$0xf] %vm30, 0
    %47 = vst.msk [vmem:[#allocation2 + $0x2c] sm:$0xf] %vm30, 0
    %48 = vst.msk [vmem:[#allocation2 + $0x3c] sm:$0xf] %vm30, 0
    %49 = vst.msk [vmem:[#allocation2 + $0x40] sm:$0xf] %vm30, 0
    %50 = vst.msk [vmem:[#allocation2 + $0x50] sm:$0xf] %vm30, 0
    %51 = vst.msk [vmem:[#allocation2 + $0x54] sm:$0xf] %vm30, 0
    %52 = vst.msk [vmem:[#allocation2 + $0x64] sm:$0xf] %vm30, 0
    %53 = vst.msk [vmem:[#allocation2 + $0x68] sm:$0xf] %vm30, 0
    %54 = vst.msk [vmem:[#allocation2 + $0x78] sm:$0xf] %vm30, 0
    %55 = vst.msk [vmem:[#allocation2 + $0x7c] sm:$0xf] %vm30, 0
    %56 = vst.msk [vmem:[#allocation2 + $0x8c] sm:$0xf] %vm30, 0
    %57 = vst.msk [vmem:[#allocation2 + $0x90] sm:$0xf] %vm30, 0
    %58 = vst.msk [vmem:[#allocation2 + $0xa0] sm:$0xf] %vm30, 0
    %59 = vst.msk [vmem:[#allocation2 + $0xa4] sm:$0xf] %vm30, 0
    %60 = vst.msk [vmem:[#allocation2 + $0xb4] sm:$0xf] %vm30, 0
    %61 = vst.msk [vmem:[#allocation2 + $0xb8] sm:$0xf] %vm30, 0
    %62 = vst.msk [vmem:[#allocation2 + $0xc] sm:$0xf] %vm30, 0
    %63 = vst.msk [vmem:[#allocation2 + $0x10] sm:$0xf] %vm30, 0
    %64 = vst.msk [vmem:[#allocation2 + $0x20] sm:$0xf] %vm30, 0
    %65 = vst.msk [vmem:[#allocation2 + $0x24] sm:$0xf] %vm30, 0
    %66 = vst.msk [vmem:[#allocation2 + $0x34] sm:$0xf] %vm30, 0
    %67 = vst.msk [vmem:[#allocation2 + $0x38] sm:$0xf] %vm30, 0
    %68 = vst.msk [vmem:[#allocation2 + $0x48] sm:$0xf] %vm30, 0
    %69 = vst.msk [vmem:[#allocation2 + $0x4c] sm:$0xf] %vm30, 0
    %70 = vst.msk [vmem:[#allocation2 + $0x5c] sm:$0xf] %vm30, 0
    %71 = vst.msk [vmem:[#allocation2 + $0x60] sm:$0xf] %vm30, 0
    %72 = vst.msk [vmem:[#allocation2 + $0x70] sm:$0xf] %vm30, 0
    %73 = vst.msk [vmem:[#allocation2 + $0x74] sm:$0xf] %vm30, 0
    %74 = vst.msk [vmem:[#allocation2 + $0x84] sm:$0xf] %vm30, 0
    %75 = vst.msk [vmem:[#allocation2 + $0x88] sm:$0xf] %vm30, 0
    %76 = vst.msk [vmem:[#allocation2 + $0x98] sm:$0xf] %vm30, 0
    %77 = vst.msk [vmem:[#allocation2 + $0x9c] sm:$0xf] %vm30, 0
    %78 = vst.msk [vmem:[#allocation2 + $0xac] sm:$0xf] %vm30, 0
    %79 = vst.msk [vmem:[#allocation2 + $0xb0] sm:$0xf] %vm30, 0
    %80 = vst.msk [vmem:[#allocation2 + $0xc0] sm:$0xf] %vm30, 0
    %81 = vst.msk [vmem:[#allocation2 + $0xc4] sm:$0xf] %vm30, 0
    %v82 = vld [vmem:[#allocation3] sm:$0xff]
    %v83 = vld [vmem:[#allocation3 + $0x8] sm:$0xff]
    %v84 = vld [vmem:[#allocation3 + $0x10] sm:$0xff]
    %v85 = vld [vmem:[#allocation3 + $0x18] sm:$0xff]
    %v86 = vld [vmem:[#allocation3 + $0x20] sm:$0xff]
    %v87 = vld [vmem:[#allocation3 + $0x28] sm:$0xff]
    %v88 = vld [vmem:[#allocation3 + $0x30] sm:$0xff]
    %v89 = vld [vmem:[#allocation3 + $0x38] sm:$0xff]
    %v90 = vpack.c.bf16 %v82, %v82
    %v91 = vpack.c.bf16 %v83, %v83
    %v92 = vpack.c.bf16 %v84, %v84
    %v93 = vpack.c.bf16 %v85, %v85
    %v94 = vpack.c.bf16 %v86, %v86
    %v95 = vpack.c.bf16 %v87, %v87
    %v96 = vpack.c.bf16 %v88, %v88
    %v97 = vpack.c.bf16 %v89, %v89
    %s98 = scalar_lea.vmem [#allocation2], 20
    %99 = vst.msk [vmem:[%s98 + $0x8] sm:$0xf] %vm30, %v90
    %100 = vst.msk [vmem:[%s98 + $0x1c] sm:$0xf] %vm30, %v91
    %101 = vst.msk [vmem:[%s98 + $0x30] sm:$0xf] %vm30, %v92
    %102 = vst.msk [vmem:[%s98 + $0x44] sm:$0xf] %vm30, %v93
    %103 = vst.msk [vmem:[%s98 + $0x58] sm:$0xf] %vm30, %v94
    %104 = vst.msk [vmem:[%s98 + $0x6c] sm:$0xf] %vm30, %v95
    %105 = vst.msk [vmem:[%s98 + $0x80] sm:$0xf] %vm30, %v96
    %106 = vst.msk [vmem:[%s98 + $0x94] sm:$0xf] %vm30, %v97
    %v107 = vld [vmem:[%s1] sm:$0xf]
    %v108 = vld [vmem:[%s1 + $0x4] sm:$0xf]
    %v109 = vld [vmem:[%s1 + $0x8] sm:$0xf]
    %v110 = vld [vmem:[%s1 + $0xc] sm:$0xf]
    %v111 = vld [vmem:[%s1 + $0x10] sm:$0xf]
    %v112 = vld [vmem:[%s1 + $0x14] sm:$0xf]
    %v113 = vld [vmem:[%s1 + $0x18] sm:$0xf]
    %v114 = vld [vmem:[%s1 + $0x1c] sm:$0xf]
    %v115 = vld [vmem:[%s1 + $0x20] sm:$0xf]
    %v116 = vld [vmem:[%s2] sm:$0x1]
    %v117 = vld [vmem:[#allocation2 + $0x4] sm:$0x8]
    %v118 = vld [vmem:[#allocation2 + $0x8] sm:$0xf]
    %v119 = vld [vmem:[#allocation2 + $0x18] sm:$0x8]
    %v120 = vld [vmem:[#allocation2 + $0x1c] sm:$0xf]
    %v121 = vld [vmem:[#allocation2 + $0x2c] sm:$0x8]
    %v122 = vld [vmem:[#allocation2 + $0x30] sm:$0xf]
    %v123 = vld [vmem:[#allocation2 + $0x40] sm:$0x8]
    %v124 = vld [vmem:[#allocation2 + $0x44] sm:$0xf]
    %v125 = vld [vmem:[#allocation2 + $0x54] sm:$0x8]
    %v126 = vld [vmem:[#allocation2 + $0x58] sm:$0xf]
    %v127 = vld [vmem:[#allocation2 + $0x68] sm:$0x8]
    %v128 = vld [vmem:[#allocation2 + $0x6c] sm:$0xf]
    %v129 = vld [vmem:[#allocation2 + $0x7c] sm:$0x8]
    %v130 = vld [vmem:[#allocation2 + $0x80] sm:$0xf]
    %v131 = vld [vmem:[#allocation2 + $0x90] sm:$0x8]
    %v132 = vld [vmem:[#allocation2 + $0x94] sm:$0xf]
    %vm133 = vsmask.f32 256
    %vm134 = vsmask.f32 4368
    %vm135 = vmor %vm133, %vm134
    %v137 = vshrl.u32 %v117, 16
    %v139 = vrot.slane %v137, 7
    %v140 = vrot.slane %v139, 4
    %v142 = vshrl.u32 %v118, 16
    %v144 = vrot.slane %v142, 7
    %v145 = vshll.u32 %v118, 16
    %v147 = vor.u32 %v144, %v145
    %v148 = vsel %vm135, %v140, %v147
    %v150 = vshrl.u32 %v119, 16
    %v152 = vrot.slane %v150, 7
    %v153 = vrot.slane %v152, 4
    %v155 = vshrl.u32 %v120, 16
    %v157 = vrot.slane %v155, 7
    %v158 = vshll.u32 %v120, 16
    %v160 = vor.u32 %v157, %v158
    %v161 = vsel %vm135, %v153, %v160
    %v163 = vshrl.u32 %v121, 16
    %v165 = vrot.slane %v163, 7
    %v166 = vrot.slane %v165, 4
    %v168 = vshrl.u32 %v122, 16
    %v170 = vrot.slane %v168, 7
    %v171 = vshll.u32 %v122, 16
    %v173 = vor.u32 %v170, %v171
    %v174 = vsel %vm135, %v166, %v173
    %v176 = vshrl.u32 %v123, 16
    %v178 = vrot.slane %v176, 7
    %v179 = vrot.slane %v178, 4
    %v181 = vshrl.u32 %v124, 16
    %v183 = vrot.slane %v181, 7
    %v184 = vshll.u32 %v124, 16
    %v186 = vor.u32 %v183, %v184
    %v187 = vsel %vm135, %v179, %v186
    %v189 = vshrl.u32 %v125, 16
    %v191 = vrot.slane %v189, 7
    %v192 = vrot.slane %v191, 4
    %v194 = vshrl.u32 %v126, 16
    %v196 = vrot.slane %v194, 7
    %v197 = vshll.u32 %v126, 16
    %v199 = vor.u32 %v196, %v197
    %v200 = vsel %vm135, %v192, %v199
    %v202 = vshrl.u32 %v127, 16
    %v204 = vrot.slane %v202, 7
    %v205 = vrot.slane %v204, 4
    %v207 = vshrl.u32 %v128, 16
    %v209 = vrot.slane %v207, 7
    %v210 = vshll.u32 %v128, 16
    %v212 = vor.u32 %v209, %v210
    %v213 = vsel %vm135, %v205, %v212
    %v215 = vshrl.u32 %v129, 16
    %v217 = vrot.slane %v215, 7
    %v218 = vrot.slane %v217, 4
    %v220 = vshrl.u32 %v130, 16
    %v222 = vrot.slane %v220, 7
    %v223 = vshll.u32 %v130, 16
    %v225 = vor.u32 %v222, %v223
    %v226 = vsel %vm135, %v218, %v225
    %v228 = vshrl.u32 %v131, 16
    %v230 = vrot.slane %v228, 7
    %v231 = vrot.slane %v230, 4
    %v233 = vshrl.u32 %v132, 16
    %v235 = vrot.slane %v233, 7
    %v236 = vshll.u32 %v132, 16
    %v238 = vor.u32 %v235, %v236
    %v239 = vsel %vm135, %v231, %v238
    %v240 = vld [vmem:[#allocation2 + $0xc] sm:$0x1]
    %v241 = vld [vmem:[#allocation2 + $0x20] sm:$0x1]
    %v242 = vld [vmem:[#allocation2 + $0x34] sm:$0x1]
    %v243 = vld [vmem:[#allocation2 + $0x48] sm:$0x1]
    %v244 = vld [vmem:[#allocation2 + $0x5c] sm:$0x1]
    %v245 = vld [vmem:[#allocation2 + $0x70] sm:$0x1]
    %v246 = vld [vmem:[#allocation2 + $0x84] sm:$0x1]
    %v247 = vld [vmem:[#allocation2 + $0x98] sm:$0x1]
    %vm248 = vsmask.f32 3328
    %vm249 = vsmask.f32 7440
    %vm250 = vmor %vm248, %vm249
    %v251 = vrot.slane %v142, 4
    %v252 = vrot.slane %v145, 5
    %v253 = vor.u32 %v251, %v252
    %v254 = vrot.slane %v253, 4
    %v256 = vshll.u32 %v240, 16
    %v258 = vrot.slane %v256, 5
    %v259 = vsel %vm250, %v254, %v258
    %v260 = vrot.slane %v155, 4
    %v261 = vrot.slane %v158, 5
    %v262 = vor.u32 %v260, %v261
    %v263 = vrot.slane %v262, 4
    %v265 = vshll.u32 %v241, 16
    %v267 = vrot.slane %v265, 5
    %v268 = vsel %vm250, %v263, %v267
    %v269 = vrot.slane %v168, 4
    %v270 = vrot.slane %v171, 5
    %v271 = vor.u32 %v269, %v270
    %v272 = vrot.slane %v271, 4
    %v274 = vshll.u32 %v242, 16
    %v276 = vrot.slane %v274, 5
    %v277 = vsel %vm250, %v272, %v276
    %v278 = vrot.slane %v181, 4
    %v279 = vrot.slane %v184, 5
    %v280 = vor.u32 %v278, %v279
    %v281 = vrot.slane %v280, 4
    %v283 = vshll.u32 %v243, 16
    %v285 = vrot.slane %v283, 5
    %v286 = vsel %vm250, %v281, %v285
    %v287 = vrot.slane %v194, 4
    %v288 = vrot.slane %v197, 5
    %v289 = vor.u32 %v287, %v288
    %v290 = vrot.slane %v289, 4
    %v292 = vshll.u32 %v244, 16
    %v294 = vrot.slane %v292, 5
    %v295 = vsel %vm250, %v290, %v294
    %v296 = vrot.slane %v207, 4
    %v297 = vrot.slane %v210, 5
    %v298 = vor.u32 %v296, %v297
    %v299 = vrot.slane %v298, 4
    %v301 = vshll.u32 %v245, 16
    %v303 = vrot.slane %v301, 5
    %v304 = vsel %vm250, %v299, %v303
    %v305 = vrot.slane %v220, 4
    %v306 = vrot.slane %v223, 5
    %v307 = vor.u32 %v305, %v306
    %v308 = vrot.slane %v307, 4
    %v310 = vshll.u32 %v246, 16
    %v312 = vrot.slane %v310, 5
    %v313 = vsel %vm250, %v308, %v312
    %v314 = vrot.slane %v233, 4
    %v315 = vrot.slane %v236, 5
    %v316 = vor.u32 %v314, %v315
    %v317 = vrot.slane %v316, 4
    %v319 = vshll.u32 %v247, 16
    %v321 = vrot.slane %v319, 5
    %v322 = vsel %vm250, %v317, %v321
    %v323 = vld [vmem:[%s98 + $0x4] sm:$0x8]
    %v324 = vld [vmem:[%s98 + $0x8] sm:$0xf]
    %v325 = vld [vmem:[%s98 + $0x18] sm:$0x8]
    %v326 = vld [vmem:[%s98 + $0x1c] sm:$0xf]
    %v327 = vld [vmem:[%s98 + $0x2c] sm:$0x8]
    %v328 = vld [vmem:[%s98 + $0x30] sm:$0xf]
    %v329 = vld [vmem:[%s98 + $0x40] sm:$0x8]
    %v330 = vld [vmem:[%s98 + $0x44] sm:$0xf]
    %v331 = vld [vmem:[%s98 + $0x54] sm:$0x8]
    %v332 = vld [vmem:[%s98 + $0x58] sm:$0xf]
    %v333 = vld [vmem:[%s98 + $0x68] sm:$0x8]
    %v334 = vld [vmem:[%s98 + $0x6c] sm:$0xf]
    %v335 = vld [vmem:[%s98 + $0x7c] sm:$0x8]
    %v336 = vld [vmem:[%s98 + $0x80] sm:$0xf]
    %v337 = vld [vmem:[%s98 + $0x90] sm:$0x8]
    %v338 = vld [vmem:[%s98 + $0x94] sm:$0xf]
    %v340 = vshrl.u32 %v323, 16
    %v342 = vrot.slane %v340, 7
    %v343 = vrot.slane %v342, 4
    %v345 = vshrl.u32 %v324, 16
    %v347 = vrot.slane %v345, 7
    %v348 = vshll.u32 %v324, 16
    %v350 = vor.u32 %v347, %v348
    %v351 = vsel %vm135, %v343, %v350
    %v353 = vshrl.u32 %v325, 16
    %v355 = vrot.slane %v353, 7
    %v356 = vrot.slane %v355, 4
    %v358 = vshrl.u32 %v326, 16
    %v360 = vrot.slane %v358, 7
    %v361 = vshll.u32 %v326, 16
    %v363 = vor.u32 %v360, %v361
    %v364 = vsel %vm135, %v356, %v363
    %v366 = vshrl.u32 %v327, 16
    %v368 = vrot.slane %v366, 7
    %v369 = vrot.slane %v368, 4
    %v371 = vshrl.u32 %v328, 16
    %v373 = vrot.slane %v371, 7
    %v374 = vshll.u32 %v328, 16
    %v376 = vor.u32 %v373, %v374
    %v377 = vsel %vm135, %v369, %v376
    %v379 = vshrl.u32 %v329, 16
    %v381 = vrot.slane %v379, 7
    %v382 = vrot.slane %v381, 4
    %v384 = vshrl.u32 %v330, 16
    %v386 = vrot.slane %v384, 7
    %v387 = vshll.u32 %v330, 16
    %v389 = vor.u32 %v386, %v387
    %v390 = vsel %vm135, %v382, %v389
    %v392 = vshrl.u32 %v331, 16
    %v394 = vrot.slane %v392, 7
    %v395 = vrot.slane %v394, 4
    %v397 = vshrl.u32 %v332, 16
    %v399 = vrot.slane %v397, 7
    %v400 = vshll.u32 %v332, 16
    %v402 = vor.u32 %v399, %v400
    %v403 = vsel %vm135, %v395, %v402
    %v405 = vshrl.u32 %v333, 16
    %v407 = vrot.slane %v405, 7
    %v408 = vrot.slane %v407, 4
    %v410 = vshrl.u32 %v334, 16
    %v412 = vrot.slane %v410, 7
    %v413 = vshll.u32 %v334, 16
    %v415 = vor.u32 %v412, %v413
    %v416 = vsel %vm135, %v408, %v415
    %v418 = vshrl.u32 %v335, 16
    %v420 = vrot.slane %v418, 7
    %v421 = vrot.slane %v420, 4
    %v423 = vshrl.u32 %v336, 16
    %v425 = vrot.slane %v423, 7
    %v426 = vshll.u32 %v336, 16
    %v428 = vor.u32 %v425, %v426
    %v429 = vsel %vm135, %v421, %v428
    %v431 = vshrl.u32 %v337, 16
    %v433 = vrot.slane %v431, 7
    %v434 = vrot.slane %v433, 4
    %v436 = vshrl.u32 %v338, 16
    %v438 = vrot.slane %v436, 7
    %v439 = vshll.u32 %v338, 16
    %v441 = vor.u32 %v438, %v439
    %v442 = vsel %vm135, %v434, %v441
    %v443 = vld [vmem:[%s98 + $0xc] sm:$0x1]
    %v444 = vld [vmem:[%s98 + $0x20] sm:$0x1]
    %v445 = vld [vmem:[%s98 + $0x34] sm:$0x1]
    %v446 = vld [vmem:[%s98 + $0x48] sm:$0x1]
    %v447 = vld [vmem:[%s98 + $0x5c] sm:$0x1]
    %v448 = vld [vmem:[%s98 + $0x70] sm:$0x1]
    %v449 = vld [vmem:[%s98 + $0x84] sm:$0x1]
    %v450 = vld [vmem:[%s98 + $0x98] sm:$0x1]
    %v451 = vrot.slane %v345, 4
    %v452 = vrot.slane %v348, 5
    %v453 = vor.u32 %v451, %v452
    %v454 = vrot.slane %v453, 4
    %v456 = vshll.u32 %v443, 16
    %v458 = vrot.slane %v456, 5
    %v459 = vsel %vm250, %v454, %v458
    %v460 = vrot.slane %v358, 4
    %v461 = vrot.slane %v361, 5
    %v462 = vor.u32 %v460, %v461
    %v463 = vrot.slane %v462, 4
    %v465 = vshll.u32 %v444, 16
    %v467 = vrot.slane %v465, 5
    %v468 = vsel %vm250, %v463, %v467
    %v469 = vrot.slane %v371, 4
    %v470 = vrot.slane %v374, 5
    %v471 = vor.u32 %v469, %v470
    %v472 = vrot.slane %v471, 4
    %v474 = vshll.u32 %v445, 16
    %v476 = vrot.slane %v474, 5
    %v477 = vsel %vm250, %v472, %v476
    %v478 = vrot.slane %v384, 4
    %v479 = vrot.slane %v387, 5
    %v480 = vor.u32 %v478, %v479
    %v481 = vrot.slane %v480, 4
    %v483 = vshll.u32 %v446, 16
    %v485 = vrot.slane %v483, 5
    %v486 = vsel %vm250, %v481, %v485
    %v487 = vrot.slane %v397, 4
    %v488 = vrot.slane %v400, 5
    %v489 = vor.u32 %v487, %v488
    %v490 = vrot.slane %v489, 4
    %v492 = vshll.u32 %v447, 16
    %v494 = vrot.slane %v492, 5
    %v495 = vsel %vm250, %v490, %v494
    %v496 = vrot.slane %v410, 4
    %v497 = vrot.slane %v413, 5
    %v498 = vor.u32 %v496, %v497
    %v499 = vrot.slane %v498, 4
    %v501 = vshll.u32 %v448, 16
    %v503 = vrot.slane %v501, 5
    %v504 = vsel %vm250, %v499, %v503
    %v505 = vrot.slane %v423, 4
    %v506 = vrot.slane %v426, 5
    %v507 = vor.u32 %v505, %v506
    %v508 = vrot.slane %v507, 4
    %v510 = vshll.u32 %v449, 16
    %v512 = vrot.slane %v510, 5
    %v513 = vsel %vm250, %v508, %v512
    %v514 = vrot.slane %v436, 4
    %v515 = vrot.slane %v439, 5
    %v516 = vor.u32 %v514, %v515
    %v517 = vrot.slane %v516, 4
    %v519 = vshll.u32 %v450, 16
    %v521 = vrot.slane %v519, 5
    %v522 = vsel %vm250, %v517, %v521
    %s523 = scalar_lea.vmem [#allocation2], 40
    %v524 = vld [vmem:[%s523 + $0x4] sm:$0x8]
    %v525 = vld [vmem:[%s523 + $0x8] sm:$0xf]
    %v526 = vld [vmem:[%s523 + $0x18] sm:$0x8]
    %v527 = vld [vmem:[%s523 + $0x1c] sm:$0xf]
    %v528 = vld [vmem:[%s523 + $0x2c] sm:$0x8]
    %v529 = vld [vmem:[%s523 + $0x30] sm:$0xf]
    %v530 = vld [vmem:[%s523 + $0x40] sm:$0x8]
    %v531 = vld [vmem:[%s523 + $0x44] sm:$0xf]
    %v532 = vld [vmem:[%s523 + $0x54] sm:$0x8]
    %v533 = vld [vmem:[%s523 + $0x58] sm:$0xf]
    %v534 = vld [vmem:[%s523 + $0x68] sm:$0x8]
    %v535 = vld [vmem:[%s523 + $0x6c] sm:$0xf]
    %v536 = vld [vmem:[%s523 + $0x7c] sm:$0x8]
    %v537 = vld [vmem:[%s523 + $0x80] sm:$0xf]
    %v538 = vld [vmem:[%s523 + $0x90] sm:$0x8]
    %v539 = vld [vmem:[%s523 + $0x94] sm:$0xf]
    %v541 = vshrl.u32 %v524, 16
    %v543 = vrot.slane %v541, 7
    %v544 = vrot.slane %v543, 4
    %v546 = vshrl.u32 %v525, 16
    %v548 = vrot.slane %v546, 7
    %v549 = vshll.u32 %v525, 16
    %v551 = vor.u32 %v548, %v549
    %v552 = vsel %vm135, %v544, %v551
    %v554 = vshrl.u32 %v526, 16
    %v556 = vrot.slane %v554, 7
    %v557 = vrot.slane %v556, 4
    %v559 = vshrl.u32 %v527, 16
    %v561 = vrot.slane %v559, 7
    %v562 = vshll.u32 %v527, 16
    %v564 = vor.u32 %v561, %v562
    %v565 = vsel %vm135, %v557, %v564
    %v567 = vshrl.u32 %v528, 16
    %v569 = vrot.slane %v567, 7
    %v570 = vrot.slane %v569, 4
    %v572 = vshrl.u32 %v529, 16
    %v574 = vrot.slane %v572, 7
    %v575 = vshll.u32 %v529, 16
    %v577 = vor.u32 %v574, %v575
    %v578 = vsel %vm135, %v570, %v577
    %v580 = vshrl.u32 %v530, 16
    %v582 = vrot.slane %v580, 7
    %v583 = vrot.slane %v582, 4
    %v585 = vshrl.u32 %v531, 16
    %v587 = vrot.slane %v585, 7
    %v588 = vshll.u32 %v531, 16
    %v590 = vor.u32 %v587, %v588
    %v591 = vsel %vm135, %v583, %v590
    %v593 = vshrl.u32 %v532, 16
    %v595 = vrot.slane %v593, 7
    %v596 = vrot.slane %v595, 4
    %v598 = vshrl.u32 %v533, 16
    %v600 = vrot.slane %v598, 7
    %v601 = vshll.u32 %v533, 16
    %v603 = vor.u32 %v600, %v601
    %v604 = vsel %vm135, %v596, %v603
    %v606 = vshrl.u32 %v534, 16
    %v608 = vrot.slane %v606, 7
    %v609 = vrot.slane %v608, 4
    %v611 = vshrl.u32 %v535, 16
    %v613 = vrot.slane %v611, 7
    %v614 = vshll.u32 %v535, 16
    %v616 = vor.u32 %v613, %v614
    %v617 = vsel %vm135, %v609, %v616
    %v619 = vshrl.u32 %v536, 16
    %v621 = vrot.slane %v619, 7
    %v622 = vrot.slane %v621, 4
    %v624 = vshrl.u32 %v537, 16
    %v626 = vrot.slane %v624, 7
    %v627 = vshll.u32 %v537, 16
    %v629 = vor.u32 %v626, %v627
    %v630 = vsel %vm135, %v622, %v629
    %v632 = vshrl.u32 %v538, 16
    %v634 = vrot.slane %v632, 7
    %v635 = vrot.slane %v634, 4
    %v637 = vshrl.u32 %v539, 16
    %v639 = vrot.slane %v637, 7
    %v640 = vshll.u32 %v539, 16
    %v642 = vor.u32 %v639, %v640
    %v643 = vsel %vm135, %v635, %v642
    %v644 = vld [vmem:[%s523 + $0xc] sm:$0x1]
    %v645 = vld [vmem:[%s523 + $0x20] sm:$0x1]
    %v646 = vld [vmem:[%s523 + $0x34] sm:$0x1]
    %v647 = vld [vmem:[%s523 + $0x48] sm:$0x1]
    %v648 = vld [vmem:[%s523 + $0x5c] sm:$0x1]
    %v649 = vld [vmem:[%s523 + $0x70] sm:$0x1]
    %v650 = vld [vmem:[%s523 + $0x84] sm:$0x1]
    %v651 = vld [vmem:[%s523 + $0x98] sm:$0x1]
    %v652 = vrot.slane %v546, 4
    %v653 = vrot.slane %v549, 5
    %v654 = vor.u32 %v652, %v653
    %v655 = vrot.slane %v654, 4
    %v657 = vshll.u32 %v644, 16
    %v659 = vrot.slane %v657, 5
    %v660 = vsel %vm250, %v655, %v659
    %v661 = vrot.slane %v559, 4
    %v662 = vrot.slane %v562, 5
    %v663 = vor.u32 %v661, %v662
    %v664 = vrot.slane %v663, 4
    %v666 = vshll.u32 %v645, 16
    %v668 = vrot.slane %v666, 5
    %v669 = vsel %vm250, %v664, %v668
    %v670 = vrot.slane %v572, 4
    %v671 = vrot.slane %v575, 5
    %v672 = vor.u32 %v670, %v671
    %v673 = vrot.slane %v672, 4
    %v675 = vshll.u32 %v646, 16
    %v677 = vrot.slane %v675, 5
    %v678 = vsel %vm250, %v673, %v677
    %v679 = vrot.slane %v585, 4
    %v680 = vrot.slane %v588, 5
    %v681 = vor.u32 %v679, %v680
    %v682 = vrot.slane %v681, 4
    %v684 = vshll.u32 %v647, 16
    %v686 = vrot.slane %v684, 5
    %v687 = vsel %vm250, %v682, %v686
    %v688 = vrot.slane %v598, 4
    %v689 = vrot.slane %v601, 5
    %v690 = vor.u32 %v688, %v689
    %v691 = vrot.slane %v690, 4
    %v693 = vshll.u32 %v648, 16
    %v695 = vrot.slane %v693, 5
    %v696 = vsel %vm250, %v691, %v695
    %v697 = vrot.slane %v611, 4
    %v698 = vrot.slane %v614, 5
    %v699 = vor.u32 %v697, %v698
    %v700 = vrot.slane %v699, 4
    %v702 = vshll.u32 %v649, 16
    %v704 = vrot.slane %v702, 5
    %v705 = vsel %vm250, %v700, %v704
    %v706 = vrot.slane %v624, 4
    %v707 = vrot.slane %v627, 5
    %v708 = vor.u32 %v706, %v707
    %v709 = vrot.slane %v708, 4
    %v711 = vshll.u32 %v650, 16
    %v713 = vrot.slane %v711, 5
    %v714 = vsel %vm250, %v709, %v713
    %v715 = vrot.slane %v637, 4
    %v716 = vrot.slane %v640, 5
    %v717 = vor.u32 %v715, %v716
    %v718 = vrot.slane %v717, 4
    %v720 = vshll.u32 %v651, 16
    %v722 = vrot.slane %v720, 5
    %v723 = vsel %vm250, %v718, %v722
    %v724 = vunpack.c.l.b16 %v148
    %v725 = vunpack.c.l.b16 %v161
    %v726 = vunpack.c.l.b16 %v174
    %v727 = vunpack.c.l.b16 %v187
    %v728 = vunpack.c.l.b16 %v200
    %v729 = vunpack.c.l.b16 %v213
    %v730 = vunpack.c.l.b16 %v226
    %v731 = vunpack.c.l.b16 %v239
    %v732 = vpack.c.b16 %v725, %v724
    %v733 = vpack.c.b16 %v727, %v726
    %v734 = vpack.c.b16 %v729, %v728
    %v735 = vpack.c.b16 %v731, %v730
    %v744 = vunpack.c.l.b16 %v118
    %v745 = vunpack.c.l.b16 %v120
    %v746 = vunpack.c.l.b16 %v122
    %v747 = vunpack.c.l.b16 %v124
    %v748 = vunpack.c.l.b16 %v126
    %v749 = vunpack.c.l.b16 %v128
    %v750 = vunpack.c.l.b16 %v130
    %v751 = vunpack.c.l.b16 %v132
    %v752 = vpack.c.b16 %v745, %v744
    %v753 = vpack.c.b16 %v747, %v746
    %v754 = vpack.c.b16 %v749, %v748
    %v755 = vpack.c.b16 %v751, %v750
    %756 = vrot.lane.b32.xlu0 %v752, 8
    %v757 = vpop.permute.xlu0 %756
    %758 = vrot.lane.b32.xlu0 %v753, 8
    %v759 = vpop.permute.xlu0 %758
    %760 = vrot.lane.b32.xlu0 %v754, 8
    %v761 = vpop.permute.xlu0 %760
    %762 = vrot.lane.b32.xlu0 %v755, 8
    %v763 = vpop.permute.xlu0 %762
    %v764 = vunpack.c.l.b16 %v259
    %v765 = vunpack.c.l.b16 %v268
    %v766 = vunpack.c.l.b16 %v277
    %v767 = vunpack.c.l.b16 %v286
    %v768 = vunpack.c.l.b16 %v295
    %v769 = vunpack.c.l.b16 %v304
    %v770 = vunpack.c.l.b16 %v313
    %v771 = vunpack.c.l.b16 %v322
    %v772 = vpack.c.b16 %v765, %v764
    %v773 = vpack.c.b16 %v767, %v766
    %v774 = vpack.c.b16 %v769, %v768
    %v775 = vpack.c.b16 %v771, %v770
    %776 = vrot.lane.b32.xlu0 %v772, 16
    %v777 = vpop.permute.xlu0 %776
    %778 = vrot.lane.b32.xlu0 %v773, 16
    %v779 = vpop.permute.xlu0 %778
    %780 = vrot.lane.b32.xlu0 %v774, 16
    %v781 = vpop.permute.xlu0 %780
    %782 = vrot.lane.b32.xlu0 %v775, 16
    %v783 = vpop.permute.xlu0 %782
    %v784 = vunpack.c.l.b16 %v351
    %v785 = vunpack.c.l.b16 %v364
    %v786 = vunpack.c.l.b16 %v377
    %v787 = vunpack.c.l.b16 %v390
    %v788 = vunpack.c.l.b16 %v403
    %v789 = vunpack.c.l.b16 %v416
    %v790 = vunpack.c.l.b16 %v429
    %v791 = vunpack.c.l.b16 %v442
    %v792 = vpack.c.b16 %v785, %v784
    %v793 = vpack.c.b16 %v787, %v786
    %v794 = vpack.c.b16 %v789, %v788
    %v795 = vpack.c.b16 %v791, %v790
    %796 = vrot.lane.b32.xlu0 %v792, 24
    %v797 = vpop.permute.xlu0 %796
    %798 = vrot.lane.b32.xlu0 %v793, 24
    %v799 = vpop.permute.xlu0 %798
    %800 = vrot.lane.b32.xlu0 %v794, 24
    %v801 = vpop.permute.xlu0 %800
    %802 = vrot.lane.b32.xlu0 %v795, 24
    %v803 = vpop.permute.xlu0 %802
    %v812 = vunpack.c.l.b16 %v324
    %v813 = vunpack.c.l.b16 %v326
    %v814 = vunpack.c.l.b16 %v328
    %v815 = vunpack.c.l.b16 %v330
    %v816 = vunpack.c.l.b16 %v332
    %v817 = vunpack.c.l.b16 %v334
    %v818 = vunpack.c.l.b16 %v336
    %v819 = vunpack.c.l.b16 %v338
    %v820 = vpack.c.b16 %v813, %v812
    %v821 = vpack.c.b16 %v815, %v814
    %v822 = vpack.c.b16 %v817, %v816
    %v823 = vpack.c.b16 %v819, %v818
    %824 = vrot.lane.b32.xlu0 %v820, 32
    %v825 = vpop.permute.xlu0 %824
    %826 = vrot.lane.b32.xlu0 %v821, 32
    %v827 = vpop.permute.xlu0 %826
    %828 = vrot.lane.b32.xlu0 %v822, 32
    %v829 = vpop.permute.xlu0 %828
    %830 = vrot.lane.b32.xlu0 %v823, 32
    %v831 = vpop.permute.xlu0 %830
    %v832 = vunpack.c.l.b16 %v459
    %v833 = vunpack.c.l.b16 %v468
    %v834 = vunpack.c.l.b16 %v477
    %v835 = vunpack.c.l.b16 %v486
    %v836 = vunpack.c.l.b16 %v495
    %v837 = vunpack.c.l.b16 %v504
    %v838 = vunpack.c.l.b16 %v513
    %v839 = vunpack.c.l.b16 %v522
    %v840 = vpack.c.b16 %v833, %v832
    %v841 = vpack.c.b16 %v835, %v834
    %v842 = vpack.c.b16 %v837, %v836
    %v843 = vpack.c.b16 %v839, %v838
    %844 = vrot.lane.b32.xlu0 %v840, 40
    %v845 = vpop.permute.xlu0 %844
    %846 = vrot.lane.b32.xlu0 %v841, 40
    %v847 = vpop.permute.xlu0 %846
    %848 = vrot.lane.b32.xlu0 %v842, 40
    %v849 = vpop.permute.xlu0 %848
    %850 = vrot.lane.b32.xlu0 %v843, 40
    %v851 = vpop.permute.xlu0 %850
    %v852 = vunpack.c.l.b16 %v552
    %v853 = vunpack.c.l.b16 %v565
    %v854 = vunpack.c.l.b16 %v578
    %v855 = vunpack.c.l.b16 %v591
    %v856 = vunpack.c.l.b16 %v604
    %v857 = vunpack.c.l.b16 %v617
    %v858 = vunpack.c.l.b16 %v630
    %v859 = vunpack.c.l.b16 %v643
    %v860 = vpack.c.b16 %v853, %v852
    %v861 = vpack.c.b16 %v855, %v854
    %v862 = vpack.c.b16 %v857, %v856
    %v863 = vpack.c.b16 %v859, %v858
    %864 = vrot.lane.b32.xlu0 %v860, 48
    %v865 = vpop.permute.xlu0 %864
    %866 = vrot.lane.b32.xlu0 %v861, 48
    %v867 = vpop.permute.xlu0 %866
    %868 = vrot.lane.b32.xlu0 %v862, 48
    %v869 = vpop.permute.xlu0 %868
    %870 = vrot.lane.b32.xlu0 %v863, 48
    %v871 = vpop.permute.xlu0 %870
    %v880 = vunpack.c.l.b16 %v525
    %v881 = vunpack.c.l.b16 %v527
    %v882 = vunpack.c.l.b16 %v529
    %v883 = vunpack.c.l.b16 %v531
    %v884 = vunpack.c.l.b16 %v533
    %v885 = vunpack.c.l.b16 %v535
    %v886 = vunpack.c.l.b16 %v537
    %v887 = vunpack.c.l.b16 %v539
    %v888 = vpack.c.b16 %v881, %v880
    %v889 = vpack.c.b16 %v883, %v882
    %v890 = vpack.c.b16 %v885, %v884
    %v891 = vpack.c.b16 %v887, %v886
    %892 = vrot.lane.b32.xlu0 %v888, 56
    %v893 = vpop.permute.xlu0 %892
    %894 = vrot.lane.b32.xlu0 %v889, 56
    %v895 = vpop.permute.xlu0 %894
    %896 = vrot.lane.b32.xlu0 %v890, 56
    %v897 = vpop.permute.xlu0 %896
    %898 = vrot.lane.b32.xlu0 %v891, 56
    %v899 = vpop.permute.xlu0 %898
    %v900 = vunpack.c.l.b16 %v660
    %v901 = vunpack.c.l.b16 %v669
    %v902 = vunpack.c.l.b16 %v678
    %v903 = vunpack.c.l.b16 %v687
    %v904 = vunpack.c.l.b16 %v696
    %v905 = vunpack.c.l.b16 %v705
    %v906 = vunpack.c.l.b16 %v714
    %v907 = vunpack.c.l.b16 %v723
    %v908 = vpack.c.b16 %v901, %v900
    %v909 = vpack.c.b16 %v903, %v902
    %v910 = vpack.c.b16 %v905, %v904
    %v911 = vpack.c.b16 %v907, %v906
    %912 = vrot.lane.b32.xlu0 %v908, 64
    %v913 = vpop.permute.xlu0 %912
    %914 = vrot.lane.b32.xlu0 %v909, 64
    %v915 = vpop.permute.xlu0 %914
    %916 = vrot.lane.b32.xlu0 %v910, 64
    %v917 = vpop.permute.xlu0 %916
    %918 = vrot.lane.b32.xlu0 %v911, 64
    %v919 = vpop.permute.xlu0 %918
    %vm920 = vcmask 64512
    %v923 = vsel %vm920, %v732, %v757
    %v926 = vsel %vm920, %v733, %v759
    %v929 = vsel %vm920, %v734, %v761
    %v932 = vsel %vm920, %v735, %v763
    %vm933 = vcmask 130048
    %v935 = vsel %vm933, %v923, %v777
    %v937 = vsel %vm933, %v926, %v779
    %v939 = vsel %vm933, %v929, %v781
    %v941 = vsel %vm933, %v932, %v783
    %vm942 = vcmask 195584
    %v944 = vsel %vm942, %v935, %v797
    %v946 = vsel %vm942, %v937, %v799
    %v948 = vsel %vm942, %v939, %v801
    %v950 = vsel %vm942, %v941, %v803
    %vm951 = vcmask 261120
    %v953 = vsel %vm951, %v944, %v825
    %v955 = vsel %vm951, %v946, %v827
    %v957 = vsel %vm951, %v948, %v829
    %v959 = vsel %vm951, %v950, %v831
    %vm960 = vcmask 326656
    %v962 = vsel %vm960, %v953, %v845
    %v964 = vsel %vm960, %v955, %v847
    %v966 = vsel %vm960, %v957, %v849
    %v968 = vsel %vm960, %v959, %v851
    %vm969 = vcmask 392192
    %v971 = vsel %vm969, %v962, %v865
    %v973 = vsel %vm969, %v964, %v867
    %v975 = vsel %vm969, %v966, %v869
    %v977 = vsel %vm969, %v968, %v871
    %vm978 = vcmask 457728
    %v980 = vsel %vm978, %v971, %v893
    %v982 = vsel %vm978, %v973, %v895
    %v984 = vsel %vm978, %v975, %v897
    %v986 = vsel %vm978, %v977, %v899
    %vm987 = vcmask 523264
    %v989 = vsel %vm987, %v980, %v913
    %v991 = vsel %vm987, %v982, %v915
    %v993 = vsel %vm987, %v984, %v917
    %v995 = vsel %vm987, %v986, %v919
    %v997 = vlaneseq
    %v998 = vshrl.u32 %v997, 7
    %v999 = vsub.s32 0, %v998
    %v1000 = vrot.slane %v116, %v999
    %v1011 = vunpack.c.l.b16 %v107
    %v1012 = vunpack.c.l.b16 %v108
    %v1013 = vunpack.c.l.b16 %v109
    %v1014 = vunpack.c.l.b16 %v110
    %v1015 = vunpack.c.l.b16 %v111
    %v1016 = vunpack.c.l.b16 %v112
    %v1017 = vunpack.c.l.b16 %v113
    %v1018 = vunpack.c.l.b16 %v114
    %v1019 = vunpack.c.l.b16 %v115
    %v1020 = vpack.c.b16 %v1012, %v1011
    %v1021 = vpack.c.b16 %v1014, %v1013
    %v1022 = vpack.c.b16 %v1016, %v1015
    %v1023 = vpack.c.b16 %v1018, %v1017
    %v1024 = vpack.c.b16 %v1019, %v1019
    %vm1029 = vcmask 588800
    %v1030 = vsel %vm1029, %v989, 0
    %v1032 = vsel %vm1029, %v991, 0
    %v1034 = vsel %vm1029, %v993, 0
    %v1036 = vsel %vm1029, %v995, 0
    %vm1038 = vcmask 1043456
    %v1040 = vsel %vm1038, %v1024, 0
    %1042 = vmatprep.subr.bf16.mxu0 0
    %1043 = vmatpush1.bf16.msra.mxu0 %v1020
    %1044 = vmatprep.subr.bf16.mxu0 0
    %1045 = vmatpush1.bf16.msra.mxu0 %v1021
    %1046 = vmatprep.subr.bf16.mxu0 0
    %1047 = vmatpush1.bf16.msra.mxu0 %v1022
    %1048 = vmatprep.subr.bf16.mxu0 0
    %1049 = vmatpush1.bf16.msra.mxu0 %v1023
    %1050 = vmatprep.subr.bf16.mxu0 0
    %1051 = vmatpush1.bf16.msra.mxu0 %v1040
    %1052 = vmatprep.subr.bf16.mxu0 0
    %1053 = vmatpush1.bf16.msra.mxu0 0
    %1054 = vmatprep.subr.bf16.mxu0 0
    %1055 = vmatpush1.bf16.msra.mxu0 0
    %1056 = vmatprep.subr.bf16.mxu0 0
    %1057 = vmatpush1.bf16.msra.mxu0 0
    %1058 = vmatprep.subr.bf16.mxu0 0
    %1059 = vmatpush1.bf16.msra.mxu0 0
    %1060 = vmatprep.subr.bf16.mxu0 0
    %1061 = vmatpush1.bf16.msra.mxu0 0
    %1062 = vmatprep.subr.bf16.mxu0 0
    %1063 = vmatpush1.bf16.msra.mxu0 0
    %1064 = vmatprep.subr.bf16.mxu0 0
    %1065 = vmatpush1.bf16.msra.mxu0 0
    %1066 = vmatprep.subr.bf16.mxu0 0
    %1067 = vmatpush1.bf16.msra.mxu0 0
    %1068 = vmatprep.subr.bf16.mxu0 0
    %1069 = vmatpush1.bf16.msra.mxu0 0
    %1070 = vmatprep.subr.bf16.mxu0 0
    %1071 = vmatpush1.bf16.msra.mxu0 0
    %1072 = vmatprep.subr.bf16.mxu0 0
    %1073 = vmatpush1.bf16.msra.mxu0 0
    %1074 = vmatprep.mubr.bf16.mxu0 0
    %1075 = vmatmul.mubr.bf16.gmra.mrb[0].mxu0 %v1030
    %v1076 = vpop.f32.mrb[0].mxu0
    %v1077 = vadd.f32 %v1000, %v1076
    %v1078 = vpop.f32.mrb[0].mxu0
    %v1079 = vpop.f32.mrb[0].mxu0
    %v1080 = vadd.f32 %v1000, %v1079
    %v1081 = vpop.f32.mrb[0].mxu0
    %1082 = vmatprep.mubr.bf16.mxu0 0
    %1083 = vmatmul.mubr.bf16.gmra.mrb[0].mxu0 %v1032
    %v1084 = vpop.f32.mrb[0].mxu0
    %v1085 = vadd.f32 %v1000, %v1084
    %v1086 = vpop.f32.mrb[0].mxu0
    %v1087 = vpop.f32.mrb[0].mxu0
    %v1088 = vadd.f32 %v1000, %v1087
    %v1089 = vpop.f32.mrb[0].mxu0
    %1090 = vmatprep.mubr.bf16.mxu0 0
    %1091 = vmatmul.mubr.bf16.gmra.mrb[0].mxu0 %v1034
    %v1092 = vpop.f32.mrb[0].mxu0
    %v1093 = vadd.f32 %v1000, %v1092
    %v1094 = vpop.f32.mrb[0].mxu0
    %v1095 = vpop.f32.mrb[0].mxu0
    %v1096 = vadd.f32 %v1000, %v1095
    %v1097 = vpop.f32.mrb[0].mxu0
    %1098 = vmatprep.mubr.bf16.mxu0 0
    %1099 = vmatmul.mubr.bf16.gmra.mrb[0].mxu0 %v1036
    %v1100 = vpop.f32.mrb[0].mxu0
    %v1101 = vadd.f32 %v1000, %v1100
    %v1102 = vpop.f32.mrb[0].mxu0
    %v1103 = vpop.f32.mrb[0].mxu0
    %v1104 = vadd.f32 %v1000, %v1103
    %v1105 = vpop.f32.mrb[0].mxu0
    %1106 = vdwg.mxu0
    %1107 = vst.msk [vmem:[#allocation6] sm:$0xff] %vm920, %v1077
    %1108 = vst.msk [vmem:[#allocation6 + $0x8] sm:$0xff] %vm920, %v1080
    %1109 = vst.msk [vmem:[#allocation6 + $0x10] sm:$0xff] %vm920, %v1085
    %1110 = vst.msk [vmem:[#allocation6 + $0x18] sm:$0xff] %vm920, %v1088
    %1111 = vst.msk [vmem:[#allocation6 + $0x20] sm:$0xff] %vm920, %v1093
    %1112 = vst.msk [vmem:[#allocation6 + $0x28] sm:$0xff] %vm920, %v1096
    %1113 = vst.msk [vmem:[#allocation6 + $0x30] sm:$0xff] %vm920, %v1101
    %1114 = vst.msk [vmem:[#allocation6 + $0x38] sm:$0xff] %vm920, %v1104
    // Predicated region
    $region18: #{tpu_custom_call.1} parent=1 // pred_check
      _
    $region19: #{tpu_custom_call.1} parent=1 // pred_check_branch
      %1116 = sbr.rel (0) target = $region21
    $region20: #{tpu_custom_call.1} parent=1 // pred_region
      %s1118 = ssub.s32 1024, 1024
      %1119 = vsyncadd [#allocation5], %s1118
      %s1120 = sshll.u32 [#allocation6], 4
      %s1121 = int_to_ptr.vmem [resolvable:$true] %s1120
      %1126 = dma.vmem_to_hbm [thread:$0]  %s1121, 1024, %s3, [#allocation5], 128, 128, 8
    $region21: #{tpu_custom_call.1} parent=1 // pred_fallthru
      _
    // Predicated region
    $region22: #{tpu_custom_call.1} parent=1 // pred_check
      _
    $region23: #{tpu_custom_call.1} parent=1 // pred_check_branch
      %1128 = sbr.rel (0) target = $region25
    $region24: #{tpu_custom_call.1} parent=1 // pred_region
      %1129 = dma.done [#allocation5], 1024
    $region25: #{tpu_custom_call.1} parent=1 // pred_fallthru
      _
    %1130 = vsyncpa [#allocation4], 1
    %1131 = vsyncpa [#allocation5], 1

// kernel: tpu_custom_call.1
$region0: #{tpu_custom_call.1}
  #allocation0 [shape = 'u32[]', space=smem, size = 0x4, offset = 0x4, fixed_abs, tag = 'smem constant byte address 0x4 - core index']
  #allocation1 [shape = 'u32[144,128]{1,0:T(1,128)}', space=vmem, size = 0x12000, scoped, tag = 'internal scratch']
  #allocation2 [shape = 'bf16[18,48,3]{2,1,0:T(16,128)(2,1)}', space=vmem, size = 0x36000, scoped, tag = 'scratch operand']
  %s0 = inlined_call_operand.vmem [shape: f32[2,16,16,3], index: 0, kind: input, shape index: {}]
  %s1 = inlined_call_operand.vmem [shape: bf16[27,16], index: 1, kind: input, shape index: {}]
  %s2 = inlined_call_operand.vmem [shape: f32[1,16], index: 2, kind: input, shape index: {}]
  %s3 = inlined_call_operand.hbm [shape: f32[2,16,16,16], index: 3, kind: output, shape index: {}]
  %s4 = sld [smem:[#allocation0]]
  $region45: #{tpu_custom_call.1} parent=0
    _
  %s6 = ssub.s32 1, %s4
  %s7 = scalar_select 0, %s6, %s4
  $region1: #{tpu_custom_call.1} parent=0
    #allocation3 [shape = 'u8[262144]{0}', space=vmem, size = 0x40000, scoped, tag = 'output window, operand 0']
    #allocation4 [shape = 's32[2]{0}', space=sflag, size = 0x8, scoped, tag = 'scoped memory for tpu_custom_call.1']
    %8 = vsyncpa [#allocation4], 0
    %s9 = scalar_lea.sflag [#allocation4], 1
    %10 = vsyncpa %s9, 0
    loop: start=0, step=1, limit=4
    $region2: #{tpu_custom_call.1} parent=1 // loop_pre_header
      _
    $region3: #{tpu_custom_call.1} parent=1 // loop_header
      %s12 = sphi 0, %s16
      %p13 = scmp.ge.s32.totalorder %s12, 4
      %s22 = sphi 0, %s24
      %s25 = sphi 0, %s22
      %s26 = sphi 0, %s25
      %s42 = sphi 0, %s26
      %s46 = sphi 0, %s46
      %s48 = sphi 0, %s46
      %s49 = sphi 0, %s48
      %s63 = sphi 0, %s49
      %s67 = sphi 0, %s67
      %s69 = sphi 0, %s67
      %s70 = sphi 0, %s69
      %s84 = sphi 0, %s70
      %s90 = sphi 0, %s92
      %s93 = sphi 0, %s90
      %s94 = sphi 0, %s93
      %s110 = sphi 0, %s94
    $region4: #{tpu_custom_call.1} parent=1 // loop_header_branch
      %15 = sbr.rel (%p13) target = $region8
    $region5: #{tpu_custom_call.1} parent=1 // loop_body
      %s17 = ssub.s32 %s12, 1
      %s18 = ssub.s32 %s12, 2
      %s19 = sadd.s32 %s12, 1
      %s20 = ssub.s32 %s12, %s19
      %p21 = scmp.eq.s32.totalorder %s20, 0
      %s23 = sadd.s32 %s22, 1
      %s24 = scalar_select %p21, %s22, %s23
      %p27 = pneg %p21
      %p28 = scmp.eq.s32.totalorder %s12, 1
      %p29 = por %p27, %p28
      %p30 = scmp.ne.s32.totalorder %s22, %s25
      %p31 = scmp.eq.s32.totalorder %s12, 0
      %p32 = por %p30, %p31
      %p33 = scmp.ne.s32.totalorder %s22, %s25
      %p34 = scmp.eq.s32.totalorder %s17, 1
      %p35 = por %p33, %p34
      %p36 = scmp.ne.s32.totalorder %s25, %s26
      %p37 = scmp.eq.s32.totalorder %s17, 0
      %p38 = por %p36, %p37
      %p39 = scmp.ne.s32.totalorder %s25, %s26
      %p40 = scmp.eq.s32.totalorder %s18, 1
      %p41 = por %p39, %p40
      %p43 = scmp.ne.s32.totalorder %s26, %s42
      %p44 = scmp.eq.s32.totalorder %s18, 0
      %p45 = por %p43, %p44
      %s47 = sadd.s32 %s46, 1
      %p50 = scmp.eq.s32.totalorder %s12, 1
      %p51 = scmp.ne.s32.totalorder %s46, %s48
      %p52 = scmp.eq.s32.totalorder %s12, 0
      %p53 = por %p51, %p52
      %p54 = scmp.ne.s32.totalorder %s46, %s48
      %p55 = scmp.eq.s32.totalorder %s17, 1
      %p56 = por %p54, %p55
      %p57 = scmp.ne.s32.totalorder %s48, %s49
      %p58 = scmp.eq.s32.totalorder %s17, 0
      %p59 = por %p57, %p58
      %p60 = scmp.ne.s32.totalorder %s48, %s49
      %p61 = scmp.eq.s32.totalorder %s18, 1
      %p62 = por %p60, %p61
      %p64 = scmp.ne.s32.totalorder %s49, %s63
      %p65 = scmp.eq.s32.totalorder %s18, 0
      %p66 = por %p64, %p65
      %s68 = sadd.s32 %s67, 1
      %p71 = scmp.eq.s32.totalorder %s12, 1
      %p72 = scmp.ne.s32.totalorder %s67, %s69
      %p73 = scmp.eq.s32.totalorder %s12, 0
      %p74 = por %p72, %p73
      %p75 = scmp.ne.s32.totalorder %s67, %s69
      %p76 = scmp.eq.s32.totalorder %s17, 1
      %p77 = por %p75, %p76
      %p78 = scmp.ne.s32.totalorder %s69, %s70
      %p79 = scmp.eq.s32.totalorder %s17, 0
      %p80 = por %p78, %p79
      %p81 = scmp.ne.s32.totalorder %s69, %s70
      %p82 = scmp.eq.s32.totalorder %s18, 1
      %p83 = por %p81, %p82
      %p85 = scmp.ne.s32.totalorder %s70, %s84
      %p86 = scmp.eq.s32.totalorder %s18, 0
      %p87 = por %p85, %p86
      %s88 = ssub.s32 %s12, %s19
      %p89 = scmp.eq.s32.totalorder %s88, 0
      %s91 = sadd.s32 %s90, 1
      %s92 = scalar_select %p89, %s90, %s91
      %p95 = pneg %p89
      %p96 = scmp.eq.s32.totalorder %s12, 1
      %p97 = por %p95, %p96
      %p98 = scmp.ne.s32.totalorder %s90, %s93
      %p99 = scmp.eq.s32.totalorder %s12, 0
      %p100 = por %p98, %p99
      %p101 = scmp.ne.s32.totalorder %s90, %s93
      %p102 = scmp.eq.s32.totalorder %s17, 1
      %p103 = por %p101, %p102
      %p104 = scmp.ne.s32.totalorder %s93, %s94
      %p105 = scmp.eq.s32.totalorder %s17, 0
      %p106 = por %p104, %p105
      %p107 = scmp.ne.s32.totalorder %s93, %s94
      %p108 = scmp.eq.s32.totalorder %s18, 1
      %p109 = por %p107, %p108
      %p111 = scmp.ne.s32.totalorder %s94, %s110
      %p112 = scmp.eq.s32.totalorder %s18, 0
      %p113 = por %p111, %p112
      %p114 = scmp.le.s32.totalorder 1, %s12
      %p115 = scmp.lt.s32.totalorder %s12, 3
      %p116 = pnand %p114, %p115
      %p117 = pneg %p116
      // Predicated region
      $region9: #{tpu_custom_call.1} parent=5 // pred_check
        _
      $region10: #{tpu_custom_call.1} parent=5 // pred_check_branch
        %119 = sbr.rel (%p116) target = $region12
      $region11: #{tpu_custom_call.1} parent=5 // pred_region
        %s120 = ssub.s32 %s12, 1
        // Predicated region
        $region13: #{tpu_custom_call.1} parent=11 // pred_check
          %p121 = pneg %p59
        $region14: #{tpu_custom_call.1} parent=11 // pred_check_branch
          %123 = sbr.rel (%p121) target = $region16
        $region15: #{tpu_custom_call.1} parent=11 // pred_region
          _
        $region16: #{tpu_custom_call.1} parent=11 // pred_fallthru
          _
        // Predicated region
        $region17: #{tpu_custom_call.1} parent=11 // pred_check
          %p124 = pneg %p80
        $region18: #{tpu_custom_call.1} parent=11 // pred_check_branch
          %126 = sbr.rel (%p124) target = $region20
        $region19: #{tpu_custom_call.1} parent=11 // pred_region
          _
        $region20: #{tpu_custom_call.1} parent=11 // pred_fallthru
          _
      $region12: #{tpu_custom_call.1} parent=5 // pred_fallthru
        _
      %p127 = scmp.lt.s32.totalorder %s12, 2
      // Predicated region
      $region21: #{tpu_custom_call.1} parent=5 // pred_check
        %p128 = pneg %p127
      $region22: #{tpu_custom_call.1} parent=5 // pred_check_branch
        %130 = sbr.rel (%p128) target = $region24
      $region23: #{tpu_custom_call.1} parent=5 // pred_region
        // Predicated region
        $region25: #{tpu_custom_call.1} parent=23 // pred_check
          %p131 = pneg %p32
        $region26: #{tpu_custom_call.1} parent=23 // pred_check_branch
          %133 = sbr.rel (%p131) target = $region28
        $region27: #{tpu_custom_call.1} parent=23 // pred_region
          %p134 = scmp.lt.s32.totalorder %s12, 1
          %s135 = scalar_select %p134, %s12, 1
          %s136 = smul.addr %s135, 32
          %s137 = smul.addr %s136, 8
          %s138 = scalar_lea.vmem %s0, %s137
        $region28: #{tpu_custom_call.1} parent=23 // pred_fallthru
          _
      $region24: #{tpu_custom_call.1} parent=5 // pred_fallthru
        _
      %p139 = scmp.le.s32.totalorder 1, %s12
      %p140 = scmp.lt.s32.totalorder %s12, 3
      %p141 = pnand %p139, %p140
      %p142 = pneg %p141
      // Predicated region
      $region29: #{tpu_custom_call.1} parent=5 // pred_check
        _
      $region30: #{tpu_custom_call.1} parent=5 // pred_check_branch
        %144 = sbr.rel (%p141) target = $region32
      $region31: #{tpu_custom_call.1} parent=5 // pred_region
        %s145 = ssub.s32 %s12, 1
        %p146 = scmp.lt.s32.totalorder %s17, 1
        %s147 = scalar_select %p146, %s17, 1
        %s148 = smul.addr %s147, 32
        %s149 = smul.addr %s148, 8
        %s150 = scalar_lea.vmem %s0, %s149
        %p151 = pneg %p38
        %p152 = pneg %p35
        %p153 = pneg %p59
        %p154 = pneg %p56
        %p155 = pneg %p80
        %p156 = pneg %p77
        %p157 = pneg %p106
        %p158 = pneg %p103
        %s159 = sand.u32 %s93, 1
        %s160 = scalar_lea.sflag [#allocation4], %s159
        %s161 = sand.u32 %s93, 1
        %s162 = smul.addr %s161, 256
        %s163 = scalar_lea.vmem [#allocation3], %s162
        %p164 = scmp.lt.s32.totalorder %s17, 1
        %s165 = scalar_select %p164, %s17, 1
        %s166 = smul.addr %s165, 32
        %s167 = smul.addr %s166, 8
        %s168 = scalar_lea.vmem %s0, %s167
        %vm170 = vcmask 23552
        %171 = vst.msk [vmem:[#allocation2] sm:$0xff] %vm170, 0
        %172 = vst.msk [vmem:[#allocation2 + $0x8] sm:$0xff] %vm170, 0
        %173 = vst.msk [vmem:[#allocation2 + $0x10] sm:$0xff] %vm170, 0
        %s174 = scalar_lea.vmem [#allocation2], 408
        %175 = vst.msk [vmem:[%s174] sm:$0xff] %vm170, 0
        %176 = vst.msk [vmem:[%s174 + $0x8] sm:$0xff] %vm170, 0
        %177 = vst.msk [vmem:[%s174 + $0x10] sm:$0xff] %vm170, 0
        %178 = vst.msk [vmem:[#allocation2] sm:$0xff] %vm170, 0
        %179 = vst.msk [vmem:[#allocation2 + $0x18] sm:$0xff] %vm170, 0
        %180 = vst.msk [vmem:[#allocation2 + $0x30] sm:$0xff] %vm170, 0
        %181 = vst.msk [vmem:[#allocation2 + $0x48] sm:$0xff] %vm170, 0
        %182 = vst.msk [vmem:[#allocation2 + $0x60] sm:$0xff] %vm170, 0
        %183 = vst.msk [vmem:[#allocation2 + $0x78] sm:$0xff] %vm170, 0
        %184 = vst.msk [vmem:[#allocation2 + $0x90] sm:$0xff] %vm170, 0
        %185 = vst.msk [vmem:[#allocation2 + $0xa8] sm:$0xff] %vm170, 0
        %186 = vst.msk [vmem:[#allocation2 + $0xc0] sm:$0xff] %vm170, 0
        %187 = vst.msk [vmem:[#allocation2 + $0xd8] sm:$0xff] %vm170, 0
        %188 = vst.msk [vmem:[#allocation2 + $0xf0] sm:$0xff] %vm170, 0
        %189 = vst.msk [vmem:[#allocation2 + $0x108] sm:$0xff] %vm170, 0
        %190 = vst.msk [vmem:[#allocation2 + $0x120] sm:$0xff] %vm170, 0
        %191 = vst.msk [vmem:[#allocation2 + $0x138] sm:$0xff] %vm170, 0
        %192 = vst.msk [vmem:[#allocation2 + $0x150] sm:$0xff] %vm170, 0
        %193 = vst.msk [vmem:[#allocation2 + $0x168] sm:$0xff] %vm170, 0
        %194 = vst.msk [vmem:[#allocation2 + $0x180] sm:$0xff] %vm170, 0
        %195 = vst.msk [vmem:[#allocation2 + $0x198] sm:$0xff] %vm170, 0
        %196 = vst.msk [vmem:[#allocation2 + $0x10] sm:$0xff] %vm170, 0
        %197 = vst.msk [vmem:[#allocation2 + $0x28] sm:$0xff] %vm170, 0
        %198 = vst.msk [vmem:[#allocation2 + $0x40] sm:$0xff] %vm170, 0
        %199 = vst.msk [vmem:[#allocation2 + $0x58] sm:$0xff] %vm170, 0
        %200 = vst.msk [vmem:[#allocation2 + $0x70] sm:$0xff] %vm170, 0
        %201 = vst.msk [vmem:[#allocation2 + $0x88] sm:$0xff] %vm170, 0
        %202 = vst.msk [vmem:[#allocation2 + $0xa0] sm:$0xff] %vm170, 0
        %203 = vst.msk [vmem:[#allocation2 + $0xb8] sm:$0xff] %vm170, 0
        %204 = vst.msk [vmem:[#allocation2 + $0xd0] sm:$0xff] %vm170, 0
        %205 = vst.msk [vmem:[#allocation2 + $0xe8] sm:$0xff] %vm170, 0
        %206 = vst.msk [vmem:[#allocation2 + $0x100] sm:$0xff] %vm170, 0
        %207 = vst.msk [vmem:[#allocation2 + $0x118] sm:$0xff] %vm170, 0
        %208 = vst.msk [vmem:[#allocation2 + $0x130] sm:$0xff] %vm170, 0
        %209 = vst.msk [vmem:[#allocation2 + $0x148] sm:$0xff] %vm170, 0
        %210 = vst.msk [vmem:[#allocation2 + $0x160] sm:$0xff] %vm170, 0
        %211 = vst.msk [vmem:[#allocation2 + $0x178] sm:$0xff] %vm170, 0
        %212 = vst.msk [vmem:[#allocation2 + $0x190] sm:$0xff] %vm170, 0
        %213 = vst.msk [vmem:[#allocation2 + $0x1a8] sm:$0xff] %vm170, 0
        %v214 = vld [vmem:[%s168] sm:$0xff]
        %v215 = vld [vmem:[%s168 + $0x8] sm:$0xff]
        %v216 = vld [vmem:[%s168 + $0x10] sm:$0xff]
        %v217 = vld [vmem:[%s168 + $0x18] sm:$0xff]
        %v218 = vld [vmem:[%s168 + $0x20] sm:$0xff]
        %v219 = vld [vmem:[%s168 + $0x28] sm:$0xff]
        %v220 = vld [vmem:[%s168 + $0x30] sm:$0xff]
        %v221 = vld [vmem:[%s168 + $0x38] sm:$0xff]
        %v222 = vld [vmem:[%s168 + $0x40] sm:$0xff]
        %v223 = vld [vmem:[%s168 + $0x48] sm:$0xff]
        %v224 = vld [vmem:[%s168 + $0x50] sm:$0xff]
        %v225 = vld [vmem:[%s168 + $0x58] sm:$0xff]
        %v226 = vld [vmem:[%s168 + $0x60] sm:$0xff]
        %v227 = vld [vmem:[%s168 + $0x68] sm:$0xff]
        %v228 = vld [vmem:[%s168 + $0x70] sm:$0xff]
        %v229 = vld [vmem:[%s168 + $0x78] sm:$0xff]
        %v230 = vld [vmem:[%s168 + $0x80] sm:$0xff]
        %v231 = vld [vmem:[%s168 + $0x88] sm:$0xff]
        %v232 = vld [vmem:[%s168 + $0x90] sm:$0xff]
        %v233 = vld [vmem:[%s168 + $0x98] sm:$0xff]
        %v234 = vld [vmem:[%s168 + $0xa0] sm:$0xff]
        %v235 = vld [vmem:[%s168 + $0xa8] sm:$0xff]
        %v236 = vld [vmem:[%s168 + $0xb0] sm:$0xff]
        %v237 = vld [vmem:[%s168 + $0xb8] sm:$0xff]
        %v238 = vld [vmem:[%s168 + $0xc0] sm:$0xff]
        %v239 = vld [vmem:[%s168 + $0xc8] sm:$0xff]
        %v240 = vld [vmem:[%s168 + $0xd0] sm:$0xff]
        %v241 = vld [vmem:[%s168 + $0xd8] sm:$0xff]
        %v242 = vld [vmem:[%s168 + $0xe0] sm:$0xff]
        %v243 = vld [vmem:[%s168 + $0xe8] sm:$0xff]
        %v244 = vld [vmem:[%s168 + $0xf0] sm:$0xff]
        %v245 = vld [vmem:[%s168 + $0xf8] sm:$0xff]
        %v246 = vpack.c.bf16 %v215, %v214
        %v247 = vpack.c.bf16 %v217, %v216
        %v248 = vpack.c.bf16 %v219, %v218
        %v249 = vpack.c.bf16 %v221, %v220
        %v250 = vpack.c.bf16 %v223, %v222
        %v251 = vpack.c.bf16 %v225, %v224
        %v252 = vpack.c.bf16 %v227, %v226
        %v253 = vpack.c.bf16 %v229, %v228
        %v254 = vpack.c.bf16 %v231, %v230
        %v255 = vpack.c.bf16 %v233, %v232
        %v256 = vpack.c.bf16 %v235, %v234
        %v257 = vpack.c.bf16 %v237, %v236
        %v258 = vpack.c.bf16 %v239, %v238
        %v259 = vpack.c.bf16 %v241, %v240
        %v260 = vpack.c.bf16 %v243, %v242
        %v261 = vpack.c.bf16 %v245, %v244
        %s262 = scalar_lea.vmem [#allocation2], 24
        %263 = vst.msk [vmem:[%s262 + $0x8] sm:$0xff] %vm170, %v246
        %264 = vst.msk [vmem:[%s262 + $0x20] sm:$0xff] %vm170, %v247
        %265 = vst.msk [vmem:[%s262 + $0x38] sm:$0xff] %vm170, %v248
        %266 = vst.msk [vmem:[%s262 + $0x50] sm:$0xff] %vm170, %v249
        %267 = vst.msk [vmem:[%s262 + $0x68] sm:$0xff] %vm170, %v250
        %268 = vst.msk [vmem:[%s262 + $0x80] sm:$0xff] %vm170, %v251
        %269 = vst.msk [vmem:[%s262 + $0x98] sm:$0xff] %vm170, %v252
        %270 = vst.msk [vmem:[%s262 + $0xb0] sm:$0xff] %vm170, %v253
        %271 = vst.msk [vmem:[%s262 + $0xc8] sm:$0xff] %vm170, %v254
        %272 = vst.msk [vmem:[%s262 + $0xe0] sm:$0xff] %vm170, %v255
        %273 = vst.msk [vmem:[%s262 + $0xf8] sm:$0xff] %vm170, %v256
        %274 = vst.msk [vmem:[%s262 + $0x110] sm:$0xff] %vm170, %v257
        %275 = vst.msk [vmem:[%s262 + $0x128] sm:$0xff] %vm170, %v258
        %276 = vst.msk [vmem:[%s262 + $0x140] sm:$0xff] %vm170, %v259
        %277 = vst.msk [vmem:[%s262 + $0x158] sm:$0xff] %vm170, %v260
        %278 = vst.msk [vmem:[%s262 + $0x170] sm:$0xff] %vm170, %v261
        %v279 = vld [vmem:[%s1] sm:$0xf]
        %v280 = vld [vmem:[%s1 + $0x4] sm:$0xf]
        %v281 = vld [vmem:[%s1 + $0x8] sm:$0xf]
        %v282 = vld [vmem:[%s1 + $0xc] sm:$0x3]
        %v283 = vld [vmem:[%s2] sm:$0x1]
        %v284 = vld [vmem:[#allocation2] sm:$0x80]
        %v285 = vld [vmem:[#allocation2 + $0x8] sm:$0xff]
        %v286 = vld [vmem:[#allocation2 + $0x18] sm:$0x80]
        %v287 = vld [vmem:[#allocation2 + $0x20] sm:$0xff]
        %v288 = vld [vmem:[#allocation2 + $0x30] sm:$0x80]
        %v289 = vld [vmem:[#allocation2 + $0x38] sm:$0xff]
        %v290 = vld [vmem:[#allocation2 + $0x48] sm:$0x80]
        %v291 = vld [vmem:[#allocation2 + $0x50] sm:$0xff]
        %v292 = vld [vmem:[#allocation2 + $0x60] sm:$0x80]
        %v293 = vld [vmem:[#allocation2 + $0x68] sm:$0xff]
        %v294 = vld [vmem:[#allocation2 + $0x78] sm:$0x80]
        %v295 = vld [vmem:[#allocation2 + $0x80] sm:$0xff]
        %v296 = vld [vmem:[#allocation2 + $0x90] sm:$0x80]
        %v297 = vld [vmem:[#allocation2 + $0x98] sm:$0xff]
        %v298 = vld [vmem:[#allocation2 + $0xa8] sm:$0x80]
        %v299 = vld [vmem:[#allocation2 + $0xb0] sm:$0xff]
        %vm300 = vsmask.f32 256
        %v302 = vshrl.u32 %v284, 16
        %v304 = vrot.slane %v302, 7
        %v306 = vshrl.u32 %v285, 16
        %v308 = vrot.slane %v306, 7
        %v309 = vshll.u32 %v285, 16
        %v311 = vor.u32 %v308, %v309
        %v312 = vsel %vm300, %v304, %v311
        %v314 = vshrl.u32 %v286, 16
        %v316 = vrot.slane %v314, 7
        %v318 = vshrl.u32 %v287, 16
        %v320 = vrot.slane %v318, 7
        %v321 = vshll.u32 %v287, 16
        %v323 = vor.u32 %v320, %v321
        %v324 = vsel %vm300, %v316, %v323
        %v326 = vshrl.u32 %v288, 16
        %v328 = vrot.slane %v326, 7
        %v330 = vshrl.u32 %v289, 16
        %v332 = vrot.slane %v330, 7
        %v333 = vshll.u32 %v289, 16
        %v335 = vor.u32 %v332, %v333
        %v336 = vsel %vm300, %v328, %v335
        %v338 = vshrl.u32 %v290, 16
        %v340 = vrot.slane %v338, 7
        %v342 = vshrl.u32 %v291, 16
        %v344 = vrot.slane %v342, 7
        %v345 = vshll.u32 %v291, 16
        %v347 = vor.u32 %v344, %v345
        %v348 = vsel %vm300, %v340, %v347
        %v350 = vshrl.u32 %v292, 16
        %v352 = vrot.slane %v350, 7
        %v354 = vshrl.u32 %v293, 16
        %v356 = vrot.slane %v354, 7
        %v357 = vshll.u32 %v293, 16
        %v359 = vor.u32 %v356, %v357
        %v360 = vsel %vm300, %v352, %v359
        %v362 = vshrl.u32 %v294, 16
        %v364 = vrot.slane %v362, 7
        %v366 = vshrl.u32 %v295, 16
        %v368 = vrot.slane %v366, 7
        %v369 = vshll.u32 %v295, 16
        %v371 = vor.u32 %v368, %v369
        %v372 = vsel %vm300, %v364, %v371
        %v374 = vshrl.u32 %v296, 16
        %v376 = vrot.slane %v374, 7
        %v378 = vshrl.u32 %v297, 16
        %v380 = vrot.slane %v378, 7
        %v381 = vshll.u32 %v297, 16
        %v383 = vor.u32 %v380, %v381
        %v384 = vsel %vm300, %v376, %v383
        %v386 = vshrl.u32 %v298, 16
        %v388 = vrot.slane %v386, 7
        %v390 = vshrl.u32 %v299, 16
        %v392 = vrot.slane %v390, 7
        %v393 = vshll.u32 %v299, 16
        %v395 = vor.u32 %v392, %v393
        %v396 = vsel %vm300, %v388, %v395
        %v397 = vld [vmem:[#allocation2 + $0x10] sm:$0x1]
        %v398 = vld [vmem:[#allocation2 + $0x28] sm:$0x1]
        %v399 = vld [vmem:[#allocation2 + $0x40] sm:$0x1]
        %v400 = vld [vmem:[#allocation2 + $0x58] sm:$0x1]
        %v401 = vld [vmem:[#allocation2 + $0x70] sm:$0x1]
        %v402 = vld [vmem:[#allocation2 + $0x88] sm:$0x1]
        %v403 = vld [vmem:[#allocation2 + $0xa0] sm:$0x1]
        %v404 = vld [vmem:[#allocation2 + $0xb8] sm:$0x1]
        %vm405 = vsmask.f32 7424
        %v406 = vrot.slane %v309, 1
        %v407 = vor.u32 %v306, %v406
        %v409 = vshll.u32 %v397, 16
        %v411 = vrot.slane %v409, 1
        %v412 = vsel %vm405, %v407, %v411
        %v413 = vrot.slane %v321, 1
        %v414 = vor.u32 %v318, %v413
        %v416 = vshll.u32 %v398, 16
        %v418 = vrot.slane %v416, 1
        %v419 = vsel %vm405, %v414, %v418
        %v420 = vrot.slane %v333, 1
        %v421 = vor.u32 %v330, %v420
        %v423 = vshll.u32 %v399, 16
        %v425 = vrot.slane %v423, 1
        %v426 = vsel %vm405, %v421, %v425
        %v427 = vrot.slane %v345, 1
        %v428 = vor.u32 %v342, %v427
        %v430 = vshll.u32 %v400, 16
        %v432 = vrot.slane %v430, 1
        %v433 = vsel %vm405, %v428, %v432
        %v434 = vrot.slane %v357, 1
        %v435 = vor.u32 %v354, %v434
        %v437 = vshll.u32 %v401, 16
        %v439 = vrot.slane %v437, 1
        %v440 = vsel %vm405, %v435, %v439
        %v441 = vrot.slane %v369, 1
        %v442 = vor.u32 %v366, %v441
        %v444 = vshll.u32 %v402, 16
        %v446 = vrot.slane %v444, 1
        %v447 = vsel %vm405, %v442, %v446
        %v448 = vrot.slane %v381, 1
        %v449 = vor.u32 %v378, %v448
        %v451 = vshll.u32 %v403, 16
        %v453 = vrot.slane %v451, 1
        %v454 = vsel %vm405, %v449, %v453
        %v455 = vrot.slane %v393, 1
        %v456 = vor.u32 %v390, %v455
        %v458 = vshll.u32 %v404, 16
        %v460 = vrot.slane %v458, 1
        %v461 = vsel %vm405, %v456, %v460
        %v462 = vld [vmem:[%s262] sm:$0x80]
        %v463 = vld [vmem:[%s262 + $0x8] sm:$0xff]
        %v464 = vld [vmem:[%s262 + $0x18] sm:$0x80]
        %v465 = vld [vmem:[%s262 + $0x20] sm:$0xff]
        %v466 = vld [vmem:[%s262 + $0x30] sm:$0x80]
        %v467 = vld [vmem:[%s262 + $0x38] sm:$0xff]
        %v468 = vld [vmem:[%s262 + $0x48] sm:$0x80]
        %v469 = vld [vmem:[%s262 + $0x50] sm:$0xff]
        %v470 = vld [vmem:[%s262 + $0x60] sm:$0x80]
        %v471 = vld [vmem:[%s262 + $0x68] sm:$0xff]
        %v472 = vld [vmem:[%s262 + $0x78] sm:$0x80]
        %v473 = vld [vmem:[%s262 + $0x80] sm:$0xff]
        %v474 = vld [vmem:[%s262 + $0x90] sm:$0x80]
        %v475 = vld [vmem:[%s262 + $0x98] sm:$0xff]
        %v476 = vld [vmem:[%s262 + $0xa8] sm:$0x80]
        %v477 = vld [vmem:[%s262 + $0xb0] sm:$0xff]
        %v479 = vshrl.u32 %v462, 16
        %v481 = vrot.slane %v479, 7
        %v483 = vshrl.u32 %v463, 16
        %v485 = vrot.slane %v483, 7
        %v486 = vshll.u32 %v463, 16
        %v488 = vor.u32 %v485, %v486
        %v489 = vsel %vm300, %v481, %v488
        %v491 = vshrl.u32 %v464, 16
        %v493 = vrot.slane %v491, 7
        %v495 = vshrl.u32 %v465, 16
        %v497 = vrot.slane %v495, 7
        %v498 = vshll.u32 %v465, 16
        %v500 = vor.u32 %v497, %v498
        %v501 = vsel %vm300, %v493, %v500
        %v503 = vshrl.u32 %v466, 16
        %v505 = vrot.slane %v503, 7
        %v507 = vshrl.u32 %v467, 16
        %v509 = vrot.slane %v507, 7
        %v510 = vshll.u32 %v467, 16
        %v512 = vor.u32 %v509, %v510
        %v513 = vsel %vm300, %v505, %v512
        %v515 = vshrl.u32 %v468, 16
        %v517 = vrot.slane %v515, 7
        %v519 = vshrl.u32 %v469, 16
        %v521 = vrot.slane %v519, 7
        %v522 = vshll.u32 %v469, 16
        %v524 = vor.u32 %v521, %v522
        %v525 = vsel %vm300, %v517, %v524
        %v527 = vshrl.u32 %v470, 16
        %v529 = vrot.slane %v527, 7
        %v531 = vshrl.u32 %v471, 16
        %v533 = vrot.slane %v531, 7
        %v534 = vshll.u32 %v471, 16
        %v536 = vor.u32 %v533, %v534
        %v537 = vsel %vm300, %v529, %v536
        %v539 = vshrl.u32 %v472, 16
        %v541 = vrot.slane %v539, 7
        %v543 = vshrl.u32 %v473, 16
        %v545 = vrot.slane %v543, 7
        %v546 = vshll.u32 %v473, 16
        %v548 = vor.u32 %v545, %v546
        %v549 = vsel %vm300, %v541, %v548
        %v551 = vshrl.u32 %v474, 16
        %v553 = vrot.slane %v551, 7
        %v555 = vshrl.u32 %v475, 16
        %v557 = vrot.slane %v555, 7
        %v558 = vshll.u32 %v475, 16
        %v560 = vor.u32 %v557, %v558
        %v561 = vsel %vm300, %v553, %v560
        %v563 = vshrl.u32 %v476, 16
        %v565 = vrot.slane %v563, 7
        %v567 = vshrl.u32 %v477, 16
        %v569 = vrot.slane %v567, 7
        %v570 = vshll.u32 %v477, 16
        %v572 = vor.u32 %v569, %v570
        %v573 = vsel %vm300, %v565, %v572
        %v574 = vld [vmem:[%s262 + $0x10] sm:$0x1]
        %v575 = vld [vmem:[%s262 + $0x28] sm:$0x1]
        %v576 = vld [vmem:[%s262 + $0x40] sm:$0x1]
        %v577 = vld [vmem:[%s262 + $0x58] sm:$0x1]
        %v578 = vld [vmem:[%s262 + $0x70] sm:$0x1]
        %v579 = vld [vmem:[%s262 + $0x88] sm:$0x1]
        %v580 = vld [vmem:[%s262 + $0xa0] sm:$0x1]
        %v581 = vld [vmem:[%s262 + $0xb8] sm:$0x1]
        %v582 = vrot.slane %v486, 1
        %v583 = vor.u32 %v483, %v582
        %v585 = vshll.u32 %v574, 16
        %v587 = vrot.slane %v585, 1
        %v588 = vsel %vm405, %v583, %v587
        %v589 = vrot.slane %v498, 1
        %v590 = vor.u32 %v495, %v589
        %v592 = vshll.u32 %v575, 16
        %v594 = vrot.slane %v592, 1
        %v595 = vsel %vm405, %v590, %v594
        %v596 = vrot.slane %v510, 1
        %v597 = vor.u32 %v507, %v596
        %v599 = vshll.u32 %v576, 16
        %v601 = vrot.slane %v599, 1
        %v602 = vsel %vm405, %v597, %v601
        %v603 = vrot.slane %v522, 1
        %v604 = vor.u32 %v519, %v603
        %v606 = vshll.u32 %v577, 16
        %v608 = vrot.slane %v606, 1
        %v609 = vsel %vm405, %v604, %v608
        %v610 = vrot.slane %v534, 1
        %v611 = vor.u32 %v531, %v610
        %v613 = vshll.u32 %v578, 16
        %v615 = vrot.slane %v613, 1
        %v616 = vsel %vm405, %v611, %v615
        %v617 = vrot.slane %v546, 1
        %v618 = vor.u32 %v543, %v617
        %v620 = vshll.u32 %v579, 16
        %v622 = vrot.slane %v620, 1
        %v623 = vsel %vm405, %v618, %v622
        %v624 = vrot.slane %v558, 1
        %v625 = vor.u32 %v555, %v624
        %v627 = vshll.u32 %v580, 16
        %v629 = vrot.slane %v627, 1
        %v630 = vsel %vm405, %v625, %v629
        %v631 = vrot.slane %v570, 1
        %v632 = vor.u32 %v567, %v631
        %v634 = vshll.u32 %v581, 16
        %v636 = vrot.slane %v634, 1
        %v637 = vsel %vm405, %v632, %v636
        %s638 = scalar_lea.vmem [#allocation2], 48
        %v639 = vld [vmem:[%s638] sm:$0x80]
        %v640 = vld [vmem:[%s638 + $0x8] sm:$0xff]
        %v641 = vld [vmem:[%s638 + $0x18] sm:$0x80]
        %v642 = vld [vmem:[%s638 + $0x20] sm:$0xff]
        %v643 = vld [vmem:[%s638 + $0x30] sm:$0x80]
        %v644 = vld [vmem:[%s638 + $0x38] sm:$0xff]
        %v645 = vld [vmem:[%s638 + $0x48] sm:$0x80]
        %v646 = vld [vmem:[%s638 + $0x50] sm:$0xff]
        %v647 = vld [vmem:[%s638 + $0x60] sm:$0x80]
        %v648 = vld [vmem:[%s638 + $0x68] sm:$0xff]
        %v649 = vld [vmem:[%s638 + $0x78] sm:$0x80]
        %v650 = vld [vmem:[%s638 + $0x80] sm:$0xff]
        %v651 = vld [vmem:[%s638 + $0x90] sm:$0x80]
        %v652 = vld [vmem:[%s638 + $0x98] sm:$0xff]
        %v653 = vld [vmem:[%s638 + $0xa8] sm:$0x80]
        %v654 = vld [vmem:[%s638 + $0xb0] sm:$0xff]
        %v656 = vshrl.u32 %v639, 16
        %v658 = vrot.slane %v656, 7
        %v660 = vshrl.u32 %v640, 16
        %v662 = vrot.slane %v660, 7
        %v663 = vshll.u32 %v640, 16
        %v665 = vor.u32 %v662, %v663
        %v666 = vsel %vm300, %v658, %v665
        %v668 = vshrl.u32 %v641, 16
        %v670 = vrot.slane %v668, 7
        %v672 = vshrl.u32 %v642, 16
        %v674 = vrot.slane %v672, 7
        %v675 = vshll.u32 %v642, 16
        %v677 = vor.u32 %v674, %v675
        %v678 = vsel %vm300, %v670, %v677
        %v680 = vshrl.u32 %v643, 16
        %v682 = vrot.slane %v680, 7
        %v684 = vshrl.u32 %v644, 16
        %v686 = vrot.slane %v684, 7
        %v687 = vshll.u32 %v644, 16
        %v689 = vor.u32 %v686, %v687
        %v690 = vsel %vm300, %v682, %v689
        %v692 = vshrl.u32 %v645, 16
        %v694 = vrot.slane %v692, 7
        %v696 = vshrl.u32 %v646, 16
        %v698 = vrot.slane %v696, 7
        %v699 = vshll.u32 %v646, 16
        %v701 = vor.u32 %v698, %v699
        %v702 = vsel %vm300, %v694, %v701
        %v704 = vshrl.u32 %v647, 16
        %v706 = vrot.slane %v704, 7
        %v708 = vshrl.u32 %v648, 16
        %v710 = vrot.slane %v708, 7
        %v711 = vshll.u32 %v648, 16
        %v713 = vor.u32 %v710, %v711
        %v714 = vsel %vm300, %v706, %v713
        %v716 = vshrl.u32 %v649, 16
        %v718 = vrot.slane %v716, 7
        %v720 = vshrl.u32 %v650, 16
        %v722 = vrot.slane %v720, 7
        %v723 = vshll.u32 %v650, 16
        %v725 = vor.u32 %v722, %v723
        %v726 = vsel %vm300, %v718, %v725
        %v728 = vshrl.u32 %v651, 16
        %v730 = vrot.slane %v728, 7
        %v732 = vshrl.u32 %v652, 16
        %v734 = vrot.slane %v732, 7
        %v735 = vshll.u32 %v652, 16
        %v737 = vor.u32 %v734, %v735
        %v738 = vsel %vm300, %v730, %v737
        %v740 = vshrl.u32 %v653, 16
        %v742 = vrot.slane %v740, 7
        %v744 = vshrl.u32 %v654, 16
        %v746 = vrot.slane %v744, 7
        %v747 = vshll.u32 %v654, 16
        %v749 = vor.u32 %v746, %v747
        %v750 = vsel %vm300, %v742, %v749
        %v751 = vld [vmem:[%s638 + $0x10] sm:$0x1]
        %v752 = vld [vmem:[%s638 + $0x28] sm:$0x1]
        %v753 = vld [vmem:[%s638 + $0x40] sm:$0x1]
        %v754 = vld [vmem:[%s638 + $0x58] sm:$0x1]
        %v755 = vld [vmem:[%s638 + $0x70] sm:$0x1]
        %v756 = vld [vmem:[%s638 + $0x88] sm:$0x1]
        %v757 = vld [vmem:[%s638 + $0xa0] sm:$0x1]
        %v758 = vld [vmem:[%s638 + $0xb8] sm:$0x1]
        %v759 = vrot.slane %v663, 1
        %v760 = vor.u32 %v660, %v759
        %v762 = vshll.u32 %v751, 16
        %v764 = vrot.slane %v762, 1
        %v765 = vsel %vm405, %v760, %v764
        %v766 = vrot.slane %v675, 1
        %v767 = vor.u32 %v672, %v766
        %v769 = vshll.u32 %v752, 16
        %v771 = vrot.slane %v769, 1
        %v772 = vsel %vm405, %v767, %v771
        %v773 = vrot.slane %v687, 1
        %v774 = vor.u32 %v684, %v773
        %v776 = vshll.u32 %v753, 16
        %v778 = vrot.slane %v776, 1
        %v779 = vsel %vm405, %v774, %v778
        %v780 = vrot.slane %v699, 1
        %v781 = vor.u32 %v696, %v780
        %v783 = vshll.u32 %v754, 16
        %v785 = vrot.slane %v783, 1
        %v786 = vsel %vm405, %v781, %v785
        %v787 = vrot.slane %v711, 1
        %v788 = vor.u32 %v708, %v787
        %v790 = vshll.u32 %v755, 16
        %v792 = vrot.slane %v790, 1
        %v793 = vsel %vm405, %v788, %v792
        %v794 = vrot.slane %v723, 1
        %v795 = vor.u32 %v720, %v794
        %v797 = vshll.u32 %v756, 16
        %v799 = vrot.slane %v797, 1
        %v800 = vsel %vm405, %v795, %v799
        %v801 = vrot.slane %v735, 1
        %v802 = vor.u32 %v732, %v801
        %v804 = vshll.u32 %v757, 16
        %v806 = vrot.slane %v804, 1
        %v807 = vsel %vm405, %v802, %v806
        %v808 = vrot.slane %v747, 1
        %v809 = vor.u32 %v744, %v808
        %v811 = vshll.u32 %v758, 16
        %v813 = vrot.slane %v811, 1
        %v814 = vsel %vm405, %v809, %v813
        %v816 = vunpack.c.l.b16 %v279
        %v817 = vpack.c.b16 %v816, %v816
        %v819 = vshrl.u32 %v817, 16
        %v821 = vrot.slane %v819, 1
        %v822 = vshll.u32 %v817, 16
        %v824 = vrot.slane %v822, 2
        %v825 = vor.u32 %v821, %v824
        %v826 = vsel %vm170, %v285, 0
        %v828 = vsel %vm170, %v287, 0
        %v830 = vsel %vm170, %v289, 0
        %v832 = vsel %vm170, %v291, 0
        %v834 = vsel %vm170, %v293, 0
        %v836 = vsel %vm170, %v295, 0
        %v838 = vsel %vm170, %v297, 0
        %v840 = vsel %vm170, %v299, 0
        %vm842 = vcmask 1040384
        %vm843 = vcmask 1041408
        %v844 = vsel %vm842, 4294967295, 65535
        %v845 = vsel %vm843, %v844, 0
        %v847 = vand.u32 %v825, %v845
        %849 = vmatprep.subr.bf16.mxu0 0
        %850 = vmatpush1.bf16.msra.mxu0 %v847
        %851 = vmatprep.subr.bf16.mxu0 0
        %852 = vmatpush1.bf16.msra.mxu0 0
        %853 = vmatprep.subr.bf16.mxu0 0
        %854 = vmatpush1.bf16.msra.mxu0 0
        %855 = vmatprep.subr.bf16.mxu0 0
        %856 = vmatpush1.bf16.msra.mxu0 0
        %857 = vmatprep.subr.bf16.mxu0 0
        %858 = vmatpush1.bf16.msra.mxu0 0
        %859 = vmatprep.subr.bf16.mxu0 0
        %860 = vmatpush1.bf16.msra.mxu0 0
        %861 = vmatprep.subr.bf16.mxu0 0
        %862 = vmatpush1.bf16.msra.mxu0 0
        %863 = vmatprep.subr.bf16.mxu0 0
        %864 = vmatpush1.bf16.msra.mxu0 0
        %865 = vmatprep.subr.bf16.mxu0 0
        %866 = vmatpush1.bf16.msra.mxu0 0
        %867 = vmatprep.subr.bf16.mxu0 0
        %868 = vmatpush1.bf16.msra.mxu0 0
        %869 = vmatprep.subr.bf16.mxu0 0
        %870 = vmatpush1.bf16.msra.mxu0 0
        %871 = vmatprep.subr.bf16.mxu0 0
        %872 = vmatpush1.bf16.msra.mxu0 0
        %873 = vmatprep.subr.bf16.mxu0 0
        %874 = vmatpush1.bf16.msra.mxu0 0
        %875 = vmatprep.subr.bf16.mxu0 0
        %876 = vmatpush1.bf16.msra.mxu0 0
        %877 = vmatprep.subr.bf16.mxu0 0
        %878 = vmatpush1.bf16.msra.mxu0 0
        %879 = vmatprep.subr.bf16.mxu0 0
        %880 = vmatpush1.bf16.msra.mxu0 0
        %881 = vmatprep.mubr.bf16.mxu0 0
        %882 = vmatmul.mubr.bf16.gmra.mrb[0].mxu0 %v826
        %v883 = vpop.f32.mrb[0].mxu0
        %v884 = vadd.f32 0.0, %v883
        %v885 = vpop.f32.mrb[0].mxu0
        %v886 = vpop.f32.mrb[0].mxu0
        %v887 = vadd.f32 0.0, %v886
        %v888 = vpop.f32.mrb[0].mxu0
        %889 = vmatprep.mubr.bf16.mxu0 0
        %890 = vmatmul.mubr.bf16.gmra.mrb[0].mxu0 %v828
        %v891 = vpop.f32.mrb[0].mxu0
        %v892 = vadd.f32 0.0, %v891
        %v893 = vpop.f32.mrb[0].mxu0
        %v894 = vpop.f32.mrb[0].mxu0
        %v895 = vadd.f32 0.0, %v894
        %v896 = vpop.f32.mrb[0].mxu0
        %897 = vmatprep.mubr.bf16.mxu0 0
        %898 = vmatmul.mubr.bf16.gmra.mrb[0].mxu0 %v830
        %v899 = vpop.f32.mrb[0].mxu0
        %v900 = vadd.f32 0.0, %v899
        %v901 = vpop.f32.mrb[0].mxu0
        %v902 = vpop.f32.mrb[0].mxu0
        %v903 = vadd.f32 0.0, %v902
        %v904 = vpop.f32.mrb[0].mxu0
        %905 = vmatprep.mubr.bf16.mxu0 0
        %906 = vmatmul.mubr.bf16.gmra.mrb[0].mxu0 %v832
        %v907 = vpop.f32.mrb[0].mxu0
        %v908 = vadd.f32 0.0, %v907
        %v909 = vpop.f32.mrb[0].mxu0
        %v910 = vpop.f32.mrb[0].mxu0
        %v911 = vadd.f32 0.0, %v910
        %v912 = vpop.f32.mrb[0].mxu0
        %913 = vmatprep.mubr.bf16.mxu0 0
        %914 = vmatmul.mubr.bf16.gmra.mrb[0].mxu0 %v834
        %v915 = vpop.f32.mrb[0].mxu0
        %v916 = vadd.f32 0.0, %v915
        %v917 = vpop.f32.mrb[0].mxu0
        %v918 = vpop.f32.mrb[0].mxu0
        %v919 = vadd.f32 0.0, %v918
        %v920 = vpop.f32.mrb[0].mxu0
        %921 = vmatprep.mubr.bf16.mxu0 0
        %922 = vmatmul.mubr.bf16.gmra.mrb[0].mxu0 %v836
        %v923 = vpop.f32.mrb[0].mxu0
        %v924 = vadd.f32 0.0, %v923
        %v925 = vpop.f32.mrb[0].mxu0
        %v926 = vpop.f32.mrb[0].mxu0
        %v927 = vadd.f32 0.0, %v926
        %v928 = vpop.f32.mrb[0].mxu0
        %929 = vmatprep.mubr.bf16.mxu0 0
        %930 = vmatmul.mubr.bf16.gmra.mrb[0].mxu0 %v838
        %v931 = vpop.f32.mrb[0].mxu0
        %v932 = vadd.f32 0.0, %v931
        %v933 = vpop.f32.mrb[0].mxu0
        %v934 = vpop.f32.mrb[0].mxu0
        %v935 = vadd.f32 0.0, %v934
        %v936 = vpop.f32.mrb[0].mxu0
        %937 = vmatprep.mubr.bf16.mxu0 0
        %938 = vmatmul.mubr.bf16.gmra.mrb[0].mxu0 %v840
        %v939 = vpop.f32.mrb[0].mxu0
        %v940 = vadd.f32 0.0, %v939
        %v941 = vpop.f32.mrb[0].mxu0
        %v942 = vpop.f32.mrb[0].mxu0
        %v943 = vadd.f32 0.0, %v942
        %v944 = vpop.f32.mrb[0].mxu0
        %945 = vdwg.mxu0
        %v947 = vsel %vm170, %v312, 0
        %v950 = vsel %vm170, %v324, 0
        %v953 = vsel %vm170, %v336, 0
        %v956 = vsel %vm170, %v348, 0
        %v959 = vsel %vm170, %v360, 0
        %v962 = vsel %vm170, %v372, 0
        %v965 = vsel %vm170, %v384, 0
        %v968 = vsel %vm170, %v396, 0
        %v971 = vand.u32 %v279, %v845
        %973 = vmatprep.subr.bf16.mxu0 0
        %974 = vmatpush1.bf16.msra.mxu0 %v971
        %975 = vmatprep.subr.bf16.mxu0 0
        %976 = vmatpush1.bf16.msra.mxu0 0
        %977 = vmatprep.subr.bf16.mxu0 0
        %978 = vmatpush1.bf16.msra.mxu0 0
        %979 = vmatprep.subr.bf16.mxu0 0
        %980 = vmatpush1.bf16.msra.mxu0 0
        %981 = vmatprep.subr.bf16.mxu0 0
        %982 = vmatpush1.bf16.msra.mxu0 0
        %983 = vmatprep.subr.bf16.mxu0 0
        %984 = vmatpush1.bf16.msra.mxu0 0
        %985 = vmatprep.subr.bf16.mxu0 0
        %986 = vmatpush1.bf16.msra.mxu0 0
        %987 = vmatprep.subr.bf16.mxu0 0
        %988 = vmatpush1.bf16.msra.mxu0 0
        %989 = vmatprep.subr.bf16.mxu0 0
        %990 = vmatpush1.bf16.msra.mxu0 0
        %991 = vmatprep.subr.bf16.mxu0 0
        %992 = vmatpush1.bf16.msra.mxu0 0
        %993 = vmatprep.subr.bf16.mxu0 0
        %994 = vmatpush1.bf16.msra.mxu0 0
        %995 = vmatprep.subr.bf16.mxu0 0
        %996 = vmatpush1.bf16.msra.mxu0 0
        %997 = vmatprep.subr.bf16.mxu0 0
        %998 = vmatpush1.bf16.msra.mxu0 0
        %999 = vmatprep.subr.bf16.mxu0 0
        %1000 = vmatpush1.bf16.msra.mxu0 0
        %1001 = vmatprep.subr.bf16.mxu0 0
        %1002 = vmatpush1.bf16.msra.mxu0 0
        %1003 = vmatprep.subr.bf16.mxu0 0
        %1004 = vmatpush1.bf16.msra.mxu0 0
        %1005 = vmatprep.mubr.bf16.mxu0 0
        %1006 = vmatmul.mubr.bf16.gmra.mrb[0].mxu0 %v947
        %v1007 = vpop.f32.mrb[0].mxu0
        %v1008 = vadd.f32 %v884, %v1007
        %v1009 = vpop.f32.mrb[0].mxu0
        %v1010 = vpop.f32.mrb[0].mxu0
        %v1011 = vadd.f32 %v887, %v1010
        %v1012 = vpop.f32.mrb[0].mxu0
        %1013 = vmatprep.mubr.bf16.mxu0 0
        %1014 = vmatmul.mubr.bf16.gmra.mrb[0].mxu0 %v950
        %v1015 = vpop.f32.mrb[0].mxu0
        %v1016 = vadd.f32 %v892, %v1015
        %v1017 = vpop.f32.mrb[0].mxu0
        %v1018 = vpop.f32.mrb[0].mxu0
        %v1019 = vadd.f32 %v895, %v1018
        %v1020 = vpop.f32.mrb[0].mxu0
        %1021 = vmatprep.mubr.bf16.mxu0 0
        %1022 = vmatmul.mubr.bf16.gmra.mrb[0].mxu0 %v953
        %v1023 = vpop.f32.mrb[0].mxu0
        %v1024 = vadd.f32 %v900, %v1023
        %v1025 = vpop.f32.mrb[0].mxu0
        %v1026 = vpop.f32.mrb[0].mxu0
        %v1027 = vadd.f32 %v903, %v1026
        %v1028 = vpop.f32.mrb[0].mxu0
        %1029 = vmatprep.mubr.bf16.mxu0 0
        %1030 = vmatmul.mubr.bf16.gmra.mrb[0].mxu0 %v956
        %v1031 = vpop.f32.mrb[0].mxu0
        %v1032 = vadd.f32 %v908, %v1031
        %v1033 = vpop.f32.mrb[0].mxu0
        %v1034 = vpop.f32.mrb[0].mxu0
        %v1035 = vadd.f32 %v911, %v1034
        %v1036 = vpop.f32.mrb[0].mxu0
        %1037 = vmatprep.mubr.bf16.mxu0 0
        %1038 = vmatmul.mubr.bf16.gmra.mrb[0].mxu0 %v959
        %v1039 = vpop.f32.mrb[0].mxu0
        %v1040 = vadd.f32 %v916, %v1039
        %v1041 = vpop.f32.mrb[0].mxu0
        %v1042 = vpop.f32.mrb[0].mxu0
        %v1043 = vadd.f32 %v919, %v1042
        %v1044 = vpop.f32.mrb[0].mxu0
        %1045 = vmatprep.mubr.bf16.mxu0 0
        %1046 = vmatmul.mubr.bf16.gmra.mrb[0].mxu0 %v962
        %v1047 = vpop.f32.mrb[0].mxu0
        %v1048 = vadd.f32 %v924, %v1047
        %v1049 = vpop.f32.mrb[0].mxu0
        %v1050 = vpop.f32.mrb[0].mxu0
        %v1051 = vadd.f32 %v927, %v1050
        %v1052 = vpop.f32.mrb[0].mxu0
        %1053 = vmatprep.mubr.bf16.mxu0 0
        %1054 = vmatmul.mubr.bf16.gmra.mrb[0].mxu0 %v965
        %v1055 = vpop.f32.mrb[0].mxu0
        %v1056 = vadd.f32 %v932, %v1055
        %v1057 = vpop.f32.mrb[0].mxu0
        %v1058 = vpop.f32.mrb[0].mxu0
        %v1059 = vadd.f32 %v935, %v1058
        %v1060 = vpop.f32.mrb[0].mxu0
        %1061 = vmatprep.mubr.bf16.mxu0 0
        %1062 = vmatmul.mubr.bf16.gmra.mrb[0].mxu0 %v968
        %v1063 = vpop.f32.mrb[0].mxu0
        %v1064 = vadd.f32 %v940, %v1063
        %v1065 = vpop.f32.mrb[0].mxu0
        %v1066 = vpop.f32.mrb[0].mxu0
        %v1067 = vadd.f32 %v943, %v1066
        %v1068 = vpop.f32.mrb[0].mxu0
        %1069 = vdwg.mxu0
        %v1071 = vunpack.c.l.b16 %v280
        %v1072 = vpack.c.b16 %v1071, %v816
        %v1073 = vrot.slane %v1072, 3
        %v1075 = vsel %vm170, %v412, 0
        %v1078 = vsel %vm170, %v419, 0
        %v1081 = vsel %vm170, %v426, 0
        %v1084 = vsel %vm170, %v433, 0
        %v1087 = vsel %vm170, %v440, 0
        %v1090 = vsel %vm170, %v447, 0
        %v1093 = vsel %vm170, %v454, 0
        %v1096 = vsel %vm170, %v461, 0
        %v1099 = vand.u32 %v1073, %v845
        %1101 = vmatprep.subr.bf16.mxu0 0
        %1102 = vmatpush1.bf16.msra.mxu0 %v1099
        %1103 = vmatprep.subr.bf16.mxu0 0
        %1104 = vmatpush1.bf16.msra.mxu0 0
        %1105 = vmatprep.subr.bf16.mxu0 0
        %1106 = vmatpush1.bf16.msra.mxu0 0
        %1107 = vmatprep.subr.bf16.mxu0 0
        %1108 = vmatpush1.bf16.msra.mxu0 0
        %1109 = vmatprep.subr.bf16.mxu0 0
        %1110 = vmatpush1.bf16.msra.mxu0 0
        %1111 = vmatprep.subr.bf16.mxu0 0
        %1112 = vmatpush1.bf16.msra.mxu0 0
        %1113 = vmatprep.subr.bf16.mxu0 0
        %1114 = vmatpush1.bf16.msra.mxu0 0
        %1115 = vmatprep.subr.bf16.mxu0 0
        %1116 = vmatpush1.bf16.msra.mxu0 0
        %1117 = vmatprep.subr.bf16.mxu0 0
        %1118 = vmatpush1.bf16.msra.mxu0 0
        %1119 = vmatprep.subr.bf16.mxu0 0
        %1120 = vmatpush1.bf16.msra.mxu0 0
        %1121 = vmatprep.subr.bf16.mxu0 0
        %1122 = vmatpush1.bf16.msra.mxu0 0
        %1123 = vmatprep.subr.bf16.mxu0 0
        %1124 = vmatpush1.bf16.msra.mxu0 0
        %1125 = vmatprep.subr.bf16.mxu0 0
        %1126 = vmatpush1.bf16.msra.mxu0 0
        %1127 = vmatprep.subr.bf16.mxu0 0
        %1128 = vmatpush1.bf16.msra.mxu0 0
        %1129 = vmatprep.subr.bf16.mxu0 0
        %1130 = vmatpush1.bf16.msra.mxu0 0
        %1131 = vmatprep.subr.bf16.mxu0 0
        %1132 = vmatpush1.bf16.msra.mxu0 0
        %1133 = vmatprep.mubr.bf16.mxu0 0
        %1134 = vmatmul.mubr.bf16.gmra.mrb[0].mxu0 %v1075
        %v1135 = vpop.f32.mrb[0].mxu0
        %v1136 = vadd.f32 0.0, %v1135
        %v1137 = vpop.f32.mrb[0].mxu0
        %v1138 = vpop.f32.mrb[0].mxu0
        %v1139 = vadd.f32 0.0, %v1138
        %v1140 = vpop.f32.mrb[0].mxu0
        %1141 = vmatprep.mubr.bf16.mxu0 0
        %1142 = vmatmul.mubr.bf16.gmra.mrb[0].mxu0 %v1078
        %v1143 = vpop.f32.mrb[0].mxu0
        %v1144 = vadd.f32 0.0, %v1143
        %v1145 = vpop.f32.mrb[0].mxu0
        %v1146 = vpop.f32.mrb[0].mxu0
        %v1147 = vadd.f32 0.0, %v1146
        %v1148 = vpop.f32.mrb[0].mxu0
        %1149 = vmatprep.mubr.bf16.mxu0 0
        %1150 = vmatmul.mubr.bf16.gmra.mrb[0].mxu0 %v1081
        %v1151 = vpop.f32.mrb[0].mxu0
        %v1152 = vadd.f32 0.0, %v1151
        %v1153 = vpop.f32.mrb[0].mxu0
        %v1154 = vpop.f32.mrb[0].mxu0
        %v1155 = vadd.f32 0.0, %v1154
        %v1156 = vpop.f32.mrb[0].mxu0
        %1157 = vmatprep.mubr.bf16.mxu0 0
        %1158 = vmatmul.mubr.bf16.gmra.mrb[0].mxu0 %v1084
        %v1159 = vpop.f32.mrb[0].mxu0
        %v1160 = vadd.f32 0.0, %v1159
        %v1161 = vpop.f32.mrb[0].mxu0
        %v1162 = vpop.f32.mrb[0].mxu0
        %v1163 = vadd.f32 0.0, %v1162
        %v1164 = vpop.f32.mrb[0].mxu0
        %1165 = vmatprep.mubr.bf16.mxu0 0
        %1166 = vmatmul.mubr.bf16.gmra.mrb[0].mxu0 %v1087
        %v1167 = vpop.f32.mrb[0].mxu0
        %v1168 = vadd.f32 0.0, %v1167
        %v1169 = vpop.f32.mrb[0].mxu0
        %v1170 = vpop.f32.mrb[0].mxu0
        %v1171 = vadd.f32 0.0, %v1170
        %v1172 = vpop.f32.mrb[0].mxu0
        %1173 = vmatprep.mubr.bf16.mxu0 0
        %1174 = vmatmul.mubr.bf16.gmra.mrb[0].mxu0 %v1090
        %v1175 = vpop.f32.mrb[0].mxu0
        %v1176 = vadd.f32 0.0, %v1175
        %v1177 = vpop.f32.mrb[0].mxu0
        %v1178 = vpop.f32.mrb[0].mxu0
        %v1179 = vadd.f32 0.0, %v1178
        %v1180 = vpop.f32.mrb[0].mxu0
        %1181 = vmatprep.mubr.bf16.mxu0 0
        %1182 = vmatmul.mubr.bf16.gmra.mrb[0].mxu0 %v1093
        %v1183 = vpop.f32.mrb[0].mxu0
        %v1184 = vadd.f32 0.0, %v1183
        %v1185 = vpop.f32.mrb[0].mxu0
        %v1186 = vpop.f32.mrb[0].mxu0
        %v1187 = vadd.f32 0.0, %v1186
        %v1188 = vpop.f32.mrb[0].mxu0
        %1189 = vmatprep.mubr.bf16.mxu0 0
        %1190 = vmatmul.mubr.bf16.gmra.mrb[0].mxu0 %v1096
        %v1191 = vpop.f32.mrb[0].mxu0
        %v1192 = vadd.f32 0.0, %v1191
        %v1193 = vpop.f32.mrb[0].mxu0
        %v1194 = vpop.f32.mrb[0].mxu0
        %v1195 = vadd.f32 0.0, %v1194
        %v1196 = vpop.f32.mrb[0].mxu0
        %1197 = vdwg.mxu0
        %v1198 = vadd.f32 %v1008, %v1136
        %v1199 = vadd.f32 %v1011, %v1139
        %v1200 = vadd.f32 %v1016, %v1144
        %v1201 = vadd.f32 %v1019, %v1147
        %v1202 = vadd.f32 %v1024, %v1152
        %v1203 = vadd.f32 %v1027, %v1155
        %v1204 = vadd.f32 %v1032, %v1160
        %v1205 = vadd.f32 %v1035, %v1163
        %v1206 = vadd.f32 %v1040, %v1168
        %v1207 = vadd.f32 %v1043, %v1171
        %v1208 = vadd.f32 %v1048, %v1176
        %v1209 = vadd.f32 %v1051, %v1179
        %v1210 = vadd.f32 %v1056, %v1184
        %v1211 = vadd.f32 %v1059, %v1187
        %v1212 = vadd.f32 %v1064, %v1192
        %v1213 = vadd.f32 %v1067, %v1195
        %v1214 = vpack.c.b16 %v1071, %v1071
        %v1216 = vshrl.u32 %v1214, 16
        %v1218 = vshll.u32 %v1214, 16
        %v1220 = vrot.slane %v1218, 1
        %v1221 = vor.u32 %v1216, %v1220
        %v1223 = vsel %vm170, %v489, 0
        %v1226 = vsel %vm170, %v501, 0
        %v1229 = vsel %vm170, %v513, 0
        %v1232 = vsel %vm170, %v525, 0
        %v1235 = vsel %vm170, %v537, 0
        %v1238 = vsel %vm170, %v549, 0
        %v1241 = vsel %vm170, %v561, 0
        %v1244 = vsel %vm170, %v573, 0
        %v1247 = vand.u32 %v1221, %v845
        %1249 = vmatprep.subr.bf16.mxu0 0
        %1250 = vmatpush1.bf16.msra.mxu0 %v1247
        %1251 = vmatprep.subr.bf16.mxu0 0
        %1252 = vmatpush1.bf16.msra.mxu0 0
        %1253 = vmatprep.subr.bf16.mxu0 0
        %1254 = vmatpush1.bf16.msra.mxu0 0
        %1255 = vmatprep.subr.bf16.mxu0 0
        %1256 = vmatpush1.bf16.msra.mxu0 0
        %1257 = vmatprep.subr.bf16.mxu0 0
        %1258 = vmatpush1.bf16.msra.mxu0 0
        %1259 = vmatprep.subr.bf16.mxu0 0
        %1260 = vmatpush1.bf16.msra.mxu0 0
        %1261 = vmatprep.subr.bf16.mxu0 0
        %1262 = vmatpush1.bf16.msra.mxu0 0
        %1263 = vmatprep.subr.bf16.mxu0 0
        %1264 = vmatpush1.bf16.msra.mxu0 0
        %1265 = vmatprep.subr.bf16.mxu0 0
        %1266 = vmatpush1.bf16.msra.mxu0 0
        %1267 = vmatprep.subr.bf16.mxu0 0
        %1268 = vmatpush1.bf16.msra.mxu0 0
        %1269 = vmatprep.subr.bf16.mxu0 0
        %1270 = vmatpush1.bf16.msra.mxu0 0
        %1271 = vmatprep.subr.bf16.mxu0 0
        %1272 = vmatpush1.bf16.msra.mxu0 0
        %1273 = vmatprep.subr.bf16.mxu0 0
        %1274 = vmatpush1.bf16.msra.mxu0 0
        %1275 = vmatprep.subr.bf16.mxu0 0
        %1276 = vmatpush1.bf16.msra.mxu0 0
        %1277 = vmatprep.subr.bf16.mxu0 0
        %1278 = vmatpush1.bf16.msra.mxu0 0
        %1279 = vmatprep.subr.bf16.mxu0 0
        %1280 = vmatpush1.bf16.msra.mxu0 0
        %1281 = vmatprep.mubr.bf16.mxu0 0
        %1282 = vmatmul.mubr.bf16.gmra.mrb[0].mxu0 %v1223
        %v1283 = vpop.f32.mrb[0].mxu0
        %v1284 = vadd.f32 0.0, %v1283
        %v1285 = vpop.f32.mrb[0].mxu0
        %v1286 = vpop.f32.mrb[0].mxu0
        %v1287 = vadd.f32 0.0, %v1286
        %v1288 = vpop.f32.mrb[0].mxu0
        %1289 = vmatprep.mubr.bf16.mxu0 0
        %1290 = vmatmul.mubr.bf16.gmra.mrb[0].mxu0 %v1226
        %v1291 = vpop.f32.mrb[0].mxu0
        %v1292 = vadd.f32 0.0, %v1291
        %v1293 = vpop.f32.mrb[0].mxu0
        %v1294 = vpop.f32.mrb[0].mxu0
        %v1295 = vadd.f32 0.0, %v1294
        %v1296 = vpop.f32.mrb[0].mxu0
        %1297 = vmatprep.mubr.bf16.mxu0 0
        %1298 = vmatmul.mubr.bf16.gmra.mrb[0].mxu0 %v1229
        %v1299 = vpop.f32.mrb[0].mxu0
        %v1300 = vadd.f32 0.0, %v1299
        %v1301 = vpop.f32.mrb[0].mxu0
        %v1302 = vpop.f32.mrb[0].mxu0
        %v1303 = vadd.f32 0.0, %v1302
        %v1304 = vpop.f32.mrb[0].mxu0
        %1305 = vmatprep.mubr.bf16.mxu0 0
        %1306 = vmatmul.mubr.bf16.gmra.mrb[0].mxu0 %v1232
        %v1307 = vpop.f32.mrb[0].mxu0
        %v1308 = vadd.f32 0.0, %v1307
        %v1309 = vpop.f32.mrb[0].mxu0
        %v1310 = vpop.f32.mrb[0].mxu0
        %v1311 = vadd.f32 0.0, %v1310
        %v1312 = vpop.f32.mrb[0].mxu0
        %1313 = vmatprep.mubr.bf16.mxu0 0
        %1314 = vmatmul.mubr.bf16.gmra.mrb[0].mxu0 %v1235
        %v1315 = vpop.f32.mrb[0].mxu0
        %v1316 = vadd.f32 0.0, %v1315
        %v1317 = vpop.f32.mrb[0].mxu0
        %v1318 = vpop.f32.mrb[0].mxu0
        %v1319 = vadd.f32 0.0, %v1318
        %v1320 = vpop.f32.mrb[0].mxu0
        %1321 = vmatprep.mubr.bf16.mxu0 0
        %1322 = vmatmul.mubr.bf16.gmra.mrb[0].mxu0 %v1238
        %v1323 = vpop.f32.mrb[0].mxu0
        %v1324 = vadd.f32 0.0, %v1323
        %v1325 = vpop.f32.mrb[0].mxu0
        %v1326 = vpop.f32.mrb[0].mxu0
        %v1327 = vadd.f32 0.0, %v1326
        %v1328 = vpop.f32.mrb[0].mxu0
        %1329 = vmatprep.mubr.bf16.mxu0 0
        %1330 = vmatmul.mubr.bf16.gmra.mrb[0].mxu0 %v1241
        %v1331 = vpop.f32.mrb[0].mxu0
        %v1332 = vadd.f32 0.0, %v1331
        %v1333 = vpop.f32.mrb[0].mxu0
        %v1334 = vpop.f32.mrb[0].mxu0
        %v1335 = vadd.f32 0.0, %v1334
        %v1336 = vpop.f32.mrb[0].mxu0
        %1337 = vmatprep.mubr.bf16.mxu0 0
        %1338 = vmatmul.mubr.bf16.gmra.mrb[0].mxu0 %v1244
        %v1339 = vpop.f32.mrb[0].mxu0
        %v1340 = vadd.f32 0.0, %v1339
        %v1341 = vpop.f32.mrb[0].mxu0
        %v1342 = vpop.f32.mrb[0].mxu0
        %v1343 = vadd.f32 0.0, %v1342
        %v1344 = vpop.f32.mrb[0].mxu0
        %1345 = vdwg.mxu0
        %v1346 = vadd.f32 %v1198, %v1284
        %v1347 = vadd.f32 %v1199, %v1287
        %v1348 = vadd.f32 %v1200, %v1292
        %v1349 = vadd.f32 %v1201, %v1295
        %v1350 = vadd.f32 %v1202, %v1300
        %v1351 = vadd.f32 %v1203, %v1303
        %v1352 = vadd.f32 %v1204, %v1308
        %v1353 = vadd.f32 %v1205, %v1311
        %v1354 = vadd.f32 %v1206, %v1316
        %v1355 = vadd.f32 %v1207, %v1319
        %v1356 = vadd.f32 %v1208, %v1324
        %v1357 = vadd.f32 %v1209, %v1327
        %v1358 = vadd.f32 %v1210, %v1332
        %v1359 = vadd.f32 %v1211, %v1335
        %v1360 = vadd.f32 %v1212, %v1340
        %v1361 = vadd.f32 %v1213, %v1343
        %v1362 = vrot.slane %v1214, 2
        %v1363 = vsel %vm170, %v463, 0
        %v1365 = vsel %vm170, %v465, 0
        %v1367 = vsel %vm170, %v467, 0
        %v1369 = vsel %vm170, %v469, 0
        %v1371 = vsel %vm170, %v471, 0
        %v1373 = vsel %vm170, %v473, 0
        %v1375 = vsel %vm170, %v475, 0
        %v1377 = vsel %vm170, %v477, 0
        %v1380 = vand.u32 %v1362, %v845
        %1382 = vmatprep.subr.bf16.mxu0 0
        %1383 = vmatpush1.bf16.msra.mxu0 %v1380
        %1384 = vmatprep.subr.bf16.mxu0 0
        %1385 = vmatpush1.bf16.msra.mxu0 0
        %1386 = vmatprep.subr.bf16.mxu0 0
        %1387 = vmatpush1.bf16.msra.mxu0 0
        %1388 = vmatprep.subr.bf16.mxu0 0
        %1389 = vmatpush1.bf16.msra.mxu0 0
        %1390 = vmatprep.subr.bf16.mxu0 0
        %1391 = vmatpush1.bf16.msra.mxu0 0
        %1392 = vmatprep.subr.bf16.mxu0 0
        %1393 = vmatpush1.bf16.msra.mxu0 0
        %1394 = vmatprep.subr.bf16.mxu0 0
        %1395 = vmatpush1.bf16.msra.mxu0 0
        %1396 = vmatprep.subr.bf16.mxu0 0
        %1397 = vmatpush1.bf16.msra.mxu0 0
        %1398 = vmatprep.subr.bf16.mxu0 0
        %1399 = vmatpush1.bf16.msra.mxu0 0
        %1400 = vmatprep.subr.bf16.mxu0 0
        %1401 = vmatpush1.bf16.msra.mxu0 0
        %1402 = vmatprep.subr.bf16.mxu0 0
        %1403 = vmatpush1.bf16.msra.mxu0 0
        %1404 = vmatprep.subr.bf16.mxu0 0
        %1405 = vmatpush1.bf16.msra.mxu0 0
        %1406 = vmatprep.subr.bf16.mxu0 0
        %1407 = vmatpush1.bf16.msra.mxu0 0
        %1408 = vmatprep.subr.bf16.mxu0 0
        %1409 = vmatpush1.bf16.msra.mxu0 0
        %1410 = vmatprep.subr.bf16.mxu0 0
        %1411 = vmatpush1.bf16.msra.mxu0 0
        %1412 = vmatprep.subr.bf16.mxu0 0
        %1413 = vmatpush1.bf16.msra.mxu0 0
        %1414 = vmatprep.mubr.bf16.mxu0 0
        %1415 = vmatmul.mubr.bf16.gmra.mrb[0].mxu0 %v1363
        %v1416 = vpop.f32.mrb[0].mxu0
        %v1417 = vadd.f32 0.0, %v1416
        %v1418 = vpop.f32.mrb[0].mxu0
        %v1419 = vpop.f32.mrb[0].mxu0
        %v1420 = vadd.f32 0.0, %v1419
        %v1421 = vpop.f32.mrb[0].mxu0
        %1422 = vmatprep.mubr.bf16.mxu0 0
        %1423 = vmatmul.mubr.bf16.gmra.mrb[0].mxu0 %v1365
        %v1424 = vpop.f32.mrb[0].mxu0
        %v1425 = vadd.f32 0.0, %v1424
        %v1426 = vpop.f32.mrb[0].mxu0
        %v1427 = vpop.f32.mrb[0].mxu0
        %v1428 = vadd.f32 0.0, %v1427
        %v1429 = vpop.f32.mrb[0].mxu0
        %1430 = vmatprep.mubr.bf16.mxu0 0
        %1431 = vmatmul.mubr.bf16.gmra.mrb[0].mxu0 %v1367
        %v1432 = vpop.f32.mrb[0].mxu0
        %v1433 = vadd.f32 0.0, %v1432
        %v1434 = vpop.f32.mrb[0].mxu0
        %v1435 = vpop.f32.mrb[0].mxu0
        %v1436 = vadd.f32 0.0, %v1435
        %v1437 = vpop.f32.mrb[0].mxu0
        %1438 = vmatprep.mubr.bf16.mxu0 0
        %1439 = vmatmul.mubr.bf16.gmra.mrb[0].mxu0 %v1369
        %v1440 = vpop.f32.mrb[0].mxu0
        %v1441 = vadd.f32 0.0, %v1440
        %v1442 = vpop.f32.mrb[0].mxu0
        %v1443 = vpop.f32.mrb[0].mxu0
        %v1444 = vadd.f32 0.0, %v1443
        %v1445 = vpop.f32.mrb[0].mxu0
        %1446 = vmatprep.mubr.bf16.mxu0 0
        %1447 = vmatmul.mubr.bf16.gmra.mrb[0].mxu0 %v1371
        %v1448 = vpop.f32.mrb[0].mxu0
        %v1449 = vadd.f32 0.0, %v1448
        %v1450 = vpop.f32.mrb[0].mxu0
        %v1451 = vpop.f32.mrb[0].mxu0
        %v1452 = vadd.f32 0.0, %v1451
        %v1453 = vpop.f32.mrb[0].mxu0
        %1454 = vmatprep.mubr.bf16.mxu0 0
        %1455 = vmatmul.mubr.bf16.gmra.mrb[0].mxu0 %v1373
        %v1456 = vpop.f32.mrb[0].mxu0
        %v1457 = vadd.f32 0.0, %v1456
        %v1458 = vpop.f32.mrb[0].mxu0
        %v1459 = vpop.f32.mrb[0].mxu0
        %v1460 = vadd.f32 0.0, %v1459
        %v1461 = vpop.f32.mrb[0].mxu0
        %1462 = vmatprep.mubr.bf16.mxu0 0
        %1463 = vmatmul.mubr.bf16.gmra.mrb[0].mxu0 %v1375
        %v1464 = vpop.f32.mrb[0].mxu0
        %v1465 = vadd.f32 0.0, %v1464
        %v1466 = vpop.f32.mrb[0].mxu0
        %v1467 = vpop.f32.mrb[0].mxu0
        %v1468 = vadd.f32 0.0, %v1467
        %v1469 = vpop.f32.mrb[0].mxu0
        %1470 = vmatprep.mubr.bf16.mxu0 0
        %1471 = vmatmul.mubr.bf16.gmra.mrb[0].mxu0 %v1377
        %v1472 = vpop.f32.mrb[0].mxu0
        %v1473 = vadd.f32 0.0, %v1472
        %v1474 = vpop.f32.mrb[0].mxu0
        %v1475 = vpop.f32.mrb[0].mxu0
        %v1476 = vadd.f32 0.0, %v1475
        %v1477 = vpop.f32.mrb[0].mxu0
        %1478 = vdwg.mxu0
        %v1479 = vadd.f32 %v1346, %v1417
        %v1480 = vadd.f32 %v1347, %v1420
        %v1481 = vadd.f32 %v1348, %v1425
        %v1482 = vadd.f32 %v1349, %v1428
        %v1483 = vadd.f32 %v1350, %v1433
        %v1484 = vadd.f32 %v1351, %v1436
        %v1485 = vadd.f32 %v1352, %v1441
        %v1486 = vadd.f32 %v1353, %v1444
        %v1487 = vadd.f32 %v1354, %v1449
        %v1488 = vadd.f32 %v1355, %v1452
        %v1489 = vadd.f32 %v1356, %v1457
        %v1490 = vadd.f32 %v1357, %v1460
        %v1491 = vadd.f32 %v1358, %v1465
        %v1492 = vadd.f32 %v1359, %v1468
        %v1493 = vadd.f32 %v1360, %v1473
        %v1494 = vadd.f32 %v1361, %v1476
        %v1496 = vunpack.c.l.b16 %v281
        %v1497 = vpack.c.b16 %v1496, %v1071
        %v1499 = vshrl.u32 %v1497, 16
        %v1501 = vrot.slane %v1499, 3
        %v1502 = vshll.u32 %v1497, 16
        %v1504 = vrot.slane %v1502, 4
        %v1505 = vor.u32 %v1501, %v1504
        %v1507 = vsel %vm170, %v588, 0
        %v1510 = vsel %vm170, %v595, 0
        %v1513 = vsel %vm170, %v602, 0
        %v1516 = vsel %vm170, %v609, 0
        %v1519 = vsel %vm170, %v616, 0
        %v1522 = vsel %vm170, %v623, 0
        %v1525 = vsel %vm170, %v630, 0
        %v1528 = vsel %vm170, %v637, 0
        %v1531 = vand.u32 %v1505, %v845
        %1533 = vmatprep.subr.bf16.mxu0 0
        %1534 = vmatpush1.bf16.msra.mxu0 %v1531
        %1535 = vmatprep.subr.bf16.mxu0 0
        %1536 = vmatpush1.bf16.msra.mxu0 0
        %1537 = vmatprep.subr.bf16.mxu0 0
        %1538 = vmatpush1.bf16.msra.mxu0 0
        %1539 = vmatprep.subr.bf16.mxu0 0
        %1540 = vmatpush1.bf16.msra.mxu0 0
        %1541 = vmatprep.subr.bf16.mxu0 0
        %1542 = vmatpush1.bf16.msra.mxu0 0
        %1543 = vmatprep.subr.bf16.mxu0 0
        %1544 = vmatpush1.bf16.msra.mxu0 0
        %1545 = vmatprep.subr.bf16.mxu0 0
        %1546 = vmatpush1.bf16.msra.mxu0 0
        %1547 = vmatprep.subr.bf16.mxu0 0
        %1548 = vmatpush1.bf16.msra.mxu0 0
        %1549 = vmatprep.subr.bf16.mxu0 0
        %1550 = vmatpush1.bf16.msra.mxu0 0
        %1551 = vmatprep.subr.bf16.mxu0 0
        %1552 = vmatpush1.bf16.msra.mxu0 0
        %1553 = vmatprep.subr.bf16.mxu0 0
        %1554 = vmatpush1.bf16.msra.mxu0 0
        %1555 = vmatprep.subr.bf16.mxu0 0
        %1556 = vmatpush1.bf16.msra.mxu0 0
        %1557 = vmatprep.subr.bf16.mxu0 0
        %1558 = vmatpush1.bf16.msra.mxu0 0
        %1559 = vmatprep.subr.bf16.mxu0 0
        %1560 = vmatpush1.bf16.msra.mxu0 0
        %1561 = vmatprep.subr.bf16.mxu0 0
        %1562 = vmatpush1.bf16.msra.mxu0 0
        %1563 = vmatprep.subr.bf16.mxu0 0
        %1564 = vmatpush1.bf16.msra.mxu0 0
        %1565 = vmatprep.mubr.bf16.mxu0 0
        %1566 = vmatmul.mubr.bf16.gmra.mrb[0].mxu0 %v1507
        %v1567 = vpop.f32.mrb[0].mxu0
        %v1568 = vadd.f32 0.0, %v1567
        %v1569 = vpop.f32.mrb[0].mxu0
        %v1570 = vpop.f32.mrb[0].mxu0
        %v1571 = vadd.f32 0.0, %v1570
        %v1572 = vpop.f32.mrb[0].mxu0
        %1573 = vmatprep.mubr.bf16.mxu0 0
        %1574 = vmatmul.mubr.bf16.gmra.mrb[0].mxu0 %v1510
        %v1575 = vpop.f32.mrb[0].mxu0
        %v1576 = vadd.f32 0.0, %v1575
        %v1577 = vpop.f32.mrb[0].mxu0
        %v1578 = vpop.f32.mrb[0].mxu0
        %v1579 = vadd.f32 0.0, %v1578
        %v1580 = vpop.f32.mrb[0].mxu0
        %1581 = vmatprep.mubr.bf16.mxu0 0
        %1582 = vmatmul.mubr.bf16.gmra.mrb[0].mxu0 %v1513
        %v1583 = vpop.f32.mrb[0].mxu0
        %v1584 = vadd.f32 0.0, %v1583
        %v1585 = vpop.f32.mrb[0].mxu0
        %v1586 = vpop.f32.mrb[0].mxu0
        %v1587 = vadd.f32 0.0, %v1586
        %v1588 = vpop.f32.mrb[0].mxu0
        %1589 = vmatprep.mubr.bf16.mxu0 0
        %1590 = vmatmul.mubr.bf16.gmra.mrb[0].mxu0 %v1516
        %v1591 = vpop.f32.mrb[0].mxu0
        %v1592 = vadd.f32 0.0, %v1591
        %v1593 = vpop.f32.mrb[0].mxu0
        %v1594 = vpop.f32.mrb[0].mxu0
        %v1595 = vadd.f32 0.0, %v1594
        %v1596 = vpop.f32.mrb[0].mxu0
        %1597 = vmatprep.mubr.bf16.mxu0 0
        %1598 = vmatmul.mubr.bf16.gmra.mrb[0].mxu0 %v1519
        %v1599 = vpop.f32.mrb[0].mxu0
        %v1600 = vadd.f32 0.0, %v1599
        %v1601 = vpop.f32.mrb[0].mxu0
        %v1602 = vpop.f32.mrb[0].mxu0
        %v1603 = vadd.f32 0.0, %v1602
        %v1604 = vpop.f32.mrb[0].mxu0
        %1605 = vmatprep.mubr.bf16.mxu0 0
        %1606 = vmatmul.mubr.bf16.gmra.mrb[0].mxu0 %v1522
        %v1607 = vpop.f32.mrb[0].mxu0
        %v1608 = vadd.f32 0.0, %v1607
        %v1609 = vpop.f32.mrb[0].mxu0
        %v1610 = vpop.f32.mrb[0].mxu0
        %v1611 = vadd.f32 0.0, %v1610
        %v1612 = vpop.f32.mrb[0].mxu0
        %1613 = vmatprep.mubr.bf16.mxu0 0
        %1614 = vmatmul.mubr.bf16.gmra.mrb[0].mxu0 %v1525
        %v1615 = vpop.f32.mrb[0].mxu0
        %v1616 = vadd.f32 0.0, %v1615
        %v1617 = vpop.f32.mrb[0].mxu0
        %v1618 = vpop.f32.mrb[0].mxu0
        %v1619 = vadd.f32 0.0, %v1618
        %v1620 = vpop.f32.mrb[0].mxu0
        %1621 = vmatprep.mubr.bf16.mxu0 0
        %1622 = vmatmul.mubr.bf16.gmra.mrb[0].mxu0 %v1528
        %v1623 = vpop.f32.mrb[0].mxu0
        %v1624 = vadd.f32 0.0, %v1623
        %v1625 = vpop.f32.mrb[0].mxu0
        %v1626 = vpop.f32.mrb[0].mxu0
        %v1627 = vadd.f32 0.0, %v1626
        %v1628 = vpop.f32.mrb[0].mxu0
        %1629 = vdwg.mxu0
        %v1630 = vadd.f32 %v1479, %v1568
        %v1631 = vadd.f32 %v1480, %v1571
        %v1632 = vadd.f32 %v1481, %v1576
        %v1633 = vadd.f32 %v1482, %v1579
        %v1634 = vadd.f32 %v1483, %v1584
        %v1635 = vadd.f32 %v1484, %v1587
        %v1636 = vadd.f32 %v1485, %v1592
        %v1637 = vadd.f32 %v1486, %v1595
        %v1638 = vadd.f32 %v1487, %v1600
        %v1639 = vadd.f32 %v1488, %v1603
        %v1640 = vadd.f32 %v1489, %v1608
        %v1641 = vadd.f32 %v1490, %v1611
        %v1642 = vadd.f32 %v1491, %v1616
        %v1643 = vadd.f32 %v1492, %v1619
        %v1644 = vadd.f32 %v1493, %v1624
        %v1645 = vadd.f32 %v1494, %v1627
        %v1646 = vpack.c.b16 %v1496, %v1496
        %v1647 = vrot.slane %v1646, 1
        %v1649 = vsel %vm170, %v666, 0
        %v1652 = vsel %vm170, %v678, 0
        %v1655 = vsel %vm170, %v690, 0
        %v1658 = vsel %vm170, %v702, 0
        %v1661 = vsel %vm170, %v714, 0
        %v1664 = vsel %vm170, %v726, 0
        %v1667 = vsel %vm170, %v738, 0
        %v1670 = vsel %vm170, %v750, 0
        %v1673 = vand.u32 %v1647, %v845
        %1675 = vmatprep.subr.bf16.mxu0 0
        %1676 = vmatpush1.bf16.msra.mxu0 %v1673
        %1677 = vmatprep.subr.bf16.mxu0 0
        %1678 = vmatpush1.bf16.msra.mxu0 0
        %1679 = vmatprep.subr.bf16.mxu0 0
        %1680 = vmatpush1.bf16.msra.mxu0 0
        %1681 = vmatprep.subr.bf16.mxu0 0
        %1682 = vmatpush1.bf16.msra.mxu0 0
        %1683 = vmatprep.subr.bf16.mxu0 0
        %1684 = vmatpush1.bf16.msra.mxu0 0
        %1685 = vmatprep.subr.bf16.mxu0 0
        %1686 = vmatpush1.bf16.msra.mxu0 0
        %1687 = vmatprep.subr.bf16.mxu0 0
        %1688 = vmatpush1.bf16.msra.mxu0 0
        %1689 = vmatprep.subr.bf16.mxu0 0
        %1690 = vmatpush1.bf16.msra.mxu0 0
        %1691 = vmatprep.subr.bf16.mxu0 0
        %1692 = vmatpush1.bf16.msra.mxu0 0
        %1693 = vmatprep.subr.bf16.mxu0 0
        %1694 = vmatpush1.bf16.msra.mxu0 0
        %1695 = vmatprep.subr.bf16.mxu0 0
        %1696 = vmatpush1.bf16.msra.mxu0 0
        %1697 = vmatprep.subr.bf16.mxu0 0
        %1698 = vmatpush1.bf16.msra.mxu0 0
        %1699 = vmatprep.subr.bf16.mxu0 0
        %1700 = vmatpush1.bf16.msra.mxu0 0
        %1701 = vmatprep.subr.bf16.mxu0 0
        %1702 = vmatpush1.bf16.msra.mxu0 0
        %1703 = vmatprep.subr.bf16.mxu0 0
        %1704 = vmatpush1.bf16.msra.mxu0 0
        %1705 = vmatprep.subr.bf16.mxu0 0
        %1706 = vmatpush1.bf16.msra.mxu0 0
        %1707 = vmatprep.mubr.bf16.mxu0 0
        %1708 = vmatmul.mubr.bf16.gmra.mrb[0].mxu0 %v1649
        %v1709 = vpop.f32.mrb[0].mxu0
        %v1710 = vadd.f32 0.0, %v1709
        %v1711 = vpop.f32.mrb[0].mxu0
        %v1712 = vpop.f32.mrb[0].mxu0
        %v1713 = vadd.f32 0.0, %v1712
        %v1714 = vpop.f32.mrb[0].mxu0
        %1715 = vmatprep.mubr.bf16.mxu0 0
        %1716 = vmatmul.mubr.bf16.gmra.mrb[0].mxu0 %v1652
        %v1717 = vpop.f32.mrb[0].mxu0
        %v1718 = vadd.f32 0.0, %v1717
        %v1719 = vpop.f32.mrb[0].mxu0
        %v1720 = vpop.f32.mrb[0].mxu0
        %v1721 = vadd.f32 0.0, %v1720
        %v1722 = vpop.f32.mrb[0].mxu0
        %1723 = vmatprep.mubr.bf16.mxu0 0
        %1724 = vmatmul.mubr.bf16.gmra.mrb[0].mxu0 %v1655
        %v1725 = vpop.f32.mrb[0].mxu0
        %v1726 = vadd.f32 0.0, %v1725
        %v1727 = vpop.f32.mrb[0].mxu0
        %v1728 = vpop.f32.mrb[0].mxu0
        %v1729 = vadd.f32 0.0, %v1728
        %v1730 = vpop.f32.mrb[0].mxu0
        %1731 = vmatprep.mubr.bf16.mxu0 0
        %1732 = vmatmul.mubr.bf16.gmra.mrb[0].mxu0 %v1658
        %v1733 = vpop.f32.mrb[0].mxu0
        %v1734 = vadd.f32 0.0, %v1733
        %v1735 = vpop.f32.mrb[0].mxu0
        %v1736 = vpop.f32.mrb[0].mxu0
        %v1737 = vadd.f32 0.0, %v1736
        %v1738 = vpop.f32.mrb[0].mxu0
        %1739 = vmatprep.mubr.bf16.mxu0 0
        %1740 = vmatmul.mubr.bf16.gmra.mrb[0].mxu0 %v1661
        %v1741 = vpop.f32.mrb[0].mxu0
        %v1742 = vadd.f32 0.0, %v1741
        %v1743 = vpop.f32.mrb[0].mxu0
        %v1744 = vpop.f32.mrb[0].mxu0
        %v1745 = vadd.f32 0.0, %v1744
        %v1746 = vpop.f32.mrb[0].mxu0
        %1747 = vmatprep.mubr.bf16.mxu0 0
        %1748 = vmatmul.mubr.bf16.gmra.mrb[0].mxu0 %v1664
        %v1749 = vpop.f32.mrb[0].mxu0
        %v1750 = vadd.f32 0.0, %v1749
        %v1751 = vpop.f32.mrb[0].mxu0
        %v1752 = vpop.f32.mrb[0].mxu0
        %v1753 = vadd.f32 0.0, %v1752
        %v1754 = vpop.f32.mrb[0].mxu0
        %1755 = vmatprep.mubr.bf16.mxu0 0
        %1756 = vmatmul.mubr.bf16.gmra.mrb[0].mxu0 %v1667
        %v1757 = vpop.f32.mrb[0].mxu0
        %v1758 = vadd.f32 0.0, %v1757
        %v1759 = vpop.f32.mrb[0].mxu0
        %v1760 = vpop.f32.mrb[0].mxu0
        %v1761 = vadd.f32 0.0, %v1760
        %v1762 = vpop.f32.mrb[0].mxu0
        %1763 = vmatprep.mubr.bf16.mxu0 0
        %1764 = vmatmul.mubr.bf16.gmra.mrb[0].mxu0 %v1670
        %v1765 = vpop.f32.mrb[0].mxu0
        %v1766 = vadd.f32 0.0, %v1765
        %v1767 = vpop.f32.mrb[0].mxu0
        %v1768 = vpop.f32.mrb[0].mxu0
        %v1769 = vadd.f32 0.0, %v1768
        %v1770 = vpop.f32.mrb[0].mxu0
        %1771 = vdwg.mxu0
        %v1772 = vadd.f32 %v1630, %v1710
        %v1773 = vadd.f32 %v1631, %v1713
        %v1774 = vadd.f32 %v1632, %v1718
        %v1775 = vadd.f32 %v1633, %v1721
        %v1776 = vadd.f32 %v1634, %v1726
        %v1777 = vadd.f32 %v1635, %v1729
        %v1778 = vadd.f32 %v1636, %v1734
        %v1779 = vadd.f32 %v1637, %v1737
        %v1780 = vadd.f32 %v1638, %v1742
        %v1781 = vadd.f32 %v1639, %v1745
        %v1782 = vadd.f32 %v1640, %v1750
        %v1783 = vadd.f32 %v1641, %v1753
        %v1784 = vadd.f32 %v1642, %v1758
        %v1785 = vadd.f32 %v1643, %v1761
        %v1786 = vadd.f32 %v1644, %v1766
        %v1787 = vadd.f32 %v1645, %v1769
        %v1789 = vshrl.u32 %v1646, 16
        %v1791 = vrot.slane %v1789, 2
        %v1792 = vshll.u32 %v1646, 16
        %v1794 = vrot.slane %v1792, 3
        %v1795 = vor.u32 %v1791, %v1794
        %v1796 = vsel %vm170, %v640, 0
        %v1798 = vsel %vm170, %v642, 0
        %v1800 = vsel %vm170, %v644, 0
        %v1802 = vsel %vm170, %v646, 0
        %v1804 = vsel %vm170, %v648, 0
        %v1806 = vsel %vm170, %v650, 0
        %v1808 = vsel %vm170, %v652, 0
        %v1810 = vsel %vm170, %v654, 0
        %v1813 = vand.u32 %v1795, %v845
        %1815 = vmatprep.subr.bf16.mxu0 0
        %1816 = vmatpush1.bf16.msra.mxu0 %v1813
        %1817 = vmatprep.subr.bf16.mxu0 0
        %1818 = vmatpush1.bf16.msra.mxu0 0
        %1819 = vmatprep.subr.bf16.mxu0 0
        %1820 = vmatpush1.bf16.msra.mxu0 0
        %1821 = vmatprep.subr.bf16.mxu0 0
        %1822 = vmatpush1.bf16.msra.mxu0 0
        %1823 = vmatprep.subr.bf16.mxu0 0
        %1824 = vmatpush1.bf16.msra.mxu0 0
        %1825 = vmatprep.subr.bf16.mxu0 0
        %1826 = vmatpush1.bf16.msra.mxu0 0
        %1827 = vmatprep.subr.bf16.mxu0 0
        %1828 = vmatpush1.bf16.msra.mxu0 0
        %1829 = vmatprep.subr.bf16.mxu0 0
        %1830 = vmatpush1.bf16.msra.mxu0 0
        %1831 = vmatprep.subr.bf16.mxu0 0
        %1832 = vmatpush1.bf16.msra.mxu0 0
        %1833 = vmatprep.subr.bf16.mxu0 0
        %1834 = vmatpush1.bf16.msra.mxu0 0
        %1835 = vmatprep.subr.bf16.mxu0 0
        %1836 = vmatpush1.bf16.msra.mxu0 0
        %1837 = vmatprep.subr.bf16.mxu0 0
        %1838 = vmatpush1.bf16.msra.mxu0 0
        %1839 = vmatprep.subr.bf16.mxu0 0
        %1840 = vmatpush1.bf16.msra.mxu0 0
        %1841 = vmatprep.subr.bf16.mxu0 0
        %1842 = vmatpush1.bf16.msra.mxu0 0
        %1843 = vmatprep.subr.bf16.mxu0 0
        %1844 = vmatpush1.bf16.msra.mxu0 0
        %1845 = vmatprep.subr.bf16.mxu0 0
        %1846 = vmatpush1.bf16.msra.mxu0 0
        %1847 = vmatprep.mubr.bf16.mxu0 0
        %1848 = vmatmul.mubr.bf16.gmra.mrb[0].mxu0 %v1796
        %v1849 = vpop.f32.mrb[0].mxu0
        %v1850 = vadd.f32 0.0, %v1849
        %v1851 = vpop.f32.mrb[0].mxu0
        %v1852 = vpop.f32.mrb[0].mxu0
        %v1853 = vadd.f32 0.0, %v1852
        %v1854 = vpop.f32.mrb[0].mxu0
        %1855 = vmatprep.mubr.bf16.mxu0 0
        %1856 = vmatmul.mubr.bf16.gmra.mrb[0].mxu0 %v1798
        %v1857 = vpop.f32.mrb[0].mxu0
        %v1858 = vadd.f32 0.0, %v1857
        %v1859 = vpop.f32.mrb[0].mxu0
        %v1860 = vpop.f32.mrb[0].mxu0
        %v1861 = vadd.f32 0.0, %v1860
        %v1862 = vpop.f32.mrb[0].mxu0
        %1863 = vmatprep.mubr.bf16.mxu0 0
        %1864 = vmatmul.mubr.bf16.gmra.mrb[0].mxu0 %v1800
        %v1865 = vpop.f32.mrb[0].mxu0
        %v1866 = vadd.f32 0.0, %v1865
        %v1867 = vpop.f32.mrb[0].mxu0
        %v1868 = vpop.f32.mrb[0].mxu0
        %v1869 = vadd.f32 0.0, %v1868
        %v1870 = vpop.f32.mrb[0].mxu0
        %1871 = vmatprep.mubr.bf16.mxu0 0
        %1872 = vmatmul.mubr.bf16.gmra.mrb[0].mxu0 %v1802
        %v1873 = vpop.f32.mrb[0].mxu0
        %v1874 = vadd.f32 0.0, %v1873
        %v1875 = vpop.f32.mrb[0].mxu0
        %v1876 = vpop.f32.mrb[0].mxu0
        %v1877 = vadd.f32 0.0, %v1876
        %v1878 = vpop.f32.mrb[0].mxu0
        %1879 = vmatprep.mubr.bf16.mxu0 0
        %1880 = vmatmul.mubr.bf16.gmra.mrb[0].mxu0 %v1804
        %v1881 = vpop.f32.mrb[0].mxu0
        %v1882 = vadd.f32 0.0, %v1881
        %v1883 = vpop.f32.mrb[0].mxu0
        %v1884 = vpop.f32.mrb[0].mxu0
        %v1885 = vadd.f32 0.0, %v1884
        %v1886 = vpop.f32.mrb[0].mxu0
        %1887 = vmatprep.mubr.bf16.mxu0 0
        %1888 = vmatmul.mubr.bf16.gmra.mrb[0].mxu0 %v1806
        %v1889 = vpop.f32.mrb[0].mxu0
        %v1890 = vadd.f32 0.0, %v1889
        %v1891 = vpop.f32.mrb[0].mxu0
        %v1892 = vpop.f32.mrb[0].mxu0
        %v1893 = vadd.f32 0.0, %v1892
        %v1894 = vpop.f32.mrb[0].mxu0
        %1895 = vmatprep.mubr.bf16.mxu0 0
        %1896 = vmatmul.mubr.bf16.gmra.mrb[0].mxu0 %v1808
        %v1897 = vpop.f32.mrb[0].mxu0
        %v1898 = vadd.f32 0.0, %v1897
        %v1899 = vpop.f32.mrb[0].mxu0
        %v1900 = vpop.f32.mrb[0].mxu0
        %v1901 = vadd.f32 0.0, %v1900
        %v1902 = vpop.f32.mrb[0].mxu0
        %1903 = vmatprep.mubr.bf16.mxu0 0
        %1904 = vmatmul.mubr.bf16.gmra.mrb[0].mxu0 %v1810
        %v1905 = vpop.f32.mrb[0].mxu0
        %v1906 = vadd.f32 0.0, %v1905
        %v1907 = vpop.f32.mrb[0].mxu0
        %v1908 = vpop.f32.mrb[0].mxu0
        %v1909 = vadd.f32 0.0, %v1908
        %v1910 = vpop.f32.mrb[0].mxu0
        %1911 = vdwg.mxu0
        %v1912 = vadd.f32 %v1772, %v1850
        %v1913 = vadd.f32 %v1773, %v1853
        %v1914 = vadd.f32 %v1774, %v1858
        %v1915 = vadd.f32 %v1775, %v1861
        %v1916 = vadd.f32 %v1776, %v1866
        %v1917 = vadd.f32 %v1777, %v1869
        %v1918 = vadd.f32 %v1778, %v1874
        %v1919 = vadd.f32 %v1779, %v1877
        %v1920 = vadd.f32 %v1780, %v1882
        %v1921 = vadd.f32 %v1781, %v1885
        %v1922 = vadd.f32 %v1782, %v1890
        %v1923 = vadd.f32 %v1783, %v1893
        %v1924 = vadd.f32 %v1784, %v1898
        %v1925 = vadd.f32 %v1785, %v1901
        %v1926 = vadd.f32 %v1786, %v1906
        %v1927 = vadd.f32 %v1787, %v1909
        %v1929 = vsel %vm170, %v765, 0
        %v1932 = vsel %vm170, %v772, 0
        %v1935 = vsel %vm170, %v779, 0
        %v1938 = vsel %vm170, %v786, 0
        %v1941 = vsel %vm170, %v793, 0
        %v1944 = vsel %vm170, %v800, 0
        %v1947 = vsel %vm170, %v807, 0
        %v1950 = vsel %vm170, %v814, 0
        %v1953 = vand.u32 %v282, %v845
        %1955 = vmatprep.subr.bf16.mxu0 0
        %1956 = vmatpush1.bf16.msra.mxu0 %v1953
        %1957 = vmatprep.subr.bf16.mxu0 0
        %1958 = vmatpush1.bf16.msra.mxu0 0
        %1959 = vmatprep.subr.bf16.mxu0 0
        %1960 = vmatpush1.bf16.msra.mxu0 0
        %1961 = vmatprep.subr.bf16.mxu0 0
        %1962 = vmatpush1.bf16.msra.mxu0 0
        %1963 = vmatprep.subr.bf16.mxu0 0
        %1964 = vmatpush1.bf16.msra.mxu0 0
        %1965 = vmatprep.subr.bf16.mxu0 0
        %1966 = vmatpush1.bf16.msra.mxu0 0
        %1967 = vmatprep.subr.bf16.mxu0 0
        %1968 = vmatpush1.bf16.msra.mxu0 0
        %1969 = vmatprep.subr.bf16.mxu0 0
        %1970 = vmatpush1.bf16.msra.mxu0 0
        %1971 = vmatprep.subr.bf16.mxu0 0
        %1972 = vmatpush1.bf16.msra.mxu0 0
        %1973 = vmatprep.subr.bf16.mxu0 0
        %1974 = vmatpush1.bf16.msra.mxu0 0
        %1975 = vmatprep.subr.bf16.mxu0 0
        %1976 = vmatpush1.bf16.msra.mxu0 0
        %1977 = vmatprep.subr.bf16.mxu0 0
        %1978 = vmatpush1.bf16.msra.mxu0 0
        %1979 = vmatprep.subr.bf16.mxu0 0
        %1980 = vmatpush1.bf16.msra.mxu0 0
        %1981 = vmatprep.subr.bf16.mxu0 0
        %1982 = vmatpush1.bf16.msra.mxu0 0
        %1983 = vmatprep.subr.bf16.mxu0 0
        %1984 = vmatpush1.bf16.msra.mxu0 0
        %1985 = vmatprep.subr.bf16.mxu0 0
        %1986 = vmatpush1.bf16.msra.mxu0 0
        %1987 = vmatprep.mubr.bf16.mxu0 0
        %1988 = vmatmul.mubr.bf16.gmra.mrb[0].mxu0 %v1929
        %v1989 = vpop.f32.mrb[0].mxu0
        %v1990 = vadd.f32 0.0, %v1989
        %v1991 = vpop.f32.mrb[0].mxu0
        %v1992 = vpop.f32.mrb[0].mxu0
        %v1993 = vadd.f32 0.0, %v1992
        %v1994 = vpop.f32.mrb[0].mxu0
        %1995 = vmatprep.mubr.bf16.mxu0 0
        %1996 = vmatmul.mubr.bf16.gmra.mrb[0].mxu0 %v1932
        %v1997 = vpop.f32.mrb[0].mxu0
        %v1998 = vadd.f32 0.0, %v1997
        %v1999 = vpop.f32.mrb[0].mxu0
        %v2000 = vpop.f32.mrb[0].mxu0
        %v2001 = vadd.f32 0.0, %v2000
        %v2002 = vpop.f32.mrb[0].mxu0
        %2003 = vmatprep.mubr.bf16.mxu0 0
        %2004 = vmatmul.mubr.bf16.gmra.mrb[0].mxu0 %v1935
        %v2005 = vpop.f32.mrb[0].mxu0
        %v2006 = vadd.f32 0.0, %v2005
        %v2007 = vpop.f32.mrb[0].mxu0
        %v2008 = vpop.f32.mrb[0].mxu0
        %v2009 = vadd.f32 0.0, %v2008
        %v2010 = vpop.f32.mrb[0].mxu0
        %2011 = vmatprep.mubr.bf16.mxu0 0
        %2012 = vmatmul.mubr.bf16.gmra.mrb[0].mxu0 %v1938
        %v2013 = vpop.f32.mrb[0].mxu0
        %v2014 = vadd.f32 0.0, %v2013
        %v2015 = vpop.f32.mrb[0].mxu0
        %v2016 = vpop.f32.mrb[0].mxu0
        %v2017 = vadd.f32 0.0, %v2016
        %v2018 = vpop.f32.mrb[0].mxu0
        %2019 = vmatprep.mubr.bf16.mxu0 0
        %2020 = vmatmul.mubr.bf16.gmra.mrb[0].mxu0 %v1941
        %v2021 = vpop.f32.mrb[0].mxu0
        %v2022 = vadd.f32 0.0, %v2021
        %v2023 = vpop.f32.mrb[0].mxu0
        %v2024 = vpop.f32.mrb[0].mxu0
        %v2025 = vadd.f32 0.0, %v2024
        %v2026 = vpop.f32.mrb[0].mxu0
        %2027 = vmatprep.mubr.bf16.mxu0 0
        %2028 = vmatmul.mubr.bf16.gmra.mrb[0].mxu0 %v1944
        %v2029 = vpop.f32.mrb[0].mxu0
        %v2030 = vadd.f32 0.0, %v2029
        %v2031 = vpop.f32.mrb[0].mxu0
        %v2032 = vpop.f32.mrb[0].mxu0
        %v2033 = vadd.f32 0.0, %v2032
        %v2034 = vpop.f32.mrb[0].mxu0
        %2035 = vmatprep.mubr.bf16.mxu0 0
        %2036 = vmatmul.mubr.bf16.gmra.mrb[0].mxu0 %v1947
        %v2037 = vpop.f32.mrb[0].mxu0
        %v2038 = vadd.f32 0.0, %v2037
        %v2039 = vpop.f32.mrb[0].mxu0
        %v2040 = vpop.f32.mrb[0].mxu0
        %v2041 = vadd.f32 0.0, %v2040
        %v2042 = vpop.f32.mrb[0].mxu0
        %2043 = vmatprep.mubr.bf16.mxu0 0
        %2044 = vmatmul.mubr.bf16.gmra.mrb[0].mxu0 %v1950
        %v2045 = vpop.f32.mrb[0].mxu0
        %v2046 = vadd.f32 0.0, %v2045
        %v2047 = vpop.f32.mrb[0].mxu0
        %v2048 = vpop.f32.mrb[0].mxu0
        %v2049 = vadd.f32 0.0, %v2048
        %v2050 = vpop.f32.mrb[0].mxu0
        %2051 = vdwg.mxu0
        %v2052 = vadd.f32 %v1912, %v1990
        %v2053 = vadd.f32 %v1913, %v1993
        %v2054 = vadd.f32 %v1914, %v1998
        %v2055 = vadd.f32 %v1915, %v2001
        %v2056 = vadd.f32 %v1916, %v2006
        %v2057 = vadd.f32 %v1917, %v2009
        %v2058 = vadd.f32 %v1918, %v2014
        %v2059 = vadd.f32 %v1919, %v2017
        %v2060 = vadd.f32 %v1920, %v2022
        %v2061 = vadd.f32 %v1921, %v2025
        %v2062 = vadd.f32 %v1922, %v2030
        %v2063 = vadd.f32 %v1923, %v2033
        %v2064 = vadd.f32 %v1924, %v2038
        %v2065 = vadd.f32 %v1925, %v2041
        %v2066 = vadd.f32 %v1926, %v2046
        %v2067 = vadd.f32 %v1927, %v2049
        %v2069 = vlaneseq
        %v2070 = vshrl.u32 %v2069, 7
        %v2071 = vsub.s32 0, %v2070
        %v2072 = vrot.slane %v283, %v2071
        %v2074 = vadd.f32 %v2052, %v2072
        %v2075 = vadd.f32 %v2053, %v2072
        %v2076 = vadd.f32 %v2054, %v2072
        %v2077 = vadd.f32 %v2055, %v2072
        %v2078 = vadd.f32 %v2056, %v2072
        %v2079 = vadd.f32 %v2057, %v2072
        %v2080 = vadd.f32 %v2058, %v2072
        %v2081 = vadd.f32 %v2059, %v2072
        %v2082 = vadd.f32 %v2060, %v2072
        %v2083 = vadd.f32 %v2061, %v2072
        %v2084 = vadd.f32 %v2062, %v2072
        %v2085 = vadd.f32 %v2063, %v2072
        %v2086 = vadd.f32 %v2064, %v2072
        %v2087 = vadd.f32 %v2065, %v2072
        %v2088 = vadd.f32 %v2066, %v2072
        %v2089 = vadd.f32 %v2067, %v2072
        %vm2090 = vcmask 130048
        %2091 = vst.msk [vmem:[%s163] sm:$0xff] %vm2090, %v2074
        %2092 = vst.msk [vmem:[%s163 + $0x8] sm:$0xff] %vm2090, %v2075
        %2093 = vst.msk [vmem:[%s163 + $0x10] sm:$0xff] %vm2090, %v2076
        %2094 = vst.msk [vmem:[%s163 + $0x18] sm:$0xff] %vm2090, %v2077
        %2095 = vst.msk [vmem:[%s163 + $0x20] sm:$0xff] %vm2090, %v2078
        %2096 = vst.msk [vmem:[%s163 + $0x28] sm:$0xff] %vm2090, %v2079
        %2097 = vst.msk [vmem:[%s163 + $0x30] sm:$0xff] %vm2090, %v2080
        %2098 = vst.msk [vmem:[%s163 + $0x38] sm:$0xff] %vm2090, %v2081
        %2099 = vst.msk [vmem:[%s163 + $0x40] sm:$0xff] %vm2090, %v2082
        %2100 = vst.msk [vmem:[%s163 + $0x48] sm:$0xff] %vm2090, %v2083
        %2101 = vst.msk [vmem:[%s163 + $0x50] sm:$0xff] %vm2090, %v2084
        %2102 = vst.msk [vmem:[%s163 + $0x58] sm:$0xff] %vm2090, %v2085
        %2103 = vst.msk [vmem:[%s163 + $0x60] sm:$0xff] %vm2090, %v2086
        %2104 = vst.msk [vmem:[%s163 + $0x68] sm:$0xff] %vm2090, %v2087
        %2105 = vst.msk [vmem:[%s163 + $0x70] sm:$0xff] %vm2090, %v2088
        %2106 = vst.msk [vmem:[%s163 + $0x78] sm:$0xff] %vm2090, %v2089
        %s2107 = scalar_lea.vmem [#allocation2], 192
        %v2108 = vld [vmem:[%s2107] sm:$0x80]
        %v2109 = vld [vmem:[%s2107 + $0x8] sm:$0xff]
        %v2110 = vld [vmem:[%s2107 + $0x18] sm:$0x80]
        %v2111 = vld [vmem:[%s2107 + $0x20] sm:$0xff]
        %v2112 = vld [vmem:[%s2107 + $0x30] sm:$0x80]
        %v2113 = vld [vmem:[%s2107 + $0x38] sm:$0xff]
        %v2114 = vld [vmem:[%s2107 + $0x48] sm:$0x80]
        %v2115 = vld [vmem:[%s2107 + $0x50] sm:$0xff]
        %v2116 = vld [vmem:[%s2107 + $0x60] sm:$0x80]
        %v2117 = vld [vmem:[%s2107 + $0x68] sm:$0xff]
        %v2118 = vld [vmem:[%s2107 + $0x78] sm:$0x80]
        %v2119 = vld [vmem:[%s2107 + $0x80] sm:$0xff]
        %v2120 = vld [vmem:[%s2107 + $0x90] sm:$0x80]
        %v2121 = vld [vmem:[%s2107 + $0x98] sm:$0xff]
        %v2122 = vld [vmem:[%s2107 + $0xa8] sm:$0x80]
        %v2123 = vld [vmem:[%s2107 + $0xb0] sm:$0xff]
        %v2125 = vshrl.u32 %v2108, 16
        %v2127 = vrot.slane %v2125, 7
        %v2129 = vshrl.u32 %v2109, 16
        %v2131 = vrot.slane %v2129, 7
        %v2132 = vshll.u32 %v2109, 16
        %v2134 = vor.u32 %v2131, %v2132
        %v2135 = vsel %vm300, %v2127, %v2134
        %v2137 = vshrl.u32 %v2110, 16
        %v2139 = vrot.slane %v2137, 7
        %v2141 = vshrl.u32 %v2111, 16
        %v2143 = vrot.slane %v2141, 7
        %v2144 = vshll.u32 %v2111, 16
        %v2146 = vor.u32 %v2143, %v2144
        %v2147 = vsel %vm300, %v2139, %v2146
        %v2149 = vshrl.u32 %v2112, 16
        %v2151 = vrot.slane %v2149, 7
        %v2153 = vshrl.u32 %v2113, 16
        %v2155 = vrot.slane %v2153, 7
        %v2156 = vshll.u32 %v2113, 16
        %v2158 = vor.u32 %v2155, %v2156
        %v2159 = vsel %vm300, %v2151, %v2158
        %v2161 = vshrl.u32 %v2114, 16
        %v2163 = vrot.slane %v2161, 7
        %v2165 = vshrl.u32 %v2115, 16
        %v2167 = vrot.slane %v2165, 7
        %v2168 = vshll.u32 %v2115, 16
        %v2170 = vor.u32 %v2167, %v2168
        %v2171 = vsel %vm300, %v2163, %v2170
        %v2173 = vshrl.u32 %v2116, 16
        %v2175 = vrot.slane %v2173, 7
        %v2177 = vshrl.u32 %v2117, 16
        %v2179 = vrot.slane %v2177, 7
        %v2180 = vshll.u32 %v2117, 16
        %v2182 = vor.u32 %v2179, %v2180
        %v2183 = vsel %vm300, %v2175, %v2182
        %v2185 = vshrl.u32 %v2118, 16
        %v2187 = vrot.slane %v2185, 7
        %v2189 = vshrl.u32 %v2119, 16
        %v2191 = vrot.slane %v2189, 7
        %v2192 = vshll.u32 %v2119, 16
        %v2194 = vor.u32 %v2191, %v2192
        %v2195 = vsel %vm300, %v2187, %v2194
        %v2197 = vshrl.u32 %v2120, 16
        %v2199 = vrot.slane %v2197, 7
        %v2201 = vshrl.u32 %v2121, 16
        %v2203 = vrot.slane %v2201, 7
        %v2204 = vshll.u32 %v2121, 16
        %v2206 = vor.u32 %v2203, %v2204
        %v2207 = vsel %vm300, %v2199, %v2206
        %v2209 = vshrl.u32 %v2122, 16
        %v2211 = vrot.slane %v2209, 7
        %v2213 = vshrl.u32 %v2123, 16
        %v2215 = vrot.slane %v2213, 7
        %v2216 = vshll.u32 %v2123, 16
        %v2218 = vor.u32 %v2215, %v2216
        %v2219 = vsel %vm300, %v2211, %v2218
        %v2220 = vld [vmem:[%s2107 + $0x10] sm:$0x1]
        %v2221 = vld [vmem:[%s2107 + $0x28] sm:$0x1]
        %v2222 = vld [vmem:[%s2107 + $0x40] sm:$0x1]
        %v2223 = vld [vmem:[%s2107 + $0x58] sm:$0x1]
        %v2224 = vld [vmem:[%s2107 + $0x70] sm:$0x1]
        %v2225 = vld [vmem:[%s2107 + $0x88] sm:$0x1]
        %v2226 = vld [vmem:[%s2107 + $0xa0] sm:$0x1]
        %v2227 = vld [vmem:[%s2107 + $0xb8] sm:$0x1]
        %v2228 = vrot.slane %v2132, 1
        %v2229 = vor.u32 %v2129, %v2228
        %v2231 = vshll.u32 %v2220, 16
        %v2233 = vrot.slane %v2231, 1
        %v2234 = vsel %vm405, %v2229, %v2233
        %v2235 = vrot.slane %v2144, 1
        %v2236 = vor.u32 %v2141, %v2235
        %v2238 = vshll.u32 %v2221, 16
        %v2240 = vrot.slane %v2238, 1
        %v2241 = vsel %vm405, %v2236, %v2240
        %v2242 = vrot.slane %v2156, 1
        %v2243 = vor.u32 %v2153, %v2242
        %v2245 = vshll.u32 %v2222, 16
        %v2247 = vrot.slane %v2245, 1
        %v2248 = vsel %vm405, %v2243, %v2247
        %v2249 = vrot.slane %v2168, 1
        %v2250 = vor.u32 %v2165, %v2249
        %v2252 = vshll.u32 %v2223, 16
        %v2254 = vrot.slane %v2252, 1
        %v2255 = vsel %vm405, %v2250, %v2254
        %v2256 = vrot.slane %v2180, 1
        %v2257 = vor.u32 %v2177, %v2256
        %v2259 = vshll.u32 %v2224, 16
        %v2261 = vrot.slane %v2259, 1
        %v2262 = vsel %vm405, %v2257, %v2261
        %v2263 = vrot.slane %v2192, 1
        %v2264 = vor.u32 %v2189, %v2263
        %v2266 = vshll.u32 %v2225, 16
        %v2268 = vrot.slane %v2266, 1
        %v2269 = vsel %vm405, %v2264, %v2268
        %v2270 = vrot.slane %v2204, 1
        %v2271 = vor.u32 %v2201, %v2270
        %v2273 = vshll.u32 %v2226, 16
        %v2275 = vrot.slane %v2273, 1
        %v2276 = vsel %vm405, %v2271, %v2275
        %v2277 = vrot.slane %v2216, 1
        %v2278 = vor.u32 %v2213, %v2277
        %v2280 = vshll.u32 %v2227, 16
        %v2282 = vrot.slane %v2280, 1
        %v2283 = vsel %vm405, %v2278, %v2282
        %s2284 = scalar_lea.vmem [#allocation2], 216
        %v2285 = vld [vmem:[%s2284] sm:$0x80]
        %v2286 = vld [vmem:[%s2284 + $0x8] sm:$0xff]
        %v2287 = vld [vmem:[%s2284 + $0x18] sm:$0x80]
        %v2288 = vld [vmem:[%s2284 + $0x20] sm:$0xff]
        %v2289 = vld [vmem:[%s2284 + $0x30] sm:$0x80]
        %v2290 = vld [vmem:[%s2284 + $0x38] sm:$0xff]
        %v2291 = vld [vmem:[%s2284 + $0x48] sm:$0x80]
        %v2292 = vld [vmem:[%s2284 + $0x50] sm:$0xff]
        %v2293 = vld [vmem:[%s2284 + $0x60] sm:$0x80]
        %v2294 = vld [vmem:[%s2284 + $0x68] sm:$0xff]
        %v2295 = vld [vmem:[%s2284 + $0x78] sm:$0x80]
        %v2296 = vld [vmem:[%s2284 + $0x80] sm:$0xff]
        %v2297 = vld [vmem:[%s2284 + $0x90] sm:$0x80]
        %v2298 = vld [vmem:[%s2284 + $0x98] sm:$0xff]
        %v2299 = vld [vmem:[%s2284 + $0xa8] sm:$0x80]
        %v2300 = vld [vmem:[%s2284 + $0xb0] sm:$0xff]
        %v2302 = vshrl.u32 %v2285, 16
        %v2304 = vrot.slane %v2302, 7
        %v2306 = vshrl.u32 %v2286, 16
        %v2308 = vrot.slane %v2306, 7
        %v2309 = vshll.u32 %v2286, 16
        %v2311 = vor.u32 %v2308, %v2309
        %v2312 = vsel %vm300, %v2304, %v2311
        %v2314 = vshrl.u32 %v2287, 16
        %v2316 = vrot.slane %v2314, 7
        %v2318 = vshrl.u32 %v2288, 16
        %v2320 = vrot.slane %v2318, 7
        %v2321 = vshll.u32 %v2288, 16
        %v2323 = vor.u32 %v2320, %v2321
        %v2324 = vsel %vm300, %v2316, %v2323
        %v2326 = vshrl.u32 %v2289, 16
        %v2328 = vrot.slane %v2326, 7
        %v2330 = vshrl.u32 %v2290, 16
        %v2332 = vrot.slane %v2330, 7
        %v2333 = vshll.u32 %v2290, 16
        %v2335 = vor.u32 %v2332, %v2333
        %v2336 = vsel %vm300, %v2328, %v2335
        %v2338 = vshrl.u32 %v2291, 16
        %v2340 = vrot.slane %v2338, 7
        %v2342 = vshrl.u32 %v2292, 16
        %v2344 = vrot.slane %v2342, 7
        %v2345 = vshll.u32 %v2292, 16
        %v2347 = vor.u32 %v2344, %v2345
        %v2348 = vsel %vm300, %v2340, %v2347
        %v2350 = vshrl.u32 %v2293, 16
        %v2352 = vrot.slane %v2350, 7
        %v2354 = vshrl.u32 %v2294, 16
        %v2356 = vrot.slane %v2354, 7
        %v2357 = vshll.u32 %v2294, 16
        %v2359 = vor.u32 %v2356, %v2357
        %v2360 = vsel %vm300, %v2352, %v2359
        %v2362 = vshrl.u32 %v2295, 16
        %v2364 = vrot.slane %v2362, 7
        %v2366 = vshrl.u32 %v2296, 16
        %v2368 = vrot.slane %v2366, 7
        %v2369 = vshll.u32 %v2296, 16
        %v2371 = vor.u32 %v2368, %v2369
        %v2372 = vsel %vm300, %v2364, %v2371
        %v2374 = vshrl.u32 %v2297, 16
        %v2376 = vrot.slane %v2374, 7
        %v2378 = vshrl.u32 %v2298, 16
        %v2380 = vrot.slane %v2378, 7
        %v2381 = vshll.u32 %v2298, 16
        %v2383 = vor.u32 %v2380, %v2381
        %v2384 = vsel %vm300, %v2376, %v2383
        %v2386 = vshrl.u32 %v2299, 16
        %v2388 = vrot.slane %v2386, 7
        %v2390 = vshrl.u32 %v2300, 16
        %v2392 = vrot.slane %v2390, 7
        %v2393 = vshll.u32 %v2300, 16
        %v2395 = vor.u32 %v2392, %v2393
        %v2396 = vsel %vm300, %v2388, %v2395
        %v2397 = vld [vmem:[%s2284 + $0x10] sm:$0x1]
        %v2398 = vld [vmem:[%s2284 + $0x28] sm:$0x1]
        %v2399 = vld [vmem:[%s2284 + $0x40] sm:$0x1]
        %v2400 = vld [vmem:[%s2284 + $0x58] sm:$0x1]
        %v2401 = vld [vmem:[%s2284 + $0x70] sm:$0x1]
        %v2402 = vld [vmem:[%s2284 + $0x88] sm:$0x1]
        %v2403 = vld [vmem:[%s2284 + $0xa0] sm:$0x1]
        %v2404 = vld [vmem:[%s2284 + $0xb8] sm:$0x1]
        %v2405 = vrot.slane %v2309, 1
        %v2406 = vor.u32 %v2306, %v2405
        %v2408 = vshll.u32 %v2397, 16
        %v2410 = vrot.slane %v2408, 1
        %v2411 = vsel %vm405, %v2406, %v2410
        %v2412 = vrot.slane %v2321, 1
        %v2413 = vor.u32 %v2318, %v2412
        %v2415 = vshll.u32 %v2398, 16
        %v2417 = vrot.slane %v2415, 1
        %v2418 = vsel %vm405, %v2413, %v2417
        %v2419 = vrot.slane %v2333, 1
        %v2420 = vor.u32 %v2330, %v2419
        %v2422 = vshll.u32 %v2399, 16
        %v2424 = vrot.slane %v2422, 1
        %v2425 = vsel %vm405, %v2420, %v2424
        %v2426 = vrot.slane %v2345, 1
        %v2427 = vor.u32 %v2342, %v2426
        %v2429 = vshll.u32 %v2400, 16
        %v2431 = vrot.slane %v2429, 1
        %v2432 = vsel %vm405, %v2427, %v2431
        %v2433 = vrot.slane %v2357, 1
        %v2434 = vor.u32 %v2354, %v2433
        %v2436 = vshll.u32 %v2401, 16
        %v2438 = vrot.slane %v2436, 1
        %v2439 = vsel %vm405, %v2434, %v2438
        %v2440 = vrot.slane %v2369, 1
        %v2441 = vor.u32 %v2366, %v2440
        %v2443 = vshll.u32 %v2402, 16
        %v2445 = vrot.slane %v2443, 1
        %v2446 = vsel %vm405, %v2441, %v2445
        %v2447 = vrot.slane %v2381, 1
        %v2448 = vor.u32 %v2378, %v2447
        %v2450 = vshll.u32 %v2403, 16
        %v2452 = vrot.slane %v2450, 1
        %v2453 = vsel %vm405, %v2448, %v2452
        %v2454 = vrot.slane %v2393, 1
        %v2455 = vor.u32 %v2390, %v2454
        %v2457 = vshll.u32 %v2404, 16
        %v2459 = vrot.slane %v2457, 1
        %v2460 = vsel %vm405, %v2455, %v2459
        %s2461 = scalar_lea.vmem [#allocation2], 240
        %v2462 = vld [vmem:[%s2461] sm:$0x80]
        %v2463 = vld [vmem:[%s2461 + $0x8] sm:$0xff]
        %v2464 = vld [vmem:[%s2461 + $0x18] sm:$0x80]
        %v2465 = vld [vmem:[%s2461 + $0x20] sm:$0xff]
        %v2466 = vld [vmem:[%s2461 + $0x30] sm:$0x80]
        %v2467 = vld [vmem:[%s2461 + $0x38] sm:$0xff]
        %v2468 = vld [vmem:[%s2461 + $0x48] sm:$0x80]
        %v2469 = vld [vmem:[%s2461 + $0x50] sm:$0xff]
        %v2470 = vld [vmem:[%s2461 + $0x60] sm:$0x80]
        %v2471 = vld [vmem:[%s2461 + $0x68] sm:$0xff]
        %v2472 = vld [vmem:[%s2461 + $0x78] sm:$0x80]
        %v2473 = vld [vmem:[%s2461 + $0x80] sm:$0xff]
        %v2474 = vld [vmem:[%s2461 + $0x90] sm:$0x80]
        %v2475 = vld [vmem:[%s2461 + $0x98] sm:$0xff]
        %v2476 = vld [vmem:[%s2461 + $0xa8] sm:$0x80]
        %v2477 = vld [vmem:[%s2461 + $0xb0] sm:$0xff]
        %v2479 = vshrl.u32 %v2462, 16
        %v2481 = vrot.slane %v2479, 7
        %v2483 = vshrl.u32 %v2463, 16
        %v2485 = vrot.slane %v2483, 7
        %v2486 = vshll.u32 %v2463, 16
        %v2488 = vor.u32 %v2485, %v2486
        %v2489 = vsel %vm300, %v2481, %v2488
        %v2491 = vshrl.u32 %v2464, 16
        %v2493 = vrot.slane %v2491, 7
        %v2495 = vshrl.u32 %v2465, 16
        %v2497 = vrot.slane %v2495, 7
        %v2498 = vshll.u32 %v2465, 16
        %v2500 = vor.u32 %v2497, %v2498
        %v2501 = vsel %vm300, %v2493, %v2500
        %v2503 = vshrl.u32 %v2466, 16
        %v2505 = vrot.slane %v2503, 7
        %v2507 = vshrl.u32 %v2467, 16
        %v2509 = vrot.slane %v2507, 7
        %v2510 = vshll.u32 %v2467, 16
        %v2512 = vor.u32 %v2509, %v2510
        %v2513 = vsel %vm300, %v2505, %v2512
        %v2515 = vshrl.u32 %v2468, 16
        %v2517 = vrot.slane %v2515, 7
        %v2519 = vshrl.u32 %v2469, 16
        %v2521 = vrot.slane %v2519, 7
        %v2522 = vshll.u32 %v2469, 16
        %v2524 = vor.u32 %v2521, %v2522
        %v2525 = vsel %vm300, %v2517, %v2524
        %v2527 = vshrl.u32 %v2470, 16
        %v2529 = vrot.slane %v2527, 7
        %v2531 = vshrl.u32 %v2471, 16
        %v2533 = vrot.slane %v2531, 7
        %v2534 = vshll.u32 %v2471, 16
        %v2536 = vor.u32 %v2533, %v2534
        %v2537 = vsel %vm300, %v2529, %v2536
        %v2539 = vshrl.u32 %v2472, 16
        %v2541 = vrot.slane %v2539, 7
        %v2543 = vshrl.u32 %v2473, 16
        %v2545 = vrot.slane %v2543, 7
        %v2546 = vshll.u32 %v2473, 16
        %v2548 = vor.u32 %v2545, %v2546
        %v2549 = vsel %vm300, %v2541, %v2548
        %v2551 = vshrl.u32 %v2474, 16
        %v2553 = vrot.slane %v2551, 7
        %v2555 = vshrl.u32 %v2475, 16
        %v2557 = vrot.slane %v2555, 7
        %v2558 = vshll.u32 %v2475, 16
        %v2560 = vor.u32 %v2557, %v2558
        %v2561 = vsel %vm300, %v2553, %v2560
        %v2563 = vshrl.u32 %v2476, 16
        %v2565 = vrot.slane %v2563, 7
        %v2567 = vshrl.u32 %v2477, 16
        %v2569 = vrot.slane %v2567, 7
        %v2570 = vshll.u32 %v2477, 16
        %v2572 = vor.u32 %v2569, %v2570
        %v2573 = vsel %vm300, %v2565, %v2572
        %v2574 = vld [vmem:[%s2461 + $0x10] sm:$0x1]
        %v2575 = vld [vmem:[%s2461 + $0x28] sm:$0x1]
        %v2576 = vld [vmem:[%s2461 + $0x40] sm:$0x1]
        %v2577 = vld [vmem:[%s2461 + $0x58] sm:$0x1]
        %v2578 = vld [vmem:[%s2461 + $0x70] sm:$0x1]
        %v2579 = vld [vmem:[%s2461 + $0x88] sm:$0x1]
        %v2580 = vld [vmem:[%s2461 + $0xa0] sm:$0x1]
        %v2581 = vld [vmem:[%s2461 + $0xb8] sm:$0x1]
        %v2582 = vrot.slane %v2486, 1
        %v2583 = vor.u32 %v2483, %v2582
        %v2585 = vshll.u32 %v2574, 16
        %v2587 = vrot.slane %v2585, 1
        %v2588 = vsel %vm405, %v2583, %v2587
        %v2589 = vrot.slane %v2498, 1
        %v2590 = vor.u32 %v2495, %v2589
        %v2592 = vshll.u32 %v2575, 16
        %v2594 = vrot.slane %v2592, 1
        %v2595 = vsel %vm405, %v2590, %v2594
        %v2596 = vrot.slane %v2510, 1
        %v2597 = vor.u32 %v2507, %v2596
        %v2599 = vshll.u32 %v2576, 16
        %v2601 = vrot.slane %v2599, 1
        %v2602 = vsel %vm405, %v2597, %v2601
        %v2603 = vrot.slane %v2522, 1
        %v2604 = vor.u32 %v2519, %v2603
        %v2606 = vshll.u32 %v2577, 16
        %v2608 = vrot.slane %v2606, 1
        %v2609 = vsel %vm405, %v2604, %v2608
        %v2610 = vrot.slane %v2534, 1
        %v2611 = vor.u32 %v2531, %v2610
        %v2613 = vshll.u32 %v2578, 16
        %v2615 = vrot.slane %v2613, 1
        %v2616 = vsel %vm405, %v2611, %v2615
        %v2617 = vrot.slane %v2546, 1
        %v2618 = vor.u32 %v2543, %v2617
        %v2620 = vshll.u32 %v2579, 16
        %v2622 = vrot.slane %v2620, 1
        %v2623 = vsel %vm405, %v2618, %v2622
        %v2624 = vrot.slane %v2558, 1
        %v2625 = vor.u32 %v2555, %v2624
        %v2627 = vshll.u32 %v2580, 16
        %v2629 = vrot.slane %v2627, 1
        %v2630 = vsel %vm405, %v2625, %v2629
        %v2631 = vrot.slane %v2570, 1
        %v2632 = vor.u32 %v2567, %v2631
        %v2634 = vshll.u32 %v2581, 16
        %v2636 = vrot.slane %v2634, 1
        %v2637 = vsel %vm405, %v2632, %v2636
        %v2638 = vsel %vm170, %v2109, 0
        %v2640 = vsel %vm170, %v2111, 0
        %v2642 = vsel %vm170, %v2113, 0
        %v2644 = vsel %vm170, %v2115, 0
        %v2646 = vsel %vm170, %v2117, 0
        %v2648 = vsel %vm170, %v2119, 0
        %v2650 = vsel %vm170, %v2121, 0
        %v2652 = vsel %vm170, %v2123, 0
        %2654 = vmatprep.subr.bf16.mxu0 0
        %2655 = vmatpush1.bf16.msra.mxu0 %v847
        %2656 = vmatprep.subr.bf16.mxu0 0
        %2657 = vmatpush1.bf16.msra.mxu0 0
        %2658 = vmatprep.subr.bf16.mxu0 0
        %2659 = vmatpush1.bf16.msra.mxu0 0
        %2660 = vmatprep.subr.bf16.mxu0 0
        %2661 = vmatpush1.bf16.msra.mxu0 0
        %2662 = vmatprep.subr.bf16.mxu0 0
        %2663 = vmatpush1.bf16.msra.mxu0 0
        %2664 = vmatprep.subr.bf16.mxu0 0
        %2665 = vmatpush1.bf16.msra.mxu0 0
        %2666 = vmatprep.subr.bf16.mxu0 0
        %2667 = vmatpush1.bf16.msra.mxu0 0
        %2668 = vmatprep.subr.bf16.mxu0 0
        %2669 = vmatpush1.bf16.msra.mxu0 0
        %2670 = vmatprep.subr.bf16.mxu0 0
        %2671 = vmatpush1.bf16.msra.mxu0 0
        %2672 = vmatprep.subr.bf16.mxu0 0
        %2673 = vmatpush1.bf16.msra.mxu0 0
        %2674 = vmatprep.subr.bf16.mxu0 0
        %2675 = vmatpush1.bf16.msra.mxu0 0
        %2676 = vmatprep.subr.bf16.mxu0 0
        %2677 = vmatpush1.bf16.msra.mxu0 0
        %2678 = vmatprep.subr.bf16.mxu0 0
        %2679 = vmatpush1.bf16.msra.mxu0 0
        %2680 = vmatprep.subr.bf16.mxu0 0
        %2681 = vmatpush1.bf16.msra.mxu0 0
        %2682 = vmatprep.subr.bf16.mxu0 0
        %2683 = vmatpush1.bf16.msra.mxu0 0
        %2684 = vmatprep.subr.bf16.mxu0 0
        %2685 = vmatpush1.bf16.msra.mxu0 0
        %2686 = vmatprep.mubr.bf16.mxu0 0
        %2687 = vmatmul.mubr.bf16.gmra.mrb[0].mxu0 %v2638
        %v2688 = vpop.f32.mrb[0].mxu0
        %v2689 = vadd.f32 0.0, %v2688
        %v2690 = vpop.f32.mrb[0].mxu0
        %v2691 = vpop.f32.mrb[0].mxu0
        %v2692 = vadd.f32 0.0, %v2691
        %v2693 = vpop.f32.mrb[0].mxu0
        %2694 = vmatprep.mubr.bf16.mxu0 0
        %2695 = vmatmul.mubr.bf16.gmra.mrb[0].mxu0 %v2640
        %v2696 = vpop.f32.mrb[0].mxu0
        %v2697 = vadd.f32 0.0, %v2696
        %v2698 = vpop.f32.mrb[0].mxu0
        %v2699 = vpop.f32.mrb[0].mxu0
        %v2700 = vadd.f32 0.0, %v2699
        %v2701 = vpop.f32.mrb[0].mxu0
        %2702 = vmatprep.mubr.bf16.mxu0 0
        %2703 = vmatmul.mubr.bf16.gmra.mrb[0].mxu0 %v2642
        %v2704 = vpop.f32.mrb[0].mxu0
        %v2705 = vadd.f32 0.0, %v2704
        %v2706 = vpop.f32.mrb[0].mxu0
        %v2707 = vpop.f32.mrb[0].mxu0
        %v2708 = vadd.f32 0.0, %v2707
        %v2709 = vpop.f32.mrb[0].mxu0
        %2710 = vmatprep.mubr.bf16.mxu0 0
        %2711 = vmatmul.mubr.bf16.gmra.mrb[0].mxu0 %v2644
        %v2712 = vpop.f32.mrb[0].mxu0
        %v2713 = vadd.f32 0.0, %v2712
        %v2714 = vpop.f32.mrb[0].mxu0
        %v2715 = vpop.f32.mrb[0].mxu0
        %v2716 = vadd.f32 0.0, %v2715
        %v2717 = vpop.f32.mrb[0].mxu0
        %2718 = vmatprep.mubr.bf16.mxu0 0
        %2719 = vmatmul.mubr.bf16.gmra.mrb[0].mxu0 %v2646
        %v2720 = vpop.f32.mrb[0].mxu0
        %v2721 = vadd.f32 0.0, %v2720
        %v2722 = vpop.f32.mrb[0].mxu0
        %v2723 = vpop.f32.mrb[0].mxu0
        %v2724 = vadd.f32 0.0, %v2723
        %v2725 = vpop.f32.mrb[0].mxu0
        %2726 = vmatprep.mubr.bf16.mxu0 0
        %2727 = vmatmul.mubr.bf16.gmra.mrb[0].mxu0 %v2648
        %v2728 = vpop.f32.mrb[0].mxu0
        %v2729 = vadd.f32 0.0, %v2728
        %v2730 = vpop.f32.mrb[0].mxu0
        %v2731 = vpop.f32.mrb[0].mxu0
        %v2732 = vadd.f32 0.0, %v2731
        %v2733 = vpop.f32.mrb[0].mxu0
        %2734 = vmatprep.mubr.bf16.mxu0 0
        %2735 = vmatmul.mubr.bf16.gmra.mrb[0].mxu0 %v2650
        %v2736 = vpop.f32.mrb[0].mxu0
        %v2737 = vadd.f32 0.0, %v2736
        %v2738 = vpop.f32.mrb[0].mxu0
        %v2739 = vpop.f32.mrb[0].mxu0
        %v2740 = vadd.f32 0.0, %v2739
        %v2741 = vpop.f32.mrb[0].mxu0
        %2742 = vmatprep.mubr.bf16.mxu0 0
        %2743 = vmatmul.mubr.bf16.gmra.mrb[0].mxu0 %v2652
        %v2744 = vpop.f32.mrb[0].mxu0
        %v2745 = vadd.f32 0.0, %v2744
        %v2746 = vpop.f32.mrb[0].mxu0
        %v2747 = vpop.f32.mrb[0].mxu0
        %v2748 = vadd.f32 0.0, %v2747
        %v2749 = vpop.f32.mrb[0].mxu0
        %2750 = vdwg.mxu0
        %v2752 = vsel %vm170, %v2135, 0
        %v2755 = vsel %vm170, %v2147, 0
        %v2758 = vsel %vm170, %v2159, 0
        %v2761 = vsel %vm170, %v2171, 0
        %v2764 = vsel %vm170, %v2183, 0
        %v2767 = vsel %vm170, %v2195, 0
        %v2770 = vsel %vm170, %v2207, 0
        %v2773 = vsel %vm170, %v2219, 0
        %2775 = vmatprep.subr.bf16.mxu0 0
        %2776 = vmatpush1.bf16.msra.mxu0 %v971
        %2777 = vmatprep.subr.bf16.mxu0 0
        %2778 = vmatpush1.bf16.msra.mxu0 0
        %2779 = vmatprep.subr.bf16.mxu0 0
        %2780 = vmatpush1.bf16.msra.mxu0 0
        %2781 = vmatprep.subr.bf16.mxu0 0
        %2782 = vmatpush1.bf16.msra.mxu0 0
        %2783 = vmatprep.subr.bf16.mxu0 0
        %2784 = vmatpush1.bf16.msra.mxu0 0
        %2785 = vmatprep.subr.bf16.mxu0 0
        %2786 = vmatpush1.bf16.msra.mxu0 0
        %2787 = vmatprep.subr.bf16.mxu0 0
        %2788 = vmatpush1.bf16.msra.mxu0 0
        %2789 = vmatprep.subr.bf16.mxu0 0
        %2790 = vmatpush1.bf16.msra.mxu0 0
        %2791 = vmatprep.subr.bf16.mxu0 0
        %2792 = vmatpush1.bf16.msra.mxu0 0
        %2793 = vmatprep.subr.bf16.mxu0 0
        %2794 = vmatpush1.bf16.msra.mxu0 0
        %2795 = vmatprep.subr.bf16.mxu0 0
        %2796 = vmatpush1.bf16.msra.mxu0 0
        %2797 = vmatprep.subr.bf16.mxu0 0
        %2798 = vmatpush1.bf16.msra.mxu0 0
        %2799 = vmatprep.subr.bf16.mxu0 0
        %2800 = vmatpush1.bf16.msra.mxu0 0
        %2801 = vmatprep.subr.bf16.mxu0 0
        %2802 = vmatpush1.bf16.msra.mxu0 0
        %2803 = vmatprep.subr.bf16.mxu0 0
        %2804 = vmatpush1.bf16.msra.mxu0 0
        %2805 = vmatprep.subr.bf16.mxu0 0
        %2806 = vmatpush1.bf16.msra.mxu0 0
        %2807 = vmatprep.mubr.bf16.mxu0 0
        %2808 = vmatmul.mubr.bf16.gmra.mrb[0].mxu0 %v2752
        %v2809 = vpop.f32.mrb[0].mxu0
        %v2810 = vadd.f32 %v2689, %v2809
        %v2811 = vpop.f32.mrb[0].mxu0
        %v2812 = vpop.f32.mrb[0].mxu0
        %v2813 = vadd.f32 %v2692, %v2812
        %v2814 = vpop.f32.mrb[0].mxu0
        %2815 = vmatprep.mubr.bf16.mxu0 0
        %2816 = vmatmul.mubr.bf16.gmra.mrb[0].mxu0 %v2755
        %v2817 = vpop.f32.mrb[0].mxu0
        %v2818 = vadd.f32 %v2697, %v2817
        %v2819 = vpop.f32.mrb[0].mxu0
        %v2820 = vpop.f32.mrb[0].mxu0
        %v2821 = vadd.f32 %v2700, %v2820
        %v2822 = vpop.f32.mrb[0].mxu0
        %2823 = vmatprep.mubr.bf16.mxu0 0
        %2824 = vmatmul.mubr.bf16.gmra.mrb[0].mxu0 %v2758
        %v2825 = vpop.f32.mrb[0].mxu0
        %v2826 = vadd.f32 %v2705, %v2825
        %v2827 = vpop.f32.mrb[0].mxu0
        %v2828 = vpop.f32.mrb[0].mxu0
        %v2829 = vadd.f32 %v2708, %v2828
        %v2830 = vpop.f32.mrb[0].mxu0
        %2831 = vmatprep.mubr.bf16.mxu0 0
        %2832 = vmatmul.mubr.bf16.gmra.mrb[0].mxu0 %v2761
        %v2833 = vpop.f32.mrb[0].mxu0
        %v2834 = vadd.f32 %v2713, %v2833
        %v2835 = vpop.f32.mrb[0].mxu0
        %v2836 = vpop.f32.mrb[0].mxu0
        %v2837 = vadd.f32 %v2716, %v2836
        %v2838 = vpop.f32.mrb[0].mxu0
        %2839 = vmatprep.mubr.bf16.mxu0 0
        %2840 = vmatmul.mubr.bf16.gmra.mrb[0].mxu0 %v2764
        %v2841 = vpop.f32.mrb[0].mxu0
        %v2842 = vadd.f32 %v2721, %v2841
        %v2843 = vpop.f32.mrb[0].mxu0
        %v2844 = vpop.f32.mrb[0].mxu0
        %v2845 = vadd.f32 %v2724, %v2844
        %v2846 = vpop.f32.mrb[0].mxu0
        %2847 = vmatprep.mubr.bf16.mxu0 0
        %2848 = vmatmul.mubr.bf16.gmra.mrb[0].mxu0 %v2767
        %v2849 = vpop.f32.mrb[0].mxu0
        %v2850 = vadd.f32 %v2729, %v2849
        %v2851 = vpop.f32.mrb[0].mxu0
        %v2852 = vpop.f32.mrb[0].mxu0
        %v2853 = vadd.f32 %v2732, %v2852
        %v2854 = vpop.f32.mrb[0].mxu0
        %2855 = vmatprep.mubr.bf16.mxu0 0
        %2856 = vmatmul.mubr.bf16.gmra.mrb[0].mxu0 %v2770
        %v2857 = vpop.f32.mrb[0].mxu0
        %v2858 = vadd.f32 %v2737, %v2857
        %v2859 = vpop.f32.mrb[0].mxu0
        %v2860 = vpop.f32.mrb[0].mxu0
        %v2861 = vadd.f32 %v2740, %v2860
        %v2862 = vpop.f32.mrb[0].mxu0
        %2863 = vmatprep.mubr.bf16.mxu0 0
        %2864 = vmatmul.mubr.bf16.gmra.mrb[0].mxu0 %v2773
        %v2865 = vpop.f32.mrb[0].mxu0
        %v2866 = vadd.f32 %v2745, %v2865
        %v2867 = vpop.f32.mrb[0].mxu0
        %v2868 = vpop.f32.mrb[0].mxu0
        %v2869 = vadd.f32 %v2748, %v2868
        %v2870 = vpop.f32.mrb[0].mxu0
        %2871 = vdwg.mxu0
        %v2873 = vsel %vm170, %v2234, 0
        %v2876 = vsel %vm170, %v2241, 0
        %v2879 = vsel %vm170, %v2248, 0
        %v2882 = vsel %vm170, %v2255, 0
        %v2885 = vsel %vm170, %v2262, 0
        %v2888 = vsel %vm170, %v2269, 0
        %v2891 = vsel %vm170, %v2276, 0
        %v2894 = vsel %vm170, %v2283, 0
        %2896 = vmatprep.subr.bf16.mxu0 0
        %2897 = vmatpush1.bf16.msra.mxu0 %v1099
        %2898 = vmatprep.subr.bf16.mxu0 0
        %2899 = vmatpush1.bf16.msra.mxu0 0
        %2900 = vmatprep.subr.bf16.mxu0 0
        %2901 = vmatpush1.bf16.msra.mxu0 0
        %2902 = vmatprep.subr.bf16.mxu0 0
        %2903 = vmatpush1.bf16.msra.mxu0 0
        %2904 = vmatprep.subr.bf16.mxu0 0
        %2905 = vmatpush1.bf16.msra.mxu0 0
        %2906 = vmatprep.subr.bf16.mxu0 0
        %2907 = vmatpush1.bf16.msra.mxu0 0
        %2908 = vmatprep.subr.bf16.mxu0 0
        %2909 = vmatpush1.bf16.msra.mxu0 0
        %2910 = vmatprep.subr.bf16.mxu0 0
        %2911 = vmatpush1.bf16.msra.mxu0 0
        %2912 = vmatprep.subr.bf16.mxu0 0
        %2913 = vmatpush1.bf16.msra.mxu0 0
        %2914 = vmatprep.subr.bf16.mxu0 0
        %2915 = vmatpush1.bf16.msra.mxu0 0
        %2916 = vmatprep.subr.bf16.mxu0 0
        %2917 = vmatpush1.bf16.msra.mxu0 0
        %2918 = vmatprep.subr.bf16.mxu0 0
        %2919 = vmatpush1.bf16.msra.mxu0 0
        %2920 = vmatprep.subr.bf16.mxu0 0
        %2921 = vmatpush1.bf16.msra.mxu0 0
        %2922 = vmatprep.subr.bf16.mxu0 0
        %2923 = vmatpush1.bf16.msra.mxu0 0
        %2924 = vmatprep.subr.bf16.mxu0 0
        %2925 = vmatpush1.bf16.msra.mxu0 0
        %2926 = vmatprep.subr.bf16.mxu0 0
        %2927 = vmatpush1.bf16.msra.mxu0 0
        %2928 = vmatprep.mubr.bf16.mxu0 0
        %2929 = vmatmul.mubr.bf16.gmra.mrb[0].mxu0 %v2873
        %v2930 = vpop.f32.mrb[0].mxu0
        %v2931 = vadd.f32 0.0, %v2930
        %v2932 = vpop.f32.mrb[0].mxu0
        %v2933 = vpop.f32.mrb[0].mxu0
        %v2934 = vadd.f32 0.0, %v2933
        %v2935 = vpop.f32.mrb[0].mxu0
        %2936 = vmatprep.mubr.bf16.mxu0 0
        %2937 = vmatmul.mubr.bf16.gmra.mrb[0].mxu0 %v2876
        %v2938 = vpop.f32.mrb[0].mxu0
        %v2939 = vadd.f32 0.0, %v2938
        %v2940 = vpop.f32.mrb[0].mxu0
        %v2941 = vpop.f32.mrb[0].mxu0
        %v2942 = vadd.f32 0.0, %v2941
        %v2943 = vpop.f32.mrb[0].mxu0
        %2944 = vmatprep.mubr.bf16.mxu0 0
        %2945 = vmatmul.mubr.bf16.gmra.mrb[0].mxu0 %v2879
        %v2946 = vpop.f32.mrb[0].mxu0
        %v2947 = vadd.f32 0.0, %v2946
        %v2948 = vpop.f32.mrb[0].mxu0
        %v2949 = vpop.f32.mrb[0].mxu0
        %v2950 = vadd.f32 0.0, %v2949
        %v2951 = vpop.f32.mrb[0].mxu0
        %2952 = vmatprep.mubr.bf16.mxu0 0
        %2953 = vmatmul.mubr.bf16.gmra.mrb[0].mxu0 %v2882
        %v2954 = vpop.f32.mrb[0].mxu0
        %v2955 = vadd.f32 0.0, %v2954
        %v2956 = vpop.f32.mrb[0].mxu0
        %v2957 = vpop.f32.mrb[0].mxu0
        %v2958 = vadd.f32 0.0, %v2957
        %v2959 = vpop.f32.mrb[0].mxu0
        %2960 = vmatprep.mubr.bf16.mxu0 0
        %2961 = vmatmul.mubr.bf16.gmra.mrb[0].mxu0 %v2885
        %v2962 = vpop.f32.mrb[0].mxu0
        %v2963 = vadd.f32 0.0, %v2962
        %v2964 = vpop.f32.mrb[0].mxu0
        %v2965 = vpop.f32.mrb[0].mxu0
        %v2966 = vadd.f32 0.0, %v2965
        %v2967 = vpop.f32.mrb[0].mxu0
        %2968 = vmatprep.mubr.bf16.mxu0 0
        %2969 = vmatmul.mubr.bf16.gmra.mrb[0].mxu0 %v2888
        %v2970 = vpop.f32.mrb[0].mxu0
        %v2971 = vadd.f32 0.0, %v2970
        %v2972 = vpop.f32.mrb[0].mxu0
        %v2973 = vpop.f32.mrb[0].mxu0
        %v2974 = vadd.f32 0.0, %v2973
        %v2975 = vpop.f32.mrb[0].mxu0
        %2976 = vmatprep.mubr.bf16.mxu0 0
        %2977 = vmatmul.mubr.bf16.gmra.mrb[0].mxu0 %v2891
        %v2978 = vpop.f32.mrb[0].mxu0
        %v2979 = vadd.f32 0.0, %v2978
        %v2980 = vpop.f32.mrb[0].mxu0
        %v2981 = vpop.f32.mrb[0].mxu0
        %v2982 = vadd.f32 0.0, %v2981
        %v2983 = vpop.f32.mrb[0].mxu0
        %2984 = vmatprep.mubr.bf16.mxu0 0
        %2985 = vmatmul.mubr.bf16.gmra.mrb[0].mxu0 %v2894
        %v2986 = vpop.f32.mrb[0].mxu0
        %v2987 = vadd.f32 0.0, %v2986
        %v2988 = vpop.f32.mrb[0].mxu0
        %v2989 = vpop.f32.mrb[0].mxu0
        %v2990 = vadd.f32 0.0, %v2989
        %v2991 = vpop.f32.mrb[0].mxu0
        %2992 = vdwg.mxu0
        %v2993 = vadd.f32 %v2810, %v2931
        %v2994 = vadd.f32 %v2813, %v2934
        %v2995 = vadd.f32 %v2818, %v2939
        %v2996 = vadd.f32 %v2821, %v2942
        %v2997 = vadd.f32 %v2826, %v2947
        %v2998 = vadd.f32 %v2829, %v2950
        %v2999 = vadd.f32 %v2834, %v2955
        %v3000 = vadd.f32 %v2837, %v2958
        %v3001 = vadd.f32 %v2842, %v2963
        %v3002 = vadd.f32 %v2845, %v2966
        %v3003 = vadd.f32 %v2850, %v2971
        %v3004 = vadd.f32 %v2853, %v2974
        %v3005 = vadd.f32 %v2858, %v2979
        %v3006 = vadd.f32 %v2861, %v2982
        %v3007 = vadd.f32 %v2866, %v2987
        %v3008 = vadd.f32 %v2869, %v2990
        %v3010 = vsel %vm170, %v2312, 0
        %v3013 = vsel %vm170, %v2324, 0
        %v3016 = vsel %vm170, %v2336, 0
        %v3019 = vsel %vm170, %v2348, 0
        %v3022 = vsel %vm170, %v2360, 0
        %v3025 = vsel %vm170, %v2372, 0
        %v3028 = vsel %vm170, %v2384, 0
        %v3031 = vsel %vm170, %v2396, 0
        %3033 = vmatprep.subr.bf16.mxu0 0
        %3034 = vmatpush1.bf16.msra.mxu0 %v1247
        %3035 = vmatprep.subr.bf16.mxu0 0
        %3036 = vmatpush1.bf16.msra.mxu0 0
        %3037 = vmatprep.subr.bf16.mxu0 0
        %3038 = vmatpush1.bf16.msra.mxu0 0
        %3039 = vmatprep.subr.bf16.mxu0 0
        %3040 = vmatpush1.bf16.msra.mxu0 0
        %3041 = vmatprep.subr.bf16.mxu0 0
        %3042 = vmatpush1.bf16.msra.mxu0 0
        %3043 = vmatprep.subr.bf16.mxu0 0
        %3044 = vmatpush1.bf16.msra.mxu0 0
        %3045 = vmatprep.subr.bf16.mxu0 0
        %3046 = vmatpush1.bf16.msra.mxu0 0
        %3047 = vmatprep.subr.bf16.mxu0 0
        %3048 = vmatpush1.bf16.msra.mxu0 0
        %3049 = vmatprep.subr.bf16.mxu0 0
        %3050 = vmatpush1.bf16.msra.mxu0 0
        %3051 = vmatprep.subr.bf16.mxu0 0
        %3052 = vmatpush1.bf16.msra.mxu0 0
        %3053 = vmatprep.subr.bf16.mxu0 0
        %3054 = vmatpush1.bf16.msra.mxu0 0
        %3055 = vmatprep.subr.bf16.mxu0 0
        %3056 = vmatpush1.bf16.msra.mxu0 0
        %3057 = vmatprep.subr.bf16.mxu0 0
        %3058 = vmatpush1.bf16.msra.mxu0 0
        %3059 = vmatprep.subr.bf16.mxu0 0
        %3060 = vmatpush1.bf16.msra.mxu0 0
        %3061 = vmatprep.subr.bf16.mxu0 0
        %3062 = vmatpush1.bf16.msra.mxu0 0
        %3063 = vmatprep.subr.bf16.mxu0 0
        %3064 = vmatpush1.bf16.msra.mxu0 0
        %3065 = vmatprep.mubr.bf16.mxu0 0
        %3066 = vmatmul.mubr.bf16.gmra.mrb[0].mxu0 %v3010
        %v3067 = vpop.f32.mrb[0].mxu0
        %v3068 = vadd.f32 0.0, %v3067
        %v3069 = vpop.f32.mrb[0].mxu0
        %v3070 = vpop.f32.mrb[0].mxu0
        %v3071 = vadd.f32 0.0, %v3070
        %v3072 = vpop.f32.mrb[0].mxu0
        %3073 = vmatprep.mubr.bf16.mxu0 0
        %3074 = vmatmul.mubr.bf16.gmra.mrb[0].mxu0 %v3013
        %v3075 = vpop.f32.mrb[0].mxu0
        %v3076 = vadd.f32 0.0, %v3075
        %v3077 = vpop.f32.mrb[0].mxu0
        %v3078 = vpop.f32.mrb[0].mxu0
        %v3079 = vadd.f32 0.0, %v3078
        %v3080 = vpop.f32.mrb[0].mxu0
        %3081 = vmatprep.mubr.bf16.mxu0 0
        %3082 = vmatmul.mubr.bf16.gmra.mrb[0].mxu0 %v3016
        %v3083 = vpop.f32.mrb[0].mxu0
        %v3084 = vadd.f32 0.0, %v3083
        %v3085 = vpop.f32.mrb[0].mxu0
        %v3086 = vpop.f32.mrb[0].mxu0
        %v3087 = vadd.f32 0.0, %v3086
        %v3088 = vpop.f32.mrb[0].mxu0
        %3089 = vmatprep.mubr.bf16.mxu0 0
        %3090 = vmatmul.mubr.bf16.gmra.mrb[0].mxu0 %v3019
        %v3091 = vpop.f32.mrb[0].mxu0
        %v3092 = vadd.f32 0.0, %v3091
        %v3093 = vpop.f32.mrb[0].mxu0
        %v3094 = vpop.f32.mrb[0].mxu0
        %v3095 = vadd.f32 0.0, %v3094
        %v3096 = vpop.f32.mrb[0].mxu0
        %3097 = vmatprep.mubr.bf16.mxu0 0
        %3098 = vmatmul.mubr.bf16.gmra.mrb[0].mxu0 %v3022
        %v3099 = vpop.f32.mrb[0].mxu0
        %v3100 = vadd.f32 0.0, %v3099
        %v3101 = vpop.f32.mrb[0].mxu0
        %v3102 = vpop.f32.mrb[0].mxu0
        %v3103 = vadd.f32 0.0, %v3102
        %v3104 = vpop.f32.mrb[0].mxu0
        %3105 = vmatprep.mubr.bf16.mxu0 0
        %3106 = vmatmul.mubr.bf16.gmra.mrb[0].mxu0 %v3025
        %v3107 = vpop.f32.mrb[0].mxu0
        %v3108 = vadd.f32 0.0, %v3107
        %v3109 = vpop.f32.mrb[0].mxu0
        %v3110 = vpop.f32.mrb[0].mxu0
        %v3111 = vadd.f32 0.0, %v3110
        %v3112 = vpop.f32.mrb[0].mxu0
        %3113 = vmatprep.mubr.bf16.mxu0 0
        %3114 = vmatmul.mubr.bf16.gmra.mrb[0].mxu0 %v3028
        %v3115 = vpop.f32.mrb[0].mxu0
        %v3116 = vadd.f32 0.0, %v3115
        %v3117 = vpop.f32.mrb[0].mxu0
        %v3118 = vpop.f32.mrb[0].mxu0
        %v3119 = vadd.f32 0.0, %v3118
        %v3120 = vpop.f32.mrb[0].mxu0
        %3121 = vmatprep.mubr.bf16.mxu0 0
        %3122 = vmatmul.mubr.bf16.gmra.mrb[0].mxu0 %v3031
        %v3123 = vpop.f32.mrb[0].mxu0
        %v3124 = vadd.f32 0.0, %v3123
        %v3125 = vpop.f32.mrb[0].mxu0
        %v3126 = vpop.f32.mrb[0].mxu0
        %v3127 = vadd.f32 0.0, %v3126
        %v3128 = vpop.f32.mrb[0].mxu0
        %3129 = vdwg.mxu0
        %v3130 = vadd.f32 %v2993, %v3068
        %v3131 = vadd.f32 %v2994, %v3071
        %v3132 = vadd.f32 %v2995, %v3076
        %v3133 = vadd.f32 %v2996, %v3079
        %v3134 = vadd.f32 %v2997, %v3084
        %v3135 = vadd.f32 %v2998, %v3087
        %v3136 = vadd.f32 %v2999, %v3092
        %v3137 = vadd.f32 %v3000, %v3095
        %v3138 = vadd.f32 %v3001, %v3100
        %v3139 = vadd.f32 %v3002, %v3103
        %v3140 = vadd.f32 %v3003, %v3108
        %v3141 = vadd.f32 %v3004, %v3111
        %v3142 = vadd.f32 %v3005, %v3116
        %v3143 = vadd.f32 %v3006, %v3119
        %v3144 = vadd.f32 %v3007, %v3124
        %v3145 = vadd.f32 %v3008, %v3127
        %v3146 = vsel %vm170, %v2286, 0
        %v3148 = vsel %vm170, %v2288, 0
        %v3150 = vsel %vm170, %v2290, 0
        %v3152 = vsel %vm170, %v2292, 0
        %v3154 = vsel %vm170, %v2294, 0
        %v3156 = vsel %vm170, %v2296, 0
        %v3158 = vsel %vm170, %v2298, 0
        %v3160 = vsel %vm170, %v2300, 0
        %3162 = vmatprep.subr.bf16.mxu0 0
        %3163 = vmatpush1.bf16.msra.mxu0 %v1380
        %3164 = vmatprep.subr.bf16.mxu0 0
        %3165 = vmatpush1.bf16.msra.mxu0 0
        %3166 = vmatprep.subr.bf16.mxu0 0
        %3167 = vmatpush1.bf16.msra.mxu0 0
        %3168 = vmatprep.subr.bf16.mxu0 0
        %3169 = vmatpush1.bf16.msra.mxu0 0
        %3170 = vmatprep.subr.bf16.mxu0 0
        %3171 = vmatpush1.bf16.msra.mxu0 0
        %3172 = vmatprep.subr.bf16.mxu0 0
        %3173 = vmatpush1.bf16.msra.mxu0 0
        %3174 = vmatprep.subr.bf16.mxu0 0
        %3175 = vmatpush1.bf16.msra.mxu0 0
        %3176 = vmatprep.subr.bf16.mxu0 0
        %3177 = vmatpush1.bf16.msra.mxu0 0
        %3178 = vmatprep.subr.bf16.mxu0 0
        %3179 = vmatpush1.bf16.msra.mxu0 0
        %3180 = vmatprep.subr.bf16.mxu0 0
        %3181 = vmatpush1.bf16.msra.mxu0 0
        %3182 = vmatprep.subr.bf16.mxu0 0
        %3183 = vmatpush1.bf16.msra.mxu0 0
        %3184 = vmatprep.subr.bf16.mxu0 0
        %3185 = vmatpush1.bf16.msra.mxu0 0
        %3186 = vmatprep.subr.bf16.mxu0 0
        %3187 = vmatpush1.bf16.msra.mxu0 0
        %3188 = vmatprep.subr.bf16.mxu0 0
        %3189 = vmatpush1.bf16.msra.mxu0 0
        %3190 = vmatprep.subr.bf16.mxu0 0
        %3191 = vmatpush1.bf16.msra.mxu0 0
        %3192 = vmatprep.subr.bf16.mxu0 0
        %3193 = vmatpush1.bf16.msra.mxu0 0
        %3194 = vmatprep.mubr.bf16.mxu0 0
        %3195 = vmatmul.mubr.bf16.gmra.mrb[0].mxu0 %v3146
        %v3196 = vpop.f32.mrb[0].mxu0
        %v3197 = vadd.f32 0.0, %v3196
        %v3198 = vpop.f32.mrb[0].mxu0
        %v3199 = vpop.f32.mrb[0].mxu0
        %v3200 = vadd.f32 0.0, %v3199
        %v3201 = vpop.f32.mrb[0].mxu0
        %3202 = vmatprep.mubr.bf16.mxu0 0
        %3203 = vmatmul.mubr.bf16.gmra.mrb[0].mxu0 %v3148
        %v3204 = vpop.f32.mrb[0].mxu0
        %v3205 = vadd.f32 0.0, %v3204
        %v3206 = vpop.f32.mrb[0].mxu0
        %v3207 = vpop.f32.mrb[0].mxu0
        %v3208 = vadd.f32 0.0, %v3207
        %v3209 = vpop.f32.mrb[0].mxu0
        %3210 = vmatprep.mubr.bf16.mxu0 0
        %3211 = vmatmul.mubr.bf16.gmra.mrb[0].mxu0 %v3150
        %v3212 = vpop.f32.mrb[0].mxu0
        %v3213 = vadd.f32 0.0, %v3212
        %v3214 = vpop.f32.mrb[0].mxu0
        %v3215 = vpop.f32.mrb[0].mxu0
        %v3216 = vadd.f32 0.0, %v3215
        %v3217 = vpop.f32.mrb[0].mxu0
        %3218 = vmatprep.mubr.bf16.mxu0 0
        %3219 = vmatmul.mubr.bf16.gmra.mrb[0].mxu0 %v3152
        %v3220 = vpop.f32.mrb[0].mxu0
        %v3221 = vadd.f32 0.0, %v3220
        %v3222 = vpop.f32.mrb[0].mxu0
        %v3223 = vpop.f32.mrb[0].mxu0
        %v3224 = vadd.f32 0.0, %v3223
        %v3225 = vpop.f32.mrb[0].mxu0
        %3226 = vmatprep.mubr.bf16.mxu0 0
        %3227 = vmatmul.mubr.bf16.gmra.mrb[0].mxu0 %v3154
        %v3228 = vpop.f32.mrb[0].mxu0
        %v3229 = vadd.f32 0.0, %v3228
        %v3230 = vpop.f32.mrb[0].mxu0
        %v3231 = vpop.f32.mrb[0].mxu0
        %v3232 = vadd.f32 0.0, %v3231
        %v3233 = vpop.f32.mrb[0].mxu0
        %3234 = vmatprep.mubr.bf16.mxu0 0
        %3235 = vmatmul.mubr.bf16.gmra.mrb[0].mxu0 %v3156
        %v3236 = vpop.f32.mrb[0].mxu0
        %v3237 = vadd.f32 0.0, %v3236
        %v3238 = vpop.f32.mrb[0].mxu0
        %v3239 = vpop.f32.mrb[0].mxu0
        %v3240 = vadd.f32 0.0, %v3239
        %v3241 = vpop.f32.mrb[0].mxu0
        %3242 = vmatprep.mubr.bf16.mxu0 0
        %3243 = vmatmul.mubr.bf16.gmra.mrb[0].mxu0 %v3158
        %v3244 = vpop.f32.mrb[0].mxu0
        %v3245 = vadd.f32 0.0, %v3244
        %v3246 = vpop.f32.mrb[0].mxu0
        %v3247 = vpop.f32.mrb[0].mxu0
        %v3248 = vadd.f32 0.0, %v3247
        %v3249 = vpop.f32.mrb[0].mxu0
        %3250 = vmatprep.mubr.bf16.mxu0 0
        %3251 = vmatmul.mubr.bf16.gmra.mrb[0].mxu0 %v3160
        %v3252 = vpop.f32.mrb[0].mxu0
        %v3253 = vadd.f32 0.0, %v3252
        %v3254 = vpop.f32.mrb[0].mxu0
        %v3255 = vpop.f32.mrb[0].mxu0
        %v3256 = vadd.f32 0.0, %v3255
        %v3257 = vpop.f32.mrb[0].mxu0
        %3258 = vdwg.mxu0
        %v3259 = vadd.f32 %v3130, %v3197
        %v3260 = vadd.f32 %v3131, %v3200
        %v3261 = vadd.f32 %v3132, %v3205
        %v3262 = vadd.f32 %v3133, %v3208
        %v3263 = vadd.f32 %v3134, %v3213
        %v3264 = vadd.f32 %v3135, %v3216
        %v3265 = vadd.f32 %v3136, %v3221
        %v3266 = vadd.f32 %v3137, %v3224
        %v3267 = vadd.f32 %v3138, %v3229
        %v3268 = vadd.f32 %v3139, %v3232
        %v3269 = vadd.f32 %v3140, %v3237
        %v3270 = vadd.f32 %v3141, %v3240
        %v3271 = vadd.f32 %v3142, %v3245
        %v3272 = vadd.f32 %v3143, %v3248
        %v3273 = vadd.f32 %v3144, %v3253
        %v3274 = vadd.f32 %v3145, %v3256
        %v3276 = vsel %vm170, %v2411, 0
        %v3279 = vsel %vm170, %v2418, 0
        %v3282 = vsel %vm170, %v2425, 0
        %v3285 = vsel %vm170, %v2432, 0
        %v3288 = vsel %vm170, %v2439, 0
        %v3291 = vsel %vm170, %v2446, 0
        %v3294 = vsel %vm170, %v2453, 0
        %v3297 = vsel %vm170, %v2460, 0
        %3299 = vmatprep.subr.bf16.mxu0 0
        %3300 = vmatpush1.bf16.msra.mxu0 %v1531
        %3301 = vmatprep.subr.bf16.mxu0 0
        %3302 = vmatpush1.bf16.msra.mxu0 0
        %3303 = vmatprep.subr.bf16.mxu0 0
        %3304 = vmatpush1.bf16.msra.mxu0 0
        %3305 = vmatprep.subr.bf16.mxu0 0
        %3306 = vmatpush1.bf16.msra.mxu0 0
        %3307 = vmatprep.subr.bf16.mxu0 0
        %3308 = vmatpush1.bf16.msra.mxu0 0
        %3309 = vmatprep.subr.bf16.mxu0 0
        %3310 = vmatpush1.bf16.msra.mxu0 0
        %3311 = vmatprep.subr.bf16.mxu0 0
        %3312 = vmatpush1.bf16.msra.mxu0 0
        %3313 = vmatprep.subr.bf16.mxu0 0
        %3314 = vmatpush1.bf16.msra.mxu0 0
        %3315 = vmatprep.subr.bf16.mxu0 0
        %3316 = vmatpush1.bf16.msra.mxu0 0
        %3317 = vmatprep.subr.bf16.mxu0 0
        %3318 = vmatpush1.bf16.msra.mxu0 0
        %3319 = vmatprep.subr.bf16.mxu0 0
        %3320 = vmatpush1.bf16.msra.mxu0 0
        %3321 = vmatprep.subr.bf16.mxu0 0
        %3322 = vmatpush1.bf16.msra.mxu0 0
        %3323 = vmatprep.subr.bf16.mxu0 0
        %3324 = vmatpush1.bf16.msra.mxu0 0
        %3325 = vmatprep.subr.bf16.mxu0 0
        %3326 = vmatpush1.bf16.msra.mxu0 0
        %3327 = vmatprep.subr.bf16.mxu0 0
        %3328 = vmatpush1.bf16.msra.mxu0 0
        %3329 = vmatprep.subr.bf16.mxu0 0
        %3330 = vmatpush1.bf16.msra.mxu0 0
        %3331 = vmatprep.mubr.bf16.mxu0 0
        %3332 = vmatmul.mubr.bf16.gmra.mrb[0].mxu0 %v3276
        %v3333 = vpop.f32.mrb[0].mxu0
        %v3334 = vadd.f32 0.0, %v3333
        %v3335 = vpop.f32.mrb[0].mxu0
        %v3336 = vpop.f32.mrb[0].mxu0
        %v3337 = vadd.f32 0.0, %v3336
        %v3338 = vpop.f32.mrb[0].mxu0
        %3339 = vmatprep.mubr.bf16.mxu0 0
        %3340 = vmatmul.mubr.bf16.gmra.mrb[0].mxu0 %v3279
        %v3341 = vpop.f32.mrb[0].mxu0
        %v3342 = vadd.f32 0.0, %v3341
        %v3343 = vpop.f32.mrb[0].mxu0
        %v3344 = vpop.f32.mrb[0].mxu0
        %v3345 = vadd.f32 0.0, %v3344
        %v3346 = vpop.f32.mrb[0].mxu0
        %3347 = vmatprep.mubr.bf16.mxu0 0
        %3348 = vmatmul.mubr.bf16.gmra.mrb[0].mxu0 %v3282
        %v3349 = vpop.f32.mrb[0].mxu0
        %v3350 = vadd.f32 0.0, %v3349
        %v3351 = vpop.f32.mrb[0].mxu0
        %v3352 = vpop.f32.mrb[0].mxu0
        %v3353 = vadd.f32 0.0, %v3352
        %v3354 = vpop.f32.mrb[0].mxu0
        %3355 = vmatprep.mubr.bf16.mxu0 0
        %3356 = vmatmul.mubr.bf16.gmra.mrb[0].mxu0 %v3285
        %v3357 = vpop.f32.mrb[0].mxu0
        %v3358 = vadd.f32 0.0, %v3357
        %v3359 = vpop.f32.mrb[0].mxu0
        %v3360 = vpop.f32.mrb[0].mxu0
        %v3361 = vadd.f32 0.0, %v3360
        %v3362 = vpop.f32.mrb[0].mxu0
        %3363 = vmatprep.mubr.bf16.mxu0 0
        %3364 = vmatmul.mubr.bf16.gmra.mrb[0].mxu0 %v3288
        %v3365 = vpop.f32.mrb[0].mxu0
        %v3366 = vadd.f32 0.0, %v3365
        %v3367 = vpop.f32.mrb[0].mxu0
        %v3368 = vpop.f32.mrb[0].mxu0
        %v3369 = vadd.f32 0.0, %v3368
        %v3370 = vpop.f32.mrb[0].mxu0
        %3371 = vmatprep.mubr.bf16.mxu0 0
        %3372 = vmatmul.mubr.bf16.gmra.mrb[0].mxu0 %v3291
        %v3373 = vpop.f32.mrb[0].mxu0
        %v3374 = vadd.f32 0.0, %v3373
        %v3375 = vpop.f32.mrb[0].mxu0
        %v3376 = vpop.f32.mrb[0].mxu0
        %v3377 = vadd.f32 0.0, %v3376
        %v3378 = vpop.f32.mrb[0].mxu0
        %3379 = vmatprep.mubr.bf16.mxu0 0
        %3380 = vmatmul.mubr.bf16.gmra.mrb[0].mxu0 %v3294
        %v3381 = vpop.f32.mrb[0].mxu0
        %v3382 = vadd.f32 0.0, %v3381
        %v3383 = vpop.f32.mrb[0].mxu0
        %v3384 = vpop.f32.mrb[0].mxu0
        %v3385 = vadd.f32 0.0, %v3384
        %v3386 = vpop.f32.mrb[0].mxu0
        %3387 = vmatprep.mubr.bf16.mxu0 0
        %3388 = vmatmul.mubr.bf16.gmra.mrb[0].mxu0 %v3297
        %v3389 = vpop.f32.mrb[0].mxu0
        %v3390 = vadd.f32 0.0, %v3389
        %v3391 = vpop.f32.mrb[0].mxu0
        %v3392 = vpop.f32.mrb[0].mxu0
        %v3393 = vadd.f32 0.0, %v3392
        %v3394 = vpop.f32.mrb[0].mxu0
        %3395 = vdwg.mxu0
        %v3396 = vadd.f32 %v3259, %v3334
        %v3397 = vadd.f32 %v3260, %v3337
        %v3398 = vadd.f32 %v3261, %v3342
        %v3399 = vadd.f32 %v3262, %v3345
        %v3400 = vadd.f32 %v3263, %v3350
        %v3401 = vadd.f32 %v3264, %v3353
        %v3402 = vadd.f32 %v3265, %v3358
        %v3403 = vadd.f32 %v3266, %v3361
        %v3404 = vadd.f32 %v3267, %v3366
        %v3405 = vadd.f32 %v3268, %v3369
        %v3406 = vadd.f32 %v3269, %v3374
        %v3407 = vadd.f32 %v3270, %v3377
        %v3408 = vadd.f32 %v3271, %v3382
        %v3409 = vadd.f32 %v3272, %v3385
        %v3410 = vadd.f32 %v3273, %v3390
        %v3411 = vadd.f32 %v3274, %v3393
        %v3413 = vsel %vm170, %v2489, 0
        %v3416 = vsel %vm170, %v2501, 0
        %v3419 = vsel %vm170, %v2513, 0
        %v3422 = vsel %vm170, %v2525, 0
        %v3425 = vsel %vm170, %v2537, 0
        %v3428 = vsel %vm170, %v2549, 0
        %v3431 = vsel %vm170, %v2561, 0
        %v3434 = vsel %vm170, %v2573, 0
        %3436 = vmatprep.subr.bf16.mxu0 0
        %3437 = vmatpush1.bf16.msra.mxu0 %v1673
        %3438 = vmatprep.subr.bf16.mxu0 0
        %3439 = vmatpush1.bf16.msra.mxu0 0
        %3440 = vmatprep.subr.bf16.mxu0 0
        %3441 = vmatpush1.bf16.msra.mxu0 0
        %3442 = vmatprep.subr.bf16.mxu0 0
        %3443 = vmatpush1.bf16.msra.mxu0 0
        %3444 = vmatprep.subr.bf16.mxu0 0
        %3445 = vmatpush1.bf16.msra.mxu0 0
        %3446 = vmatprep.subr.bf16.mxu0 0
        %3447 = vmatpush1.bf16.msra.mxu0 0
        %3448 = vmatprep.subr.bf16.mxu0 0
        %3449 = vmatpush1.bf16.msra.mxu0 0
        %3450 = vmatprep.subr.bf16.mxu0 0
        %3451 = vmatpush1.bf16.msra.mxu0 0
        %3452 = vmatprep.subr.bf16.mxu0 0
        %3453 = vmatpush1.bf16.msra.mxu0 0
        %3454 = vmatprep.subr.bf16.mxu0 0
        %3455 = vmatpush1.bf16.msra.mxu0 0
        %3456 = vmatprep.subr.bf16.mxu0 0
        %3457 = vmatpush1.bf16.msra.mxu0 0
        %3458 = vmatprep.subr.bf16.mxu0 0
        %3459 = vmatpush1.bf16.msra.mxu0 0
        %3460 = vmatprep.subr.bf16.mxu0 0
        %3461 = vmatpush1.bf16.msra.mxu0 0
        %3462 = vmatprep.subr.bf16.mxu0 0
        %3463 = vmatpush1.bf16.msra.mxu0 0
        %3464 = vmatprep.subr.bf16.mxu0 0
        %3465 = vmatpush1.bf16.msra.mxu0 0
        %3466 = vmatprep.subr.bf16.mxu0 0
        %3467 = vmatpush1.bf16.msra.mxu0 0
        %3468 = vmatprep.mubr.bf16.mxu0 0
        %3469 = vmatmul.mubr.bf16.gmra.mrb[0].mxu0 %v3413
        %v3470 = vpop.f32.mrb[0].mxu0
        %v3471 = vadd.f32 0.0, %v3470
        %v3472 = vpop.f32.mrb[0].mxu0
        %v3473 = vpop.f32.mrb[0].mxu0
        %v3474 = vadd.f32 0.0, %v3473
        %v3475 = vpop.f32.mrb[0].mxu0
        %3476 = vmatprep.mubr.bf16.mxu0 0
        %3477 = vmatmul.mubr.bf16.gmra.mrb[0].mxu0 %v3416
        %v3478 = vpop.f32.mrb[0].mxu0
        %v3479 = vadd.f32 0.0, %v3478
        %v3480 = vpop.f32.mrb[0].mxu0
        %v3481 = vpop.f32.mrb[0].mxu0
        %v3482 = vadd.f32 0.0, %v3481
        %v3483 = vpop.f32.mrb[0].mxu0
        %3484 = vmatprep.mubr.bf16.mxu0 0
        %3485 = vmatmul.mubr.bf16.gmra.mrb[0].mxu0 %v3419
        %v3486 = vpop.f32.mrb[0].mxu0
        %v3487 = vadd.f32 0.0, %v3486
        %v3488 = vpop.f32.mrb[0].mxu0
        %v3489 = vpop.f32.mrb[0].mxu0
        %v3490 = vadd.f32 0.0, %v3489
        %v3491 = vpop.f32.mrb[0].mxu0
        %3492 = vmatprep.mubr.bf16.mxu0 0
        %3493 = vmatmul.mubr.bf16.gmra.mrb[0].mxu0 %v3422
        %v3494 = vpop.f32.mrb[0].mxu0
        %v3495 = vadd.f32 0.0, %v3494
        %v3496 = vpop.f32.mrb[0].mxu0
        %v3497 = vpop.f32.mrb[0].mxu0
        %v3498 = vadd.f32 0.0, %v3497
        %v3499 = vpop.f32.mrb[0].mxu0
        %3500 = vmatprep.mubr.bf16.mxu0 0
        %3501 = vmatmul.mubr.bf16.gmra.mrb[0].mxu0 %v3425
        %v3502 = vpop.f32.mrb[0].mxu0
        %v3503 = vadd.f32 0.0, %v3502
        %v3504 = vpop.f32.mrb[0].mxu0
        %v3505 = vpop.f32.mrb[0].mxu0
        %v3506 = vadd.f32 0.0, %v3505
        %v3507 = vpop.f32.mrb[0].mxu0
        %3508 = vmatprep.mubr.bf16.mxu0 0
        %3509 = vmatmul.mubr.bf16.gmra.mrb[0].mxu0 %v3428
        %v3510 = vpop.f32.mrb[0].mxu0
        %v3511 = vadd.f32 0.0, %v3510
        %v3512 = vpop.f32.mrb[0].mxu0
        %v3513 = vpop.f32.mrb[0].mxu0
        %v3514 = vadd.f32 0.0, %v3513
        %v3515 = vpop.f32.mrb[0].mxu0
        %3516 = vmatprep.mubr.bf16.mxu0 0
        %3517 = vmatmul.mubr.bf16.gmra.mrb[0].mxu0 %v3431
        %v3518 = vpop.f32.mrb[0].mxu0
        %v3519 = vadd.f32 0.0, %v3518
        %v3520 = vpop.f32.mrb[0].mxu0
        %v3521 = vpop.f32.mrb[0].mxu0
        %v3522 = vadd.f32 0.0, %v3521
        %v3523 = vpop.f32.mrb[0].mxu0
        %3524 = vmatprep.mubr.bf16.mxu0 0
        %3525 = vmatmul.mubr.bf16.gmra.mrb[0].mxu0 %v3434
        %v3526 = vpop.f32.mrb[0].mxu0
        %v3527 = vadd.f32 0.0, %v3526
        %v3528 = vpop.f32.mrb[0].mxu0
        %v3529 = vpop.f32.mrb[0].mxu0
        %v3530 = vadd.f32 0.0, %v3529
        %v3531 = vpop.f32.mrb[0].mxu0
        %3532 = vdwg.mxu0
        %v3533 = vadd.f32 %v3396, %v3471
        %v3534 = vadd.f32 %v3397, %v3474
        %v3535 = vadd.f32 %v3398, %v3479
        %v3536 = vadd.f32 %v3399, %v3482
        %v3537 = vadd.f32 %v3400, %v3487
        %v3538 = vadd.f32 %v3401, %v3490
        %v3539 = vadd.f32 %v3402, %v3495
        %v3540 = vadd.f32 %v3403, %v3498
        %v3541 = vadd.f32 %v3404, %v3503
        %v3542 = vadd.f32 %v3405, %v3506
        %v3543 = vadd.f32 %v3406, %v3511
        %v3544 = vadd.f32 %v3407, %v3514
        %v3545 = vadd.f32 %v3408, %v3519
        %v3546 = vadd.f32 %v3409, %v3522
        %v3547 = vadd.f32 %v3410, %v3527
        %v3548 = vadd.f32 %v3411, %v3530
        %v3549 = vsel %vm170, %v2463, 0
        %v3551 = vsel %vm170, %v2465, 0
        %v3553 = vsel %vm170, %v2467, 0
        %v3555 = vsel %vm170, %v2469, 0
        %v3557 = vsel %vm170, %v2471, 0
        %v3559 = vsel %vm170, %v2473, 0
        %v3561 = vsel %vm170, %v2475, 0
        %v3563 = vsel %vm170, %v2477, 0
        %3565 = vmatprep.subr.bf16.mxu0 0
        %3566 = vmatpush1.bf16.msra.mxu0 %v1813
        %3567 = vmatprep.subr.bf16.mxu0 0
        %3568 = vmatpush1.bf16.msra.mxu0 0
        %3569 = vmatprep.subr.bf16.mxu0 0
        %3570 = vmatpush1.bf16.msra.mxu0 0
        %3571 = vmatprep.subr.bf16.mxu0 0
        %3572 = vmatpush1.bf16.msra.mxu0 0
        %3573 = vmatprep.subr.bf16.mxu0 0
        %3574 = vmatpush1.bf16.msra.mxu0 0
        %3575 = vmatprep.subr.bf16.mxu0 0
        %3576 = vmatpush1.bf16.msra.mxu0 0
        %3577 = vmatprep.subr.bf16.mxu0 0
        %3578 = vmatpush1.bf16.msra.mxu0 0
        %3579 = vmatprep.subr.bf16.mxu0 0
        %3580 = vmatpush1.bf16.msra.mxu0 0
        %3581 = vmatprep.subr.bf16.mxu0 0
        %3582 = vmatpush1.bf16.msra.mxu0 0
        %3583 = vmatprep.subr.bf16.mxu0 0
        %3584 = vmatpush1.bf16.msra.mxu0 0
        %3585 = vmatprep.subr.bf16.mxu0 0
        %3586 = vmatpush1.bf16.msra.mxu0 0
        %3587 = vmatprep.subr.bf16.mxu0 0
        %3588 = vmatpush1.bf16.msra.mxu0 0
        %3589 = vmatprep.subr.bf16.mxu0 0
        %3590 = vmatpush1.bf16.msra.mxu0 0
        %3591 = vmatprep.subr.bf16.mxu0 0
        %3592 = vmatpush1.bf16.msra.mxu0 0
        %3593 = vmatprep.subr.bf16.mxu0 0
        %3594 = vmatpush1.bf16.msra.mxu0 0
        %3595 = vmatprep.subr.bf16.mxu0 0
        %3596 = vmatpush1.bf16.msra.mxu0 0
        %3597 = vmatprep.mubr.bf16.mxu0 0
        %3598 = vmatmul.mubr.bf16.gmra.mrb[0].mxu0 %v3549
        %v3599 = vpop.f32.mrb[0].mxu0
        %v3600 = vadd.f32 0.0, %v3599
        %v3601 = vpop.f32.mrb[0].mxu0
        %v3602 = vpop.f32.mrb[0].mxu0
        %v3603 = vadd.f32 0.0, %v3602
        %v3604 = vpop.f32.mrb[0].mxu0
        %3605 = vmatprep.mubr.bf16.mxu0 0
        %3606 = vmatmul.mubr.bf16.gmra.mrb[0].mxu0 %v3551
        %v3607 = vpop.f32.mrb[0].mxu0
        %v3608 = vadd.f32 0.0, %v3607
        %v3609 = vpop.f32.mrb[0].mxu0
        %v3610 = vpop.f32.mrb[0].mxu0
        %v3611 = vadd.f32 0.0, %v3610
        %v3612 = vpop.f32.mrb[0].mxu0
        %3613 = vmatprep.mubr.bf16.mxu0 0
        %3614 = vmatmul.mubr.bf16.gmra.mrb[0].mxu0 %v3553
        %v3615 = vpop.f32.mrb[0].mxu0
        %v3616 = vadd.f32 0.0, %v3615
        %v3617 = vpop.f32.mrb[0].mxu0
        %v3618 = vpop.f32.mrb[0].mxu0
        %v3619 = vadd.f32 0.0, %v3618
        %v3620 = vpop.f32.mrb[0].mxu0
        %3621 = vmatprep.mubr.bf16.mxu0 0
        %3622 = vmatmul.mubr.bf16.gmra.mrb[0].mxu0 %v3555
        %v3623 = vpop.f32.mrb[0].mxu0
        %v3624 = vadd.f32 0.0, %v3623
        %v3625 = vpop.f32.mrb[0].mxu0
        %v3626 = vpop.f32.mrb[0].mxu0
        %v3627 = vadd.f32 0.0, %v3626
        %v3628 = vpop.f32.mrb[0].mxu0
        %3629 = vmatprep.mubr.bf16.mxu0 0
        %3630 = vmatmul.mubr.bf16.gmra.mrb[0].mxu0 %v3557
        %v3631 = vpop.f32.mrb[0].mxu0
        %v3632 = vadd.f32 0.0, %v3631
        %v3633 = vpop.f32.mrb[0].mxu0
        %v3634 = vpop.f32.mrb[0].mxu0
        %v3635 = vadd.f32 0.0, %v3634
        %v3636 = vpop.f32.mrb[0].mxu0
        %3637 = vmatprep.mubr.bf16.mxu0 0
        %3638 = vmatmul.mubr.bf16.gmra.mrb[0].mxu0 %v3559
        %v3639 = vpop.f32.mrb[0].mxu0
        %v3640 = vadd.f32 0.0, %v3639
        %v3641 = vpop.f32.mrb[0].mxu0
        %v3642 = vpop.f32.mrb[0].mxu0
        %v3643 = vadd.f32 0.0, %v3642
        %v3644 = vpop.f32.mrb[0].mxu0
        %3645 = vmatprep.mubr.bf16.mxu0 0
        %3646 = vmatmul.mubr.bf16.gmra.mrb[0].mxu0 %v3561
        %v3647 = vpop.f32.mrb[0].mxu0
        %v3648 = vadd.f32 0.0, %v3647
        %v3649 = vpop.f32.mrb[0].mxu0
        %v3650 = vpop.f32.mrb[0].mxu0
        %v3651 = vadd.f32 0.0, %v3650
        %v3652 = vpop.f32.mrb[0].mxu0
        %3653 = vmatprep.mubr.bf16.mxu0 0
        %3654 = vmatmul.mubr.bf16.gmra.mrb[0].mxu0 %v3563
        %v3655 = vpop.f32.mrb[0].mxu0
        %v3656 = vadd.f32 0.0, %v3655
        %v3657 = vpop.f32.mrb[0].mxu0
        %v3658 = vpop.f32.mrb[0].mxu0
        %v3659 = vadd.f32 0.0, %v3658
        %v3660 = vpop.f32.mrb[0].mxu0
        %3661 = vdwg.mxu0
        %v3662 = vadd.f32 %v3533, %v3600
        %v3663 = vadd.f32 %v3534, %v3603
        %v3664 = vadd.f32 %v3535, %v3608
        %v3665 = vadd.f32 %v3536, %v3611
        %v3666 = vadd.f32 %v3537, %v3616
        %v3667 = vadd.f32 %v3538, %v3619
        %v3668 = vadd.f32 %v3539, %v3624
        %v3669 = vadd.f32 %v3540, %v3627
        %v3670 = vadd.f32 %v3541, %v3632
        %v3671 = vadd.f32 %v3542, %v3635
        %v3672 = vadd.f32 %v3543, %v3640
        %v3673 = vadd.f32 %v3544, %v3643
        %v3674 = vadd.f32 %v3545, %v3648
        %v3675 = vadd.f32 %v3546, %v3651
        %v3676 = vadd.f32 %v3547, %v3656
        %v3677 = vadd.f32 %v3548, %v3659
        %v3679 = vsel %vm170, %v2588, 0
        %v3682 = vsel %vm170, %v2595, 0
        %v3685 = vsel %vm170, %v2602, 0
        %v3688 = vsel %vm170, %v2609, 0
        %v3691 = vsel %vm170, %v2616, 0
        %v3694 = vsel %vm170, %v2623, 0
        %v3697 = vsel %vm170, %v2630, 0
        %v3700 = vsel %vm170, %v2637, 0
        %3702 = vmatprep.subr.bf16.mxu0 0
        %3703 = vmatpush1.bf16.msra.mxu0 %v1953
        %3704 = vmatprep.subr.bf16.mxu0 0
        %3705 = vmatpush1.bf16.msra.mxu0 0
        %3706 = vmatprep.subr.bf16.mxu0 0
        %3707 = vmatpush1.bf16.msra.mxu0 0
        %3708 = vmatprep.subr.bf16.mxu0 0
        %3709 = vmatpush1.bf16.msra.mxu0 0
        %3710 = vmatprep.subr.bf16.mxu0 0
        %3711 = vmatpush1.bf16.msra.mxu0 0
        %3712 = vmatprep.subr.bf16.mxu0 0
        %3713 = vmatpush1.bf16.msra.mxu0 0
        %3714 = vmatprep.subr.bf16.mxu0 0
        %3715 = vmatpush1.bf16.msra.mxu0 0
        %3716 = vmatprep.subr.bf16.mxu0 0
        %3717 = vmatpush1.bf16.msra.mxu0 0
        %3718 = vmatprep.subr.bf16.mxu0 0
        %3719 = vmatpush1.bf16.msra.mxu0 0
        %3720 = vmatprep.subr.bf16.mxu0 0
        %3721 = vmatpush1.bf16.msra.mxu0 0
        %3722 = vmatprep.subr.bf16.mxu0 0
        %3723 = vmatpush1.bf16.msra.mxu0 0
        %3724 = vmatprep.subr.bf16.mxu0 0
        %3725 = vmatpush1.bf16.msra.mxu0 0
        %3726 = vmatprep.subr.bf16.mxu0 0
        %3727 = vmatpush1.bf16.msra.mxu0 0
        %3728 = vmatprep.subr.bf16.mxu0 0
        %3729 = vmatpush1.bf16.msra.mxu0 0
        %3730 = vmatprep.subr.bf16.mxu0 0
        %3731 = vmatpush1.bf16.msra.mxu0 0
        %3732 = vmatprep.subr.bf16.mxu0 0
        %3733 = vmatpush1.bf16.msra.mxu0 0
        %3734 = vmatprep.mubr.bf16.mxu0 0
        %3735 = vmatmul.mubr.bf16.gmra.mrb[0].mxu0 %v3679
        %v3736 = vpop.f32.mrb[0].mxu0
        %v3737 = vadd.f32 0.0, %v3736
        %v3738 = vpop.f32.mrb[0].mxu0
        %v3739 = vpop.f32.mrb[0].mxu0
        %v3740 = vadd.f32 0.0, %v3739
        %v3741 = vpop.f32.mrb[0].mxu0
        %3742 = vmatprep.mubr.bf16.mxu0 0
        %3743 = vmatmul.mubr.bf16.gmra.mrb[0].mxu0 %v3682
        %v3744 = vpop.f32.mrb[0].mxu0
        %v3745 = vadd.f32 0.0, %v3744
        %v3746 = vpop.f32.mrb[0].mxu0
        %v3747 = vpop.f32.mrb[0].mxu0
        %v3748 = vadd.f32 0.0, %v3747
        %v3749 = vpop.f32.mrb[0].mxu0
        %3750 = vmatprep.mubr.bf16.mxu0 0
        %3751 = vmatmul.mubr.bf16.gmra.mrb[0].mxu0 %v3685
        %v3752 = vpop.f32.mrb[0].mxu0
        %v3753 = vadd.f32 0.0, %v3752
        %v3754 = vpop.f32.mrb[0].mxu0
        %v3755 = vpop.f32.mrb[0].mxu0
        %v3756 = vadd.f32 0.0, %v3755
        %v3757 = vpop.f32.mrb[0].mxu0
        %3758 = vmatprep.mubr.bf16.mxu0 0
        %3759 = vmatmul.mubr.bf16.gmra.mrb[0].mxu0 %v3688
        %v3760 = vpop.f32.mrb[0].mxu0
        %v3761 = vadd.f32 0.0, %v3760
        %v3762 = vpop.f32.mrb[0].mxu0
        %v3763 = vpop.f32.mrb[0].mxu0
        %v3764 = vadd.f32 0.0, %v3763
        %v3765 = vpop.f32.mrb[0].mxu0
        %3766 = vmatprep.mubr.bf16.mxu0 0
        %3767 = vmatmul.mubr.bf16.gmra.mrb[0].mxu0 %v3691
        %v3768 = vpop.f32.mrb[0].mxu0
        %v3769 = vadd.f32 0.0, %v3768
        %v3770 = vpop.f32.mrb[0].mxu0
        %v3771 = vpop.f32.mrb[0].mxu0
        %v3772 = vadd.f32 0.0, %v3771
        %v3773 = vpop.f32.mrb[0].mxu0
        %3774 = vmatprep.mubr.bf16.mxu0 0
        %3775 = vmatmul.mubr.bf16.gmra.mrb[0].mxu0 %v3694
        %v3776 = vpop.f32.mrb[0].mxu0
        %v3777 = vadd.f32 0.0, %v3776
        %v3778 = vpop.f32.mrb[0].mxu0
        %v3779 = vpop.f32.mrb[0].mxu0
        %v3780 = vadd.f32 0.0, %v3779
        %v3781 = vpop.f32.mrb[0].mxu0
        %3782 = vmatprep.mubr.bf16.mxu0 0
        %3783 = vmatmul.mubr.bf16.gmra.mrb[0].mxu0 %v3697
        %v3784 = vpop.f32.mrb[0].mxu0
        %v3785 = vadd.f32 0.0, %v3784
        %v3786 = vpop.f32.mrb[0].mxu0
        %v3787 = vpop.f32.mrb[0].mxu0
        %v3788 = vadd.f32 0.0, %v3787
        %v3789 = vpop.f32.mrb[0].mxu0
        %3790 = vmatprep.mubr.bf16.mxu0 0
        %3791 = vmatmul.mubr.bf16.gmra.mrb[0].mxu0 %v3700
        %v3792 = vpop.f32.mrb[0].mxu0
        %v3793 = vadd.f32 0.0, %v3792
        %v3794 = vpop.f32.mrb[0].mxu0
        %v3795 = vpop.f32.mrb[0].mxu0
        %v3796 = vadd.f32 0.0, %v3795
        %v3797 = vpop.f32.mrb[0].mxu0
        %3798 = vdwg.mxu0
        %v3799 = vadd.f32 %v3662, %v3737
        %v3800 = vadd.f32 %v3663, %v3740
        %v3801 = vadd.f32 %v3664, %v3745
        %v3802 = vadd.f32 %v3665, %v3748
        %v3803 = vadd.f32 %v3666, %v3753
        %v3804 = vadd.f32 %v3667, %v3756
        %v3805 = vadd.f32 %v3668, %v3761
        %v3806 = vadd.f32 %v3669, %v3764
        %v3807 = vadd.f32 %v3670, %v3769
        %v3808 = vadd.f32 %v3671, %v3772
        %v3809 = vadd.f32 %v3672, %v3777
        %v3810 = vadd.f32 %v3673, %v3780
        %v3811 = vadd.f32 %v3674, %v3785
        %v3812 = vadd.f32 %v3675, %v3788
        %v3813 = vadd.f32 %v3676, %v3793
        %v3814 = vadd.f32 %v3677, %v3796
        %v3815 = vadd.f32 %v3799, %v2072
        %v3816 = vadd.f32 %v3800, %v2072
        %v3817 = vadd.f32 %v3801, %v2072
        %v3818 = vadd.f32 %v3802, %v2072
        %v3819 = vadd.f32 %v3803, %v2072
        %v3820 = vadd.f32 %v3804, %v2072
        %v3821 = vadd.f32 %v3805, %v2072
        %v3822 = vadd.f32 %v3806, %v2072
        %v3823 = vadd.f32 %v3807, %v2072
        %v3824 = vadd.f32 %v3808, %v2072
        %v3825 = vadd.f32 %v3809, %v2072
        %v3826 = vadd.f32 %v3810, %v2072
        %v3827 = vadd.f32 %v3811, %v2072
        %v3828 = vadd.f32 %v3812, %v2072
        %v3829 = vadd.f32 %v3813, %v2072
        %v3830 = vadd.f32 %v3814, %v2072
        %s3831 = scalar_lea.vmem %s163, 128 [#allocation3]
        %3832 = vst.msk [vmem:[%s3831] sm:$0xff] %vm2090, %v3815
        %3833 = vst.msk [vmem:[%s3831 + $0x8] sm:$0xff] %vm2090, %v3816
        %3834 = vst.msk [vmem:[%s3831 + $0x10] sm:$0xff] %vm2090, %v3817
        %3835 = vst.msk [vmem:[%s3831 + $0x18] sm:$0xff] %vm2090, %v3818
        %3836 = vst.msk [vmem:[%s3831 + $0x20] sm:$0xff] %vm2090, %v3819
        %3837 = vst.msk [vmem:[%s3831 + $0x28] sm:$0xff] %vm2090, %v3820
        %3838 = vst.msk [vmem:[%s3831 + $0x30] sm:$0xff] %vm2090, %v3821
        %3839 = vst.msk [vmem:[%s3831 + $0x38] sm:$0xff] %vm2090, %v3822
        %3840 = vst.msk [vmem:[%s3831 + $0x40] sm:$0xff] %vm2090, %v3823
        %3841 = vst.msk [vmem:[%s3831 + $0x48] sm:$0xff] %vm2090, %v3824
        %3842 = vst.msk [vmem:[%s3831 + $0x50] sm:$0xff] %vm2090, %v3825
        %3843 = vst.msk [vmem:[%s3831 + $0x58] sm:$0xff] %vm2090, %v3826
        %3844 = vst.msk [vmem:[%s3831 + $0x60] sm:$0xff] %vm2090, %v3827
        %3845 = vst.msk [vmem:[%s3831 + $0x68] sm:$0xff] %vm2090, %v3828
        %3846 = vst.msk [vmem:[%s3831 + $0x70] sm:$0xff] %vm2090, %v3829
        %3847 = vst.msk [vmem:[%s3831 + $0x78] sm:$0xff] %vm2090, %v3830
        %s3848 = sand.u32 %s93, 1
        %s3849 = scalar_lea.sflag [#allocation4], %s3848
        %s3850 = sand.u32 %s93, 1
        %s3851 = smul.addr %s3850, 256
        %s3852 = scalar_lea.vmem [#allocation3], %s3851
        // Predicated region
        $region33: #{tpu_custom_call.1} parent=31 // pred_check
          %p3853 = pneg %p103
        $region34: #{tpu_custom_call.1} parent=31 // pred_check_branch
          %3855 = sbr.rel (%p3853) target = $region36
        $region35: #{tpu_custom_call.1} parent=31 // pred_region
          %s3857 = ssub.s32 4096, 4096
          %3858 = vsyncadd %s3849, %s3857
          %s3859 = smul.addr %s17, 32
          %s3860 = smul.addr %s3859, 128
          %s3861 = scalar_lea.hbm %s3, %s3860
          %s3862 = sshll.u32 %s3852, 4
          %s3863 = int_to_ptr.vmem [resolvable:$true] %s3862
          %3868 = dma.vmem_to_hbm [thread:$0]  %s3863, 4096, %s3861, %s3849, 128, 128, 8
        $region36: #{tpu_custom_call.1} parent=31 // pred_fallthru
          _
      $region32: #{tpu_custom_call.1} parent=5 // pred_fallthru
        _
      %p3869 = scmp.le.s32.totalorder 2, %s12
      // Predicated region
      $region37: #{tpu_custom_call.1} parent=5 // pred_check
        %p3870 = pneg %p3869
      $region38: #{tpu_custom_call.1} parent=5 // pred_check_branch
        %3872 = sbr.rel (%p3870) target = $region40
      $region39: #{tpu_custom_call.1} parent=5 // pred_region
        %s3873 = ssub.s32 %s12, 2
        // Predicated region
        $region41: #{tpu_custom_call.1} parent=39 // pred_check
          %p3874 = pneg %p109
        $region42: #{tpu_custom_call.1} parent=39 // pred_check_branch
          %3876 = sbr.rel (%p3874) target = $region44
        $region43: #{tpu_custom_call.1} parent=39 // pred_region
          %s3877 = sand.u32 %s94, 1
          %s3878 = scalar_lea.sflag [#allocation4], %s3877
          %s3879 = sand.u32 %s94, 1
          %s3880 = smul.addr %s3879, 256
          %s3881 = scalar_lea.vmem [#allocation3], %s3880
          %3882 = dma.done %s3878, 4096
        $region44: #{tpu_custom_call.1} parent=39 // pred_fallthru
          _
      $region40: #{tpu_custom_call.1} parent=5 // pred_fallthru
        _
    $region6: #{tpu_custom_call.1} parent=1 // loop_footer
      %s16 = sadd.s32 1, %s12
    $region7: #{tpu_custom_call.1} parent=1 // loop_footer_branch
      %11 = sbr.rel target = $region3
    $region8: #{tpu_custom_call.1} parent=1 // loop_exit
      _
    %3883 = vsyncpa [#allocation4], 1
    %s3884 = scalar_lea.sflag [#allocation4], 1
    %3885 = vsyncpa %s3884, 1

</llo_original>
